<compile_context>
chip_gen: v6e
topology: v6e:2x2x1
jax: 0.10.0
libtpu: 0.0.40
codegen_flags: <defaults>
</compile_context>

<pallas_src>
import functools
import math

import jax
import jax.numpy as jnp
from jax import lax
from jax.experimental import pallas as pl
from jax.experimental.pallas import tpu as pltpu


def _round_up(x, m):
    return ((x + m - 1) // m) * m


def _attn_rpr_kernel(vl_ref, nkt_ref,                 # scalar prefetch (SMEM)
                     q_ref, k_ref, v_ref,             # (bc,tq,D) (bc,tk,D) (bc,tk,Dv)
                     pk_ref, pv_ref,                  # (D,tq,tk) (Dv,tq,tk)
                     o_ref,                           # (bc,tq,Dv)
                     m_sc, l_sc, acc_sc,              # online-softmax state (VMEM)
                     *, bc, d, dv, lk_real, needs_col_mask, scale):
    bcix = pl.program_id(1)
    ki = pl.program_id(2)
    n_k = pl.num_programs(2)
    tq = q_ref.shape[1]
    tk = k_ref.shape[1]
    k_start = ki * tk

    @pl.when(ki == 0)
    def _init():
        m_sc[...] = jnp.full_like(m_sc, -1.0e30)
        l_sc[...] = jnp.zeros_like(l_sc)
        acc_sc[...] = jnp.zeros_like(acc_sc)

    # Tiles past the last needed Lk tile for this batch chunk contribute
    # exactly 0 softmax weight, so they are skipped entirely (and their DMA is
    # elided by the clamped index_maps in the wrapper).
    @pl.when(ki < nkt_ref[bcix])
    def _compute():
        cols = k_start + lax.broadcasted_iota(jnp.int32, (tq, tk), 1)
        lane_e = lax.broadcasted_iota(jnp.int32, (tq, dv), 1)

        for j in range(bc):                      # static unroll over the batch chunk
            vl = vl_ref[bcix * bc + j]
            q32 = q_ref[j].astype(jnp.float32)   # (tq, D)
            v = v_ref[j]                         # (tk, Dv)

            # Content scores on the MXU (native operand dtype, f32 accumulate).
            s = lax.dot_general(q_ref[j], k_ref[j], (((1,), (1,)), ((), ())),
                                preferred_element_type=jnp.float32)     # (tq, tk)
            # RPR score term: accumulate over D as (tq, tk) slabs.  pk_ref[dd]
            # is a cheap leading-dim plane load; partial sums stay in vregs.
            for dd in range(d):
                s = s + q32[:, dd:dd + 1] * pk_ref[dd].astype(jnp.float32)
            s = s * scale

            # Per-batch key mask (matches reference masked_softmax, value -1e6).
            s = jnp.where(cols < vl, s, jnp.float32(-1.0e6))
            if needs_col_mask:
                # Padded key columns must never contribute, even when
                # valid_len == 0 (uniform attention) or valid_len > Lk.
                s = jnp.where(cols < lk_real, s, jnp.float32(-1.0e30))

            # Online softmax update.
            m_prev = m_sc[j]
            m_new = jnp.maximum(m_prev, jnp.max(s, axis=-1, keepdims=True))
            alpha = jnp.exp(m_prev - m_new)
            p = jnp.exp(s - m_new)                                       # (tq, tk) f32
            l_sc[j] = alpha * l_sc[j] + jnp.sum(p, axis=-1, keepdims=True)

            # Content value term on the MXU.
            acc = alpha * acc_sc[j] + jnp.dot(p.astype(v.dtype), v,
                                              preferred_element_type=jnp.float32)
            # RPR value term: per output channel, VPU multiply + lane reduce,
            # scattered into the accumulator with an iota select (no 3-D temps).
            for e in range(dv):
                col = jnp.sum(p * pv_ref[e].astype(jnp.float32),
                              axis=-1, keepdims=True)                    # (tq, 1)
                acc = acc + jnp.where(lane_e == e, col, 0.0)
            acc_sc[j] = acc
            m_sc[j] = m_new

    @pl.when(ki == n_k - 1)
    def _finalize():
        for j in range(bc):
            # Exact f32 normalization (approximate reciprocal was the source of
            # the previous accuracy failure for f32 outputs).
            o_ref[j] = (acc_sc[j] / l_sc[j]).astype(o_ref.dtype)


def dot_product_attention_with_rpr(queries, keys, values, pos_k, pos_v,
                                   valid_lens=None, *,
                                   tile_q=64, tile_k=128, batch_chunk=4,
                                   pos_dtype=None):
    B, Lq, D = queries.shape
    Lk = keys.shape[1]
    Dv = values.shape[-1]

    if valid_lens is None:
        valid_lens = jnp.full((B,), Lk, dtype=jnp.int32)
    valid_lens = valid_lens.astype(jnp.int32)
    # TODO(synk): only the 1-D per-batch valid_lens form used by the module is
    # supported; the reference masked_softmax's 2-D per-query form is not.

    # Optional bandwidth knob (review item #2): stream the dominant pos tensors
    # in a narrower dtype (e.g. jnp.bfloat16); accumulation stays f32 in-kernel.
    if pos_dtype is not None:
        pos_k = pos_k.astype(pos_dtype)
        pos_v = pos_v.astype(pos_dtype)

    # Batch chunk: largest divisor of B <= batch_chunk.  Each grid step re-uses
    # its pos_k/pos_v tiles for `bc` batches -> pos HBM traffic / bc.
    bc = 1
    for c in range(min(batch_chunk, B), 0, -1):
        if B % c == 0:
            bc = c
            break
    n_bc = B // bc

    tq = min(tile_q, _round_up(Lq, 8))
    tk = min(tile_k, _round_up(Lk, 8))
    lq_p = _round_up(Lq, tq)
    lk_p = _round_up(Lk, tk)

    # Lane-dense pos layouts: contraction axis leading, Lk on the lane axis.
    pos_k_t = jnp.transpose(pos_k, (2, 0, 1))    # (D,  Lq, Lk)
    pos_v_t = jnp.transpose(pos_v, (2, 0, 1))    # (Dv, Lq, Lk)

    if lq_p != Lq:
        dq = lq_p - Lq
        queries = jnp.pad(queries, ((0, 0), (0, dq), (0, 0)))
        pos_k_t = jnp.pad(pos_k_t, ((0, 0), (0, dq), (0, 0)))
        pos_v_t = jnp.pad(pos_v_t, ((0, 0), (0, dq), (0, 0)))
    if lk_p != Lk:
        dk = lk_p - Lk
        keys = jnp.pad(keys, ((0, 0), (0, dk), (0, 0)))
        values = jnp.pad(values, ((0, 0), (0, dk), (0, 0)))
        pos_k_t = jnp.pad(pos_k_t, ((0, 0), (0, 0), (0, dk)))
        pos_v_t = jnp.pad(pos_v_t, ((0, 0), (0, 0), (0, dk)))

    n_q = lq_p // tq
    n_k = lk_p // tk

    # Number of Lk tiles that actually contribute, per batch chunk.  A chunk
    # containing valid_len == 0 needs every tile (masked_softmax degenerates to
    # uniform attention over all Lk keys in that case).
    vl_chunk = valid_lens.reshape(n_bc, bc)
    chunk_max = jnp.max(vl_chunk, axis=1)
    chunk_zero = jnp.any(vl_chunk == 0, axis=1)
    nkt = jnp.clip((chunk_max + tk - 1) // tk, 1, n_k)
    nkt = jnp.where(chunk_zero, n_k, nkt).astype(jnp.int32)

    kernel = functools.partial(
        _attn_rpr_kernel, bc=bc, d=D, dv=Dv, lk_real=Lk,
        needs_col_mask=(lk_p != Lk), scale=1.0 / math.sqrt(D))

    def _clamp_ki(ki, nkt_ref, b):
        # Skipped steps reuse the last needed tile index -> Pallas elides the DMA.
        return jnp.minimum(ki, jnp.maximum(nkt_ref[b] - 1, 0))

    grid_spec = pltpu.PrefetchScalarGridSpec(
        num_scalar_prefetch=2,
        # qi leading so a megacore split lands on queries (disjoint pos tiles),
        # batch-chunk second, Lk (reduction) last and "arbitrary".
        grid=(n_q, n_bc, n_k),
        in_specs=[
            pl.BlockSpec((bc, tq, D),
                         lambda qi, b, ki, vl, nkt: (b, qi, 0)),
            pl.BlockSpec((bc, tk, D),
                         lambda qi, b, ki, vl, nkt: (b, _clamp_ki(ki, nkt, b), 0)),
            pl.BlockSpec((bc, tk, Dv),
                         lambda qi, b, ki, vl, nkt: (b, _clamp_ki(ki, nkt, b), 0)),
            pl.BlockSpec((D, tq, tk),
                         lambda qi, b, ki, vl, nkt: (0, qi, _clamp_ki(ki, nkt, b))),
            pl.BlockSpec((Dv, tq, tk),
                         lambda qi, b, ki, vl, nkt: (0, qi, _clamp_ki(ki, nkt, b))),
        ],
        out_specs=pl.BlockSpec((bc, tq, Dv),
                               lambda qi, b, ki, vl, nkt: (b, qi, 0)),
        scratch_shapes=[
            pltpu.VMEM((bc, tq, 1), jnp.float32),    # running max  m
            pltpu.VMEM((bc, tq, 1), jnp.float32),    # running sum  l
            pltpu.VMEM((bc, tq, Dv), jnp.float32),   # running numerator
        ],
    )

    itemsize = queries.dtype.itemsize
    pos_itemsize = pos_k_t.dtype.itemsize
    block_bytes = (bc * tq * D + bc * tk * D + bc * tk * Dv + bc * tq * Dv) * itemsize
    block_bytes += (D * tq * tk + Dv * tq * tk) * pos_itemsize
    scratch_bytes = bc * tq * (Dv + 2) * 4
    vmem_limit = int(min(max(2 * block_bytes + scratch_bytes + (2 << 20), 32 << 20),
                         64 << 20))

    cost = pl.CostEstimate(
        flops=int(4 * B * lq_p * lk_p * (D + Dv)),
        transcendentals=int(B * lq_p * lk_p),
        bytes_accessed=int(n_bc * (pos_k_t.size + pos_v_t.size) * pos_itemsize
                           + (queries.size + keys.size + values.size
                              + B * lq_p * Dv) * itemsize),
    )

    out = pl.pallas_call(
        kernel,
        out_shape=jax.ShapeDtypeStruct((B, lq_p, Dv), queries.dtype),
        grid_spec=grid_spec,
        compiler_params=pltpu.CompilerParams(
            dimension_semantics=("parallel", "parallel", "arbitrary"),
            vmem_limit_bytes=vmem_limit),
        cost_estimate=cost,
    )(valid_lens, nkt, queries, keys, values, pos_k_t, pos_v_t)

    if lq_p != Lq:
        out = out[:, :Lq, :]
    return out


def _reference(queries, keys, values, pos_k, pos_v, valid_lens):
    """Pure-JAX replica of the PyTorch forward (dropout = identity)."""
    d = queries.shape[-1]
    scores = jnp.einsum('bid,bjd->bij', queries, keys)
    scores_pos = jnp.einsum('bid,ijd->bij', queries, pos_k)
    scores = (scores + scores_pos) / math.sqrt(d)
    if valid_lens is not None:
        cols = jnp.arange(scores.shape[-1])[None, None, :]
        mask = cols < valid_lens[:, None, None]
        scores = jnp.where(mask, scores, -1000000.0)
    attn = jax.nn.softmax(scores, axis=-1)
    out = jnp.einsum('bij,bjd->bid', attn, values)
    out_pos = jnp.einsum('bij,ijd->bid', attn, pos_v)
    return out + out_pos


if __name__ == "__main__":
    # --- Test 1: toy single-tile shapes implied by the module. ---
    B, Lq, Lk, D, Dv = 2, 8, 8, 32, 32
    key = jax.random.PRNGKey(0)
    kq, kk, kv, kpk, kpv = jax.random.split(key, 5)
    q = jax.random.normal(kq, (B, Lq, D), dtype=jnp.float32)
    k = jax.random.normal(kk, (B, Lk, D), dtype=jnp.float32)
    v = jax.random.normal(kv, (B, Lk, Dv), dtype=jnp.float32)
    pk = jax.random.normal(kpk, (Lq, Lk, D), dtype=jnp.float32)
    pv = jax.random.normal(kpv, (Lq, Lk, Dv), dtype=jnp.float32)
    vl = jnp.array([5, 8], dtype=jnp.int32)

    out = jax.block_until_ready(
        dot_product_attention_with_rpr(q, k, v, pk, pv, vl))
    ref = _reference(q, k, v, pk, pv, vl)
    assert out.shape == (B, Lq, Dv)
    assert jnp.allclose(out, ref, atol=2e-3, rtol=2e-3), "mismatch (toy shape)"

    # valid_lens=None path.
    out_nm = jax.block_until_ready(
        dot_product_attention_with_rpr(q, k, v, pk, pv, None))
    ref_nm = _reference(q, k, v, pk, pv, None)
    assert jnp.allclose(out_nm, ref_nm, atol=2e-3, rtol=2e-3), "mismatch (no mask)"

    # --- Test 2: batch-chunked, multi-Lk-tile, padded, tile-skipping path. ---
    B2, Lq2, Lk2 = 4, 40, 200
    k2 = jax.random.PRNGKey(1)
    kq2, kk2, kv2, kpk2, kpv2 = jax.random.split(k2, 5)
    q2 = jax.random.normal(kq2, (B2, Lq2, D), dtype=jnp.float32)
    keys2 = jax.random.normal(kk2, (B2, Lk2, D), dtype=jnp.float32)
    v2 = jax.random.normal(kv2, (B2, Lk2, Dv), dtype=jnp.float32)
    pk2 = jax.random.normal(kpk2, (Lq2, Lk2, D), dtype=jnp.float32)
    pv2 = jax.random.normal(kpv2, (Lq2, Lk2, Dv), dtype=jnp.float32)
    vl2 = jnp.array([100, 200, 64, 100], dtype=jnp.int32)

    out2 = jax.block_until_ready(
        dot_product_attention_with_rpr(q2, keys2, v2, pk2, pv2, vl2,
                                       batch_chunk=2))
    ref2 = _reference(q2, keys2, v2, pk2, pv2, vl2)
    assert out2.shape == (B2, Lq2, Dv)
    assert jnp.allclose(out2, ref2, atol=2e-3, rtol=2e-3), "mismatch (tiled path)"

    print("KERNEL_OK")
</pallas_src>

<mosaic_0001>
module attributes {stable_mosaic.version = 11 : i64} {
  func.func @_attn_rpr_kernel(%arg0: i32, %arg1: i32, %arg2: i32, %arg3: memref<2xi32, #tpu.memory_space<smem>>, %arg4: memref<1xi32, #tpu.memory_space<smem>>, %arg5: memref<2x8x32xf32, #tpu.memory_space<vmem>>, %arg6: memref<2x8x32xf32, #tpu.memory_space<vmem>>, %arg7: memref<2x8x32xf32, #tpu.memory_space<vmem>>, %arg8: memref<32x8x8xf32, #tpu.memory_space<vmem>>, %arg9: memref<32x8x8xf32, #tpu.memory_space<vmem>>, %arg10: memref<2x8x32xf32, #tpu.memory_space<vmem>>, %arg11: memref<2x8x1xf32, #tpu.memory_space<vmem>>, %arg12: memref<2x8x1xf32, #tpu.memory_space<vmem>>, %arg13: memref<2x8x32xf32, #tpu.memory_space<vmem>>) attributes {dimension_semantics = [#tpu.dimension_semantics<parallel>, #tpu.dimension_semantics<parallel>, #tpu.dimension_semantics<arbitrary>], iteration_bounds = array<i64: 1, 1, 1>, scalar_prefetch = 2 : i64, scratch_operands = 3 : i64, tpu.core_type = #tpu.core_type<tc>, window_params = [{transform_indices = @transform_0, window_bounds = array<i64: 2, 8, 32>}, {transform_indices = @transform_1, window_bounds = array<i64: 2, 8, 32>}, {transform_indices = @transform_2, window_bounds = array<i64: 2, 8, 32>}, {transform_indices = @transform_3, window_bounds = array<i64: 32, 8, 8>}, {transform_indices = @transform_4, window_bounds = array<i64: 32, 8, 8>}, {transform_indices = @transform_5, window_bounds = array<i64: 2, 8, 32>}]} {
    %c8_i32 = arith.constant 8 : i32
    %0 = arith.muli %arg2, %c8_i32 : i32
    %c0_i32 = arith.constant 0 : i32
    %1 = arith.cmpi eq, %arg2, %c0_i32 : i32
    %2 = arith.extui %1 : i1 to i32
    %c0_i32_0 = arith.constant 0 : i32
    %3 = arith.cmpi ne, %2, %c0_i32_0 : i32
    scf.if %3 {
      %cst = arith.constant -1.000000e+30 : f32
      %12 = vector.broadcast %cst : f32 to vector<2x8x1xf32>
      %c0 = arith.constant 0 : index
      %c0_4 = arith.constant 0 : index
      %c0_5 = arith.constant 0 : index
      %13 = vector.load %arg11[%c0, %c0_4, %c0_5] : memref<2x8x1xf32, #tpu.memory_space<vmem>>, vector<2x8x1xf32>
      tpu.vector_store %arg11[%c0, %c0_4, %c0_5], %12 {strides = array<i32>} : memref<2x8x1xf32, #tpu.memory_space<vmem>>, vector<2x8x1xf32>,
      %cst_6 = arith.constant 0.000000e+00 : f32
      %14 = vector.broadcast %cst_6 : f32 to vector<2x8x1xf32>
      %c0_7 = arith.constant 0 : index
      %c0_8 = arith.constant 0 : index
      %c0_9 = arith.constant 0 : index
      %15 = vector.load %arg12[%c0_7, %c0_8, %c0_9] : memref<2x8x1xf32, #tpu.memory_space<vmem>>, vector<2x8x1xf32>
      tpu.vector_store %arg12[%c0_7, %c0_8, %c0_9], %14 {strides = array<i32>} : memref<2x8x1xf32, #tpu.memory_space<vmem>>, vector<2x8x1xf32>,
      %cst_10 = arith.constant 0.000000e+00 : f32
      %16 = vector.broadcast %cst_10 : f32 to vector<2x8x32xf32>
      %c0_11 = arith.constant 0 : index
      %c0_12 = arith.constant 0 : index
      %c0_13 = arith.constant 0 : index
      %17 = vector.load %arg13[%c0_11, %c0_12, %c0_13] : memref<2x8x32xf32, #tpu.memory_space<vmem>>, vector<2x8x32xf32>
      tpu.vector_store %arg13[%c0_11, %c0_12, %c0_13], %16 {strides = array<i32>} : memref<2x8x32xf32, #tpu.memory_space<vmem>>, vector<2x8x32xf32>,
    } else {
    }
    %4 = arith.index_cast %arg1 : i32 to index
    %5 = memref.load %arg4[%4] : memref<1xi32, #tpu.memory_space<smem>>
    %6 = arith.cmpi slt, %arg2, %5 : i32
    %7 = arith.extui %6 : i1 to i32
    %c0_i32_1 = arith.constant 0 : i32
    %8 = arith.cmpi ne, %7, %c0_i32_1 : i32
    scf.if %8 {
      %12 = tpu.iota {dimensions = array<i32: 1>} : vector<8x8xi32>
      %13 = vector.broadcast %0 : i32 to vector<8x8xi32>
      %14 = arith.addi %13, %12 : vector<8x8xi32>
      %15 = tpu.iota {dimensions = array<i32: 1>} : vector<8x32xi32>
      %c2_i32 = arith.constant 2 : i32
      %16 = arith.muli %arg1, %c2_i32 : i32
      %c0_i32_4 = arith.constant 0 : i32
      %17 = arith.addi %16, %c0_i32_4 : i32
      %18 = arith.index_cast %17 : i32 to index
      %19 = memref.load %arg3[%18] : memref<2xi32, #tpu.memory_space<smem>>
      %c0 = arith.constant 0 : index
      %c0_5 = arith.constant 0 : index
      %c0_6 = arith.constant 0 : index
      %20 = vector.load %arg5[%c0, %c0_5, %c0_6] : memref<2x8x32xf32, #tpu.memory_space<vmem>>, vector<1x8x32xf32>
      %21 = vector.shape_cast %20 : vector<1x8x32xf32> to vector<8x32xf32>
      %c0_7 = arith.constant 0 : index
      %c0_8 = arith.constant 0 : index
      %c0_9 = arith.constant 0 : index
      %22 = vector.load %arg7[%c0_7, %c0_8, %c0_9] : memref<2x8x32xf32, #tpu.memory_space<vmem>>, vector<1x8x32xf32>
      %23 = vector.shape_cast %22 : vector<1x8x32xf32> to vector<8x32xf32>
      %c0_10 = arith.constant 0 : index
      %c0_11 = arith.constant 0 : index
      %c0_12 = arith.constant 0 : index
      %24 = vector.load %arg5[%c0_10, %c0_11, %c0_12] : memref<2x8x32xf32, #tpu.memory_space<vmem>>, vector<1x8x32xf32>
      %25 = vector.shape_cast %24 : vector<1x8x32xf32> to vector<8x32xf32>
      %c0_13 = arith.constant 0 : index
      %c0_14 = arith.constant 0 : index
      %c0_15 = arith.constant 0 : index
      %26 = vector.load %arg6[%c0_13, %c0_14, %c0_15] : memref<2x8x32xf32, #tpu.memory_space<vmem>>, vector<1x8x32xf32>
      %27 = vector.shape_cast %26 : vector<1x8x32xf32> to vector<8x32xf32>
      %cst = arith.constant dense<0.000000e+00> : vector<8x8xf32>
      %28 = tpu.matmul %25, %27, %cst {dimension_numbers = #tpu.dot_dimension_numbers<[1], [1], [0], [0], [0, 0, 1, 0], [], []>} : vector<8x32xf32>, vector<8x32xf32>, vector<8x8xf32> -> vector<8x8xf32>
      %29 = vector.extract_strided_slice %21 {offsets = [0, 0], sizes = [8, 1], strides = [1, 1]} : vector<8x32xf32> to vector<8x1xf32>
      %c0_16 = arith.constant 0 : index
      %c0_17 = arith.constant 0 : index
      %c0_18 = arith.constant 0 : index
      %30 = vector.load %arg8[%c0_16, %c0_17, %c0_18] : memref<32x8x8xf32, #tpu.memory_space<vmem>>, vector<1x8x8xf32>
      %31 = vector.shape_cast %30 : vector<1x8x8xf32> to vector<8x8xf32>
      %32 = vector.broadcast %29 : vector<8x1xf32> to vector<8x8xf32>
      %33 = arith.mulf %32, %31 : vector<8x8xf32>
      %34 = arith.addf %28, %33 : vector<8x8xf32>
      %35 = vector.extract_strided_slice %21 {offsets = [0, 1], sizes = [8, 1], strides = [1, 1]} : vector<8x32xf32> to vector<8x1xf32>
      %c1 = arith.constant 1 : index
      %c0_19 = arith.constant 0 : index
      %c0_20 = arith.constant 0 : index
      %36 = vector.load %arg8[%c1, %c0_19, %c0_20] : memref<32x8x8xf32, #tpu.memory_space<vmem>>, vector<1x8x8xf32>
      %37 = vector.shape_cast %36 : vector<1x8x8xf32> to vector<8x8xf32>
      %38 = vector.broadcast %35 : vector<8x1xf32> to vector<8x8xf32>
      %39 = arith.mulf %38, %37 : vector<8x8xf32>
      %40 = arith.addf %34, %39 : vector<8x8xf32>
      %41 = vector.extract_strided_slice %21 {offsets = [0, 2], sizes = [8, 1], strides = [1, 1]} : vector<8x32xf32> to vector<8x1xf32>
      %c2 = arith.constant 2 : index
      %c0_21 = arith.constant 0 : index
      %c0_22 = arith.constant 0 : index
      %42 = vector.load %arg8[%c2, %c0_21, %c0_22] : memref<32x8x8xf32, #tpu.memory_space<vmem>>, vector<1x8x8xf32>
      %43 = vector.shape_cast %42 : vector<1x8x8xf32> to vector<8x8xf32>
      %44 = vector.broadcast %41 : vector<8x1xf32> to vector<8x8xf32>
      %45 = arith.mulf %44, %43 : vector<8x8xf32>
      %46 = arith.addf %40, %45 : vector<8x8xf32>
      %47 = vector.extract_strided_slice %21 {offsets = [0, 3], sizes = [8, 1], strides = [1, 1]} : vector<8x32xf32> to vector<8x1xf32>
      %c3 = arith.constant 3 : index
      %c0_23 = arith.constant 0 : index
      %c0_24 = arith.constant 0 : index
      %48 = vector.load %arg8[%c3, %c0_23, %c0_24] : memref<32x8x8xf32, #tpu.memory_space<vmem>>, vector<1x8x8xf32>
      %49 = vector.shape_cast %48 : vector<1x8x8xf32> to vector<8x8xf32>
      %50 = vector.broadcast %47 : vector<8x1xf32> to vector<8x8xf32>
      %51 = arith.mulf %50, %49 : vector<8x8xf32>
      %52 = arith.addf %46, %51 : vector<8x8xf32>
      %53 = vector.extract_strided_slice %21 {offsets = [0, 4], sizes = [8, 1], strides = [1, 1]} : vector<8x32xf32> to vector<8x1xf32>
      %c4 = arith.constant 4 : index
      %c0_25 = arith.constant 0 : index
      %c0_26 = arith.constant 0 : index
      %54 = vector.load %arg8[%c4, %c0_25, %c0_26] : memref<32x8x8xf32, #tpu.memory_space<vmem>>, vector<1x8x8xf32>
      %55 = vector.shape_cast %54 : vector<1x8x8xf32> to vector<8x8xf32>
      %56 = vector.broadcast %53 : vector<8x1xf32> to vector<8x8xf32>
      %57 = arith.mulf %56, %55 : vector<8x8xf32>
      %58 = arith.addf %52, %57 : vector<8x8xf32>
      %59 = vector.extract_strided_slice %21 {offsets = [0, 5], sizes = [8, 1], strides = [1, 1]} : vector<8x32xf32> to vector<8x1xf32>
      %c5 = arith.constant 5 : index
      %c0_27 = arith.constant 0 : index
      %c0_28 = arith.constant 0 : index
      %60 = vector.load %arg8[%c5, %c0_27, %c0_28] : memref<32x8x8xf32, #tpu.memory_space<vmem>>, vector<1x8x8xf32>
      %61 = vector.shape_cast %60 : vector<1x8x8xf32> to vector<8x8xf32>
      %62 = vector.broadcast %59 : vector<8x1xf32> to vector<8x8xf32>
      %63 = arith.mulf %62, %61 : vector<8x8xf32>
      %64 = arith.addf %58, %63 : vector<8x8xf32>
      %65 = vector.extract_strided_slice %21 {offsets = [0, 6], sizes = [8, 1], strides = [1, 1]} : vector<8x32xf32> to vector<8x1xf32>
      %c6 = arith.constant 6 : index
      %c0_29 = arith.constant 0 : index
      %c0_30 = arith.constant 0 : index
      %66 = vector.load %arg8[%c6, %c0_29, %c0_30] : memref<32x8x8xf32, #tpu.memory_space<vmem>>, vector<1x8x8xf32>
      %67 = vector.shape_cast %66 : vector<1x8x8xf32> to vector<8x8xf32>
      %68 = vector.broadcast %65 : vector<8x1xf32> to vector<8x8xf32>
      %69 = arith.mulf %68, %67 : vector<8x8xf32>
      %70 = arith.addf %64, %69 : vector<8x8xf32>
      %71 = vector.extract_strided_slice %21 {offsets = [0, 7], sizes = [8, 1], strides = [1, 1]} : vector<8x32xf32> to vector<8x1xf32>
      %c7 = arith.constant 7 : index
      %c0_31 = arith.constant 0 : index
      %c0_32 = arith.constant 0 : index
      %72 = vector.load %arg8[%c7, %c0_31, %c0_32] : memref<32x8x8xf32, #tpu.memory_space<vmem>>, vector<1x8x8xf32>
      %73 = vector.shape_cast %72 : vector<1x8x8xf32> to vector<8x8xf32>
      %74 = vector.broadcast %71 : vector<8x1xf32> to vector<8x8xf32>
      %75 = arith.mulf %74, %73 : vector<8x8xf32>
      %76 = arith.addf %70, %75 : vector<8x8xf32>
      %77 = vector.extract_strided_slice %21 {offsets = [0, 8], sizes = [8, 1], strides = [1, 1]} : vector<8x32xf32> to vector<8x1xf32>
      %c8 = arith.constant 8 : index
      %c0_33 = arith.constant 0 : index
      %c0_34 = arith.constant 0 : index
      %78 = vector.load %arg8[%c8, %c0_33, %c0_34] : memref<32x8x8xf32, #tpu.memory_space<vmem>>, vector<1x8x8xf32>
      %79 = vector.shape_cast %78 : vector<1x8x8xf32> to vector<8x8xf32>
      %80 = vector.broadcast %77 : vector<8x1xf32> to vector<8x8xf32>
      %81 = arith.mulf %80, %79 : vector<8x8xf32>
      %82 = arith.addf %76, %81 : vector<8x8xf32>
      %83 = vector.extract_strided_slice %21 {offsets = [0, 9], sizes = [8, 1], strides = [1, 1]} : vector<8x32xf32> to vector<8x1xf32>
      %c9 = arith.constant 9 : index
      %c0_35 = arith.constant 0 : index
      %c0_36 = arith.constant 0 : index
      %84 = vector.load %arg8[%c9, %c0_35, %c0_36] : memref<32x8x8xf32, #tpu.memory_space<vmem>>, vector<1x8x8xf32>
      %85 = vector.shape_cast %84 : vector<1x8x8xf32> to vector<8x8xf32>
      %86 = vector.broadcast %83 : vector<8x1xf32> to vector<8x8xf32>
      %87 = arith.mulf %86, %85 : vector<8x8xf32>
      %88 = arith.addf %82, %87 : vector<8x8xf32>
      %89 = vector.extract_strided_slice %21 {offsets = [0, 10], sizes = [8, 1], strides = [1, 1]} : vector<8x32xf32> to vector<8x1xf32>
      %c10 = arith.constant 10 : index
      %c0_37 = arith.constant 0 : index
      %c0_38 = arith.constant 0 : index
      %90 = vector.load %arg8[%c10, %c0_37, %c0_38] : memref<32x8x8xf32, #tpu.memory_space<vmem>>, vector<1x8x8xf32>
      %91 = vector.shape_cast %90 : vector<1x8x8xf32> to vector<8x8xf32>
      %92 = vector.broadcast %89 : vector<8x1xf32> to vector<8x8xf32>
      %93 = arith.mulf %92, %91 : vector<8x8xf32>
      %94 = arith.addf %88, %93 : vector<8x8xf32>
      %95 = vector.extract_strided_slice %21 {offsets = [0, 11], sizes = [8, 1], strides = [1, 1]} : vector<8x32xf32> to vector<8x1xf32>
      %c11 = arith.constant 11 : index
      %c0_39 = arith.constant 0 : index
      %c0_40 = arith.constant 0 : index
      %96 = vector.load %arg8[%c11, %c0_39, %c0_40] : memref<32x8x8xf32, #tpu.memory_space<vmem>>, vector<1x8x8xf32>
      %97 = vector.shape_cast %96 : vector<1x8x8xf32> to vector<8x8xf32>
      %98 = vector.broadcast %95 : vector<8x1xf32> to vector<8x8xf32>
      %99 = arith.mulf %98, %97 : vector<8x8xf32>
      %100 = arith.addf %94, %99 : vector<8x8xf32>
      %101 = vector.extract_strided_slice %21 {offsets = [0, 12], sizes = [8, 1], strides = [1, 1]} : vector<8x32xf32> to vector<8x1xf32>
      %c12 = arith.constant 12 : index
      %c0_41 = arith.constant 0 : index
      %c0_42 = arith.constant 0 : index
      %102 = vector.load %arg8[%c12, %c0_41, %c0_42] : memref<32x8x8xf32, #tpu.memory_space<vmem>>, vector<1x8x8xf32>
      %103 = vector.shape_cast %102 : vector<1x8x8xf32> to vector<8x8xf32>
      %104 = vector.broadcast %101 : vector<8x1xf32> to vector<8x8xf32>
      %105 = arith.mulf %104, %103 : vector<8x8xf32>
      %106 = arith.addf %100, %105 : vector<8x8xf32>
      %107 = vector.extract_strided_slice %21 {offsets = [0, 13], sizes = [8, 1], strides = [1, 1]} : vector<8x32xf32> to vector<8x1xf32>
      %c13 = arith.constant 13 : index
      %c0_43 = arith.constant 0 : index
      %c0_44 = arith.constant 0 : index
      %108 = vector.load %arg8[%c13, %c0_43, %c0_44] : memref<32x8x8xf32, #tpu.memory_space<vmem>>, vector<1x8x8xf32>
      %109 = vector.shape_cast %108 : vector<1x8x8xf32> to vector<8x8xf32>
      %110 = vector.broadcast %107 : vector<8x1xf32> to vector<8x8xf32>
      %111 = arith.mulf %110, %109 : vector<8x8xf32>
      %112 = arith.addf %106, %111 : vector<8x8xf32>
      %113 = vector.extract_strided_slice %21 {offsets = [0, 14], sizes = [8, 1], strides = [1, 1]} : vector<8x32xf32> to vector<8x1xf32>
      %c14 = arith.constant 14 : index
      %c0_45 = arith.constant 0 : index
      %c0_46 = arith.constant 0 : index
      %114 = vector.load %arg8[%c14, %c0_45, %c0_46] : memref<32x8x8xf32, #tpu.memory_space<vmem>>, vector<1x8x8xf32>
      %115 = vector.shape_cast %114 : vector<1x8x8xf32> to vector<8x8xf32>
      %116 = vector.broadcast %113 : vector<8x1xf32> to vector<8x8xf32>
      %117 = arith.mulf %116, %115 : vector<8x8xf32>
      %118 = arith.addf %112, %117 : vector<8x8xf32>
      %119 = vector.extract_strided_slice %21 {offsets = [0, 15], sizes = [8, 1], strides = [1, 1]} : vector<8x32xf32> to vector<8x1xf32>
      %c15 = arith.constant 15 : index
      %c0_47 = arith.constant 0 : index
      %c0_48 = arith.constant 0 : index
      %120 = vector.load %arg8[%c15, %c0_47, %c0_48] : memref<32x8x8xf32, #tpu.memory_space<vmem>>, vector<1x8x8xf32>
      %121 = vector.shape_cast %120 : vector<1x8x8xf32> to vector<8x8xf32>
      %122 = vector.broadcast %119 : vector<8x1xf32> to vector<8x8xf32>
      %123 = arith.mulf %122, %121 : vector<8x8xf32>
      %124 = arith.addf %118, %123 : vector<8x8xf32>
      %125 = vector.extract_strided_slice %21 {offsets = [0, 16], sizes = [8, 1], strides = [1, 1]} : vector<8x32xf32> to vector<8x1xf32>
      %c16 = arith.constant 16 : index
      %c0_49 = arith.constant 0 : index
      %c0_50 = arith.constant 0 : index
      %126 = vector.load %arg8[%c16, %c0_49, %c0_50] : memref<32x8x8xf32, #tpu.memory_space<vmem>>, vector<1x8x8xf32>
      %127 = vector.shape_cast %126 : vector<1x8x8xf32> to vector<8x8xf32>
      %128 = vector.broadcast %125 : vector<8x1xf32> to vector<8x8xf32>
      %129 = arith.mulf %128, %127 : vector<8x8xf32>
      %130 = arith.addf %124, %129 : vector<8x8xf32>
      %131 = vector.extract_strided_slice %21 {offsets = [0, 17], sizes = [8, 1], strides = [1, 1]} : vector<8x32xf32> to vector<8x1xf32>
      %c17 = arith.constant 17 : index
      %c0_51 = arith.constant 0 : index
      %c0_52 = arith.constant 0 : index
      %132 = vector.load %arg8[%c17, %c0_51, %c0_52] : memref<32x8x8xf32, #tpu.memory_space<vmem>>, vector<1x8x8xf32>
      %133 = vector.shape_cast %132 : vector<1x8x8xf32> to vector<8x8xf32>
      %134 = vector.broadcast %131 : vector<8x1xf32> to vector<8x8xf32>
      %135 = arith.mulf %134, %133 : vector<8x8xf32>
      %136 = arith.addf %130, %135 : vector<8x8xf32>
      %137 = vector.extract_strided_slice %21 {offsets = [0, 18], sizes = [8, 1], strides = [1, 1]} : vector<8x32xf32> to vector<8x1xf32>
      %c18 = arith.constant 18 : index
      %c0_53 = arith.constant 0 : index
      %c0_54 = arith.constant 0 : index
      %138 = vector.load %arg8[%c18, %c0_53, %c0_54] : memref<32x8x8xf32, #tpu.memory_space<vmem>>, vector<1x8x8xf32>
      %139 = vector.shape_cast %138 : vector<1x8x8xf32> to vector<8x8xf32>
      %140 = vector.broadcast %137 : vector<8x1xf32> to vector<8x8xf32>
      %141 = arith.mulf %140, %139 : vector<8x8xf32>
      %142 = arith.addf %136, %141 : vector<8x8xf32>
      %143 = vector.extract_strided_slice %21 {offsets = [0, 19], sizes = [8, 1], strides = [1, 1]} : vector<8x32xf32> to vector<8x1xf32>
      %c19 = arith.constant 19 : index
      %c0_55 = arith.constant 0 : index
      %c0_56 = arith.constant 0 : index
      %144 = vector.load %arg8[%c19, %c0_55, %c0_56] : memref<32x8x8xf32, #tpu.memory_space<vmem>>, vector<1x8x8xf32>
      %145 = vector.shape_cast %144 : vector<1x8x8xf32> to vector<8x8xf32>
      %146 = vector.broadcast %143 : vector<8x1xf32> to vector<8x8xf32>
      %147 = arith.mulf %146, %145 : vector<8x8xf32>
      %148 = arith.addf %142, %147 : vector<8x8xf32>
      %149 = vector.extract_strided_slice %21 {offsets = [0, 20], sizes = [8, 1], strides = [1, 1]} : vector<8x32xf32> to vector<8x1xf32>
      %c20 = arith.constant 20 : index
      %c0_57 = arith.constant 0 : index
      %c0_58 = arith.constant 0 : index
      %150 = vector.load %arg8[%c20, %c0_57, %c0_58] : memref<32x8x8xf32, #tpu.memory_space<vmem>>, vector<1x8x8xf32>
      %151 = vector.shape_cast %150 : vector<1x8x8xf32> to vector<8x8xf32>
      %152 = vector.broadcast %149 : vector<8x1xf32> to vector<8x8xf32>
      %153 = arith.mulf %152, %151 : vector<8x8xf32>
      %154 = arith.addf %148, %153 : vector<8x8xf32>
      %155 = vector.extract_strided_slice %21 {offsets = [0, 21], sizes = [8, 1], strides = [1, 1]} : vector<8x32xf32> to vector<8x1xf32>
      %c21 = arith.constant 21 : index
      %c0_59 = arith.constant 0 : index
      %c0_60 = arith.constant 0 : index
      %156 = vector.load %arg8[%c21, %c0_59, %c0_60] : memref<32x8x8xf32, #tpu.memory_space<vmem>>, vector<1x8x8xf32>
      %157 = vector.shape_cast %156 : vector<1x8x8xf32> to vector<8x8xf32>
      %158 = vector.broadcast %155 : vector<8x1xf32> to vector<8x8xf32>
      %159 = arith.mulf %158, %157 : vector<8x8xf32>
      %160 = arith.addf %154, %159 : vector<8x8xf32>
      %161 = vector.extract_strided_slice %21 {offsets = [0, 22], sizes = [8, 1], strides = [1, 1]} : vector<8x32xf32> to vector<8x1xf32>
      %c22 = arith.constant 22 : index
      %c0_61 = arith.constant 0 : index
      %c0_62 = arith.constant 0 : index
      %162 = vector.load %arg8[%c22, %c0_61, %c0_62] : memref<32x8x8xf32, #tpu.memory_space<vmem>>, vector<1x8x8xf32>
      %163 = vector.shape_cast %162 : vector<1x8x8xf32> to vector<8x8xf32>
      %164 = vector.broadcast %161 : vector<8x1xf32> to vector<8x8xf32>
      %165 = arith.mulf %164, %163 : vector<8x8xf32>
      %166 = arith.addf %160, %165 : vector<8x8xf32>
      %167 = vector.extract_strided_slice %21 {offsets = [0, 23], sizes = [8, 1], strides = [1, 1]} : vector<8x32xf32> to vector<8x1xf32>
      %c23 = arith.constant 23 : index
      %c0_63 = arith.constant 0 : index
      %c0_64 = arith.constant 0 : index
      %168 = vector.load %arg8[%c23, %c0_63, %c0_64] : memref<32x8x8xf32, #tpu.memory_space<vmem>>, vector<1x8x8xf32>
      %169 = vector.shape_cast %168 : vector<1x8x8xf32> to vector<8x8xf32>
      %170 = vector.broadcast %167 : vector<8x1xf32> to vector<8x8xf32>
      %171 = arith.mulf %170, %169 : vector<8x8xf32>
      %172 = arith.addf %166, %171 : vector<8x8xf32>
      %173 = vector.extract_strided_slice %21 {offsets = [0, 24], sizes = [8, 1], strides = [1, 1]} : vector<8x32xf32> to vector<8x1xf32>
      %c24 = arith.constant 24 : index
      %c0_65 = arith.constant 0 : index
      %c0_66 = arith.constant 0 : index
      %174 = vector.load %arg8[%c24, %c0_65, %c0_66] : memref<32x8x8xf32, #tpu.memory_space<vmem>>, vector<1x8x8xf32>
      %175 = vector.shape_cast %174 : vector<1x8x8xf32> to vector<8x8xf32>
      %176 = vector.broadcast %173 : vector<8x1xf32> to vector<8x8xf32>
      %177 = arith.mulf %176, %175 : vector<8x8xf32>
      %178 = arith.addf %172, %177 : vector<8x8xf32>
      %179 = vector.extract_strided_slice %21 {offsets = [0, 25], sizes = [8, 1], strides = [1, 1]} : vector<8x32xf32> to vector<8x1xf32>
      %c25 = arith.constant 25 : index
      %c0_67 = arith.constant 0 : index
      %c0_68 = arith.constant 0 : index
      %180 = vector.load %arg8[%c25, %c0_67, %c0_68] : memref<32x8x8xf32, #tpu.memory_space<vmem>>, vector<1x8x8xf32>
      %181 = vector.shape_cast %180 : vector<1x8x8xf32> to vector<8x8xf32>
      %182 = vector.broadcast %179 : vector<8x1xf32> to vector<8x8xf32>
      %183 = arith.mulf %182, %181 : vector<8x8xf32>
      %184 = arith.addf %178, %183 : vector<8x8xf32>
      %185 = vector.extract_strided_slice %21 {offsets = [0, 26], sizes = [8, 1], strides = [1, 1]} : vector<8x32xf32> to vector<8x1xf32>
      %c26 = arith.constant 26 : index
      %c0_69 = arith.constant 0 : index
      %c0_70 = arith.constant 0 : index
      %186 = vector.load %arg8[%c26, %c0_69, %c0_70] : memref<32x8x8xf32, #tpu.memory_space<vmem>>, vector<1x8x8xf32>
      %187 = vector.shape_cast %186 : vector<1x8x8xf32> to vector<8x8xf32>
      %188 = vector.broadcast %185 : vector<8x1xf32> to vector<8x8xf32>
      %189 = arith.mulf %188, %187 : vector<8x8xf32>
      %190 = arith.addf %184, %189 : vector<8x8xf32>
      %191 = vector.extract_strided_slice %21 {offsets = [0, 27], sizes = [8, 1], strides = [1, 1]} : vector<8x32xf32> to vector<8x1xf32>
      %c27 = arith.constant 27 : index
      %c0_71 = arith.constant 0 : index
      %c0_72 = arith.constant 0 : index
      %192 = vector.load %arg8[%c27, %c0_71, %c0_72] : memref<32x8x8xf32, #tpu.memory_space<vmem>>, vector<1x8x8xf32>
      %193 = vector.shape_cast %192 : vector<1x8x8xf32> to vector<8x8xf32>
      %194 = vector.broadcast %191 : vector<8x1xf32> to vector<8x8xf32>
      %195 = arith.mulf %194, %193 : vector<8x8xf32>
      %196 = arith.addf %190, %195 : vector<8x8xf32>
      %197 = vector.extract_strided_slice %21 {offsets = [0, 28], sizes = [8, 1], strides = [1, 1]} : vector<8x32xf32> to vector<8x1xf32>
      %c28 = arith.constant 28 : index
      %c0_73 = arith.constant 0 : index
      %c0_74 = arith.constant 0 : index
      %198 = vector.load %arg8[%c28, %c0_73, %c0_74] : memref<32x8x8xf32, #tpu.memory_space<vmem>>, vector<1x8x8xf32>
      %199 = vector.shape_cast %198 : vector<1x8x8xf32> to vector<8x8xf32>
      %200 = vector.broadcast %197 : vector<8x1xf32> to vector<8x8xf32>
      %201 = arith.mulf %200, %199 : vector<8x8xf32>
      %202 = arith.addf %196, %201 : vector<8x8xf32>
      %203 = vector.extract_strided_slice %21 {offsets = [0, 29], sizes = [8, 1], strides = [1, 1]} : vector<8x32xf32> to vector<8x1xf32>
      %c29 = arith.constant 29 : index
      %c0_75 = arith.constant 0 : index
      %c0_76 = arith.constant 0 : index
      %204 = vector.load %arg8[%c29, %c0_75, %c0_76] : memref<32x8x8xf32, #tpu.memory_space<vmem>>, vector<1x8x8xf32>
      %205 = vector.shape_cast %204 : vector<1x8x8xf32> to vector<8x8xf32>
      %206 = vector.broadcast %203 : vector<8x1xf32> to vector<8x8xf32>
      %207 = arith.mulf %206, %205 : vector<8x8xf32>
      %208 = arith.addf %202, %207 : vector<8x8xf32>
      %209 = vector.extract_strided_slice %21 {offsets = [0, 30], sizes = [8, 1], strides = [1, 1]} : vector<8x32xf32> to vector<8x1xf32>
      %c30 = arith.constant 30 : index
      %c0_77 = arith.constant 0 : index
      %c0_78 = arith.constant 0 : index
      %210 = vector.load %arg8[%c30, %c0_77, %c0_78] : memref<32x8x8xf32, #tpu.memory_space<vmem>>, vector<1x8x8xf32>
      %211 = vector.shape_cast %210 : vector<1x8x8xf32> to vector<8x8xf32>
      %212 = vector.broadcast %209 : vector<8x1xf32> to vector<8x8xf32>
      %213 = arith.mulf %212, %211 : vector<8x8xf32>
      %214 = arith.addf %208, %213 : vector<8x8xf32>
      %215 = vector.extract_strided_slice %21 {offsets = [0, 31], sizes = [8, 1], strides = [1, 1]} : vector<8x32xf32> to vector<8x1xf32>
      %c31 = arith.constant 31 : index
      %c0_79 = arith.constant 0 : index
      %c0_80 = arith.constant 0 : index
      %216 = vector.load %arg8[%c31, %c0_79, %c0_80] : memref<32x8x8xf32, #tpu.memory_space<vmem>>, vector<1x8x8xf32>
      %217 = vector.shape_cast %216 : vector<1x8x8xf32> to vector<8x8xf32>
      %218 = vector.broadcast %215 : vector<8x1xf32> to vector<8x8xf32>
      %219 = arith.mulf %218, %217 : vector<8x8xf32>
      %220 = arith.addf %214, %219 : vector<8x8xf32>
      %cst_81 = arith.constant 0.176776692 : f32
      %221 = vector.broadcast %cst_81 : f32 to vector<8x8xf32>
      %222 = arith.mulf %220, %221 : vector<8x8xf32>
      %223 = vector.broadcast %19 : i32 to vector<8x8xi32>
      %224 = arith.cmpi slt, %14, %223 : vector<8x8xi32>
      %cst_82 = arith.constant -1.000000e+06 : f32
      %225 = vector.broadcast %cst_82 : f32 to vector<8x8xf32>
      %226 = arith.select %224, %222, %225 : vector<8x8xi1>, vector<8x8xf32>
      %c0_83 = arith.constant 0 : index
      %c0_84 = arith.constant 0 : index
      %c0_85 = arith.constant 0 : index
      %227 = vector.load %arg11[%c0_83, %c0_84, %c0_85] : memref<2x8x1xf32, #tpu.memory_space<vmem>>, vector<1x8x1xf32>
      %228 = vector.shape_cast %227 : vector<1x8x1xf32> to vector<8x1xf32>
      %cst_86 = arith.constant dense<0xFF800000> : vector<8xf32>
      %229 = vector.multi_reduction <maximumf>, %226, %cst_86 [1] : vector<8x8xf32> to vector<8xf32>
      %230 = vector.shape_cast %229 : vector<8xf32> to vector<8x1xf32>
      %231 = arith.maximumf %228, %230 : vector<8x1xf32>
      %232 = arith.subf %228, %231 : vector<8x1xf32>
      %233 = math.exp %232 : vector<8x1xf32>
      %234 = vector.broadcast %231 : vector<8x1xf32> to vector<8x8xf32>
      %235 = arith.subf %226, %234 : vector<8x8xf32>
      %236 = math.exp %235 : vector<8x8xf32>
      %c0_87 = arith.constant 0 : index
      %c0_88 = arith.constant 0 : index
      %c0_89 = arith.constant 0 : index
      %237 = vector.load %arg12[%c0_87, %c0_88, %c0_89] : memref<2x8x1xf32, #tpu.memory_space<vmem>>, vector<1x8x1xf32>
      %238 = vector.shape_cast %237 : vector<1x8x1xf32> to vector<8x1xf32>
      %239 = arith.mulf %233, %238 : vector<8x1xf32>
      %cst_90 = arith.constant dense<0.000000e+00> : vector<8xf32>
      %240 = vector.multi_reduction <add>, %236, %cst_90 [1] : vector<8x8xf32> to vector<8xf32>
      %241 = vector.shape_cast %240 : vector<8xf32> to vector<8x1xf32>
      %242 = arith.addf %239, %241 : vector<8x1xf32>
      %c0_91 = arith.constant 0 : index
      %c0_92 = arith.constant 0 : index
      %c0_93 = arith.constant 0 : index
      %243 = vector.load %arg12[%c0_91, %c0_92, %c0_93] : memref<2x8x1xf32, #tpu.memory_space<vmem>>, vector<1x8x1xf32>
      %244 = vector.shape_cast %243 : vector<1x8x1xf32> to vector<8x1xf32>
      %245 = vector.shape_cast %242 : vector<8x1xf32> to vector<1x8x1xf32>
      tpu.vector_store %arg12[%c0_91, %c0_92, %c0_93], %245 {strides = array<i32>} : memref<2x8x1xf32, #tpu.memory_space<vmem>>, vector<1x8x1xf32>,
      %c0_94 = arith.constant 0 : index
      %c0_95 = arith.constant 0 : index
      %c0_96 = arith.constant 0 : index
      %246 = vector.load %arg13[%c0_94, %c0_95, %c0_96] : memref<2x8x32xf32, #tpu.memory_space<vmem>>, vector<1x8x32xf32>
      %247 = vector.shape_cast %246 : vector<1x8x32xf32> to vector<8x32xf32>
      %248 = vector.broadcast %233 : vector<8x1xf32> to vector<8x32xf32>
      %249 = arith.mulf %248, %247 : vector<8x32xf32>
      %cst_97 = arith.constant dense<0.000000e+00> : vector<8x32xf32>
      %250 = tpu.matmul %236, %23, %cst_97 {dimension_numbers = #tpu.dot_dimension_numbers<[1], [0], [0], [1], [0, 0, 1, 1], [], []>} : vector<8x8xf32>, vector<8x32xf32>, vector<8x32xf32> -> vector<8x32xf32>
      %251 = arith.addf %249, %250 : vector<8x32xf32>
      %c0_98 = arith.constant 0 : index
      %c0_99 = arith.constant 0 : index
      %c0_100 = arith.constant 0 : index
      %252 = vector.load %arg9[%c0_98, %c0_99, %c0_100] : memref<32x8x8xf32, #tpu.memory_space<vmem>>, vector<1x8x8xf32>
      %253 = vector.shape_cast %252 : vector<1x8x8xf32> to vector<8x8xf32>
      %254 = arith.mulf %236, %253 : vector<8x8xf32>
      %cst_101 = arith.constant dense<0.000000e+00> : vector<8xf32>
      %255 = vector.multi_reduction <add>, %254, %cst_101 [1] : vector<8x8xf32> to vector<8xf32>
      %256 = vector.shape_cast %255 : vector<8xf32> to vector<8x1xf32>
      %c0_i32_102 = arith.constant 0 : i32
      %257 = vector.broadcast %c0_i32_102 : i32 to vector<8x32xi32>
      %258 = arith.cmpi eq, %15, %257 : vector<8x32xi32>
      %cst_103 = arith.constant 0.000000e+00 : f32
      %259 = vector.shape_cast %256 : vector<8x1xf32> to vector<8x1xf32>
      %260 = vector.broadcast %259 : vector<8x1xf32> to vector<8x32xf32>
      %261 = vector.broadcast %cst_103 : f32 to vector<8x32xf32>
      %262 = arith.select %258, %260, %261 : vector<8x32xi1>, vector<8x32xf32>
      %263 = arith.addf %251, %262 : vector<8x32xf32>
      %c1_104 = arith.constant 1 : index
      %c0_105 = arith.constant 0 : index
      %c0_106 = arith.constant 0 : index
      %264 = vector.load %arg9[%c1_104, %c0_105, %c0_106] : memref<32x8x8xf32, #tpu.memory_space<vmem>>, vector<1x8x8xf32>
      %265 = vector.shape_cast %264 : vector<1x8x8xf32> to vector<8x8xf32>
      %266 = arith.mulf %236, %265 : vector<8x8xf32>
      %cst_107 = arith.constant dense<0.000000e+00> : vector<8xf32>
      %267 = vector.multi_reduction <add>, %266, %cst_107 [1] : vector<8x8xf32> to vector<8xf32>
      %268 = vector.shape_cast %267 : vector<8xf32> to vector<8x1xf32>
      %c1_i32 = arith.constant 1 : i32
      %269 = vector.broadcast %c1_i32 : i32 to vector<8x32xi32>
      %270 = arith.cmpi eq, %15, %269 : vector<8x32xi32>
      %cst_108 = arith.constant 0.000000e+00 : f32
      %271 = vector.shape_cast %268 : vector<8x1xf32> to vector<8x1xf32>
      %272 = vector.broadcast %271 : vector<8x1xf32> to vector<8x32xf32>
      %273 = vector.broadcast %cst_108 : f32 to vector<8x32xf32>
      %274 = arith.select %270, %272, %273 : vector<8x32xi1>, vector<8x32xf32>
      %275 = arith.addf %263, %274 : vector<8x32xf32>
      %c2_109 = arith.constant 2 : index
      %c0_110 = arith.constant 0 : index
      %c0_111 = arith.constant 0 : index
      %276 = vector.load %arg9[%c2_109, %c0_110, %c0_111] : memref<32x8x8xf32, #tpu.memory_space<vmem>>, vector<1x8x8xf32>
      %277 = vector.shape_cast %276 : vector<1x8x8xf32> to vector<8x8xf32>
      %278 = arith.mulf %236, %277 : vector<8x8xf32>
      %cst_112 = arith.constant dense<0.000000e+00> : vector<8xf32>
      %279 = vector.multi_reduction <add>, %278, %cst_112 [1] : vector<8x8xf32> to vector<8xf32>
      %280 = vector.shape_cast %279 : vector<8xf32> to vector<8x1xf32>
      %c2_i32_113 = arith.constant 2 : i32
      %281 = vector.broadcast %c2_i32_113 : i32 to vector<8x32xi32>
      %282 = arith.cmpi eq, %15, %281 : vector<8x32xi32>
      %cst_114 = arith.constant 0.000000e+00 : f32
      %283 = vector.shape_cast %280 : vector<8x1xf32> to vector<8x1xf32>
      %284 = vector.broadcast %283 : vector<8x1xf32> to vector<8x32xf32>
      %285 = vector.broadcast %cst_114 : f32 to vector<8x32xf32>
      %286 = arith.select %282, %284, %285 : vector<8x32xi1>, vector<8x32xf32>
      %287 = arith.addf %275, %286 : vector<8x32xf32>
      %c3_115 = arith.constant 3 : index
      %c0_116 = arith.constant 0 : index
      %c0_117 = arith.constant 0 : index
      %288 = vector.load %arg9[%c3_115, %c0_116, %c0_117] : memref<32x8x8xf32, #tpu.memory_space<vmem>>, vector<1x8x8xf32>
      %289 = vector.shape_cast %288 : vector<1x8x8xf32> to vector<8x8xf32>
      %290 = arith.mulf %236, %289 : vector<8x8xf32>
      %cst_118 = arith.constant dense<0.000000e+00> : vector<8xf32>
      %291 = vector.multi_reduction <add>, %290, %cst_118 [1] : vector<8x8xf32> to vector<8xf32>
      %292 = vector.shape_cast %291 : vector<8xf32> to vector<8x1xf32>
      %c3_i32 = arith.constant 3 : i32
      %293 = vector.broadcast %c3_i32 : i32 to vector<8x32xi32>
      %294 = arith.cmpi eq, %15, %293 : vector<8x32xi32>
      %cst_119 = arith.constant 0.000000e+00 : f32
      %295 = vector.shape_cast %292 : vector<8x1xf32> to vector<8x1xf32>
      %296 = vector.broadcast %295 : vector<8x1xf32> to vector<8x32xf32>
      %297 = vector.broadcast %cst_119 : f32 to vector<8x32xf32>
      %298 = arith.select %294, %296, %297 : vector<8x32xi1>, vector<8x32xf32>
      %299 = arith.addf %287, %298 : vector<8x32xf32>
      %c4_120 = arith.constant 4 : index
      %c0_121 = arith.constant 0 : index
      %c0_122 = arith.constant 0 : index
      %300 = vector.load %arg9[%c4_120, %c0_121, %c0_122] : memref<32x8x8xf32, #tpu.memory_space<vmem>>, vector<1x8x8xf32>
      %301 = vector.shape_cast %300 : vector<1x8x8xf32> to vector<8x8xf32>
      %302 = arith.mulf %236, %301 : vector<8x8xf32>
      %cst_123 = arith.constant dense<0.000000e+00> : vector<8xf32>
      %303 = vector.multi_reduction <add>, %302, %cst_123 [1] : vector<8x8xf32> to vector<8xf32>
      %304 = vector.shape_cast %303 : vector<8xf32> to vector<8x1xf32>
      %c4_i32 = arith.constant 4 : i32
      %305 = vector.broadcast %c4_i32 : i32 to vector<8x32xi32>
      %306 = arith.cmpi eq, %15, %305 : vector<8x32xi32>
      %cst_124 = arith.constant 0.000000e+00 : f32
      %307 = vector.shape_cast %304 : vector<8x1xf32> to vector<8x1xf32>
      %308 = vector.broadcast %307 : vector<8x1xf32> to vector<8x32xf32>
      %309 = vector.broadcast %cst_124 : f32 to vector<8x32xf32>
      %310 = arith.select %306, %308, %309 : vector<8x32xi1>, vector<8x32xf32>
      %311 = arith.addf %299, %310 : vector<8x32xf32>
      %c5_125 = arith.constant 5 : index
      %c0_126 = arith.constant 0 : index
      %c0_127 = arith.constant 0 : index
      %312 = vector.load %arg9[%c5_125, %c0_126, %c0_127] : memref<32x8x8xf32, #tpu.memory_space<vmem>>, vector<1x8x8xf32>
      %313 = vector.shape_cast %312 : vector<1x8x8xf32> to vector<8x8xf32>
      %314 = arith.mulf %236, %313 : vector<8x8xf32>
      %cst_128 = arith.constant dense<0.000000e+00> : vector<8xf32>
      %315 = vector.multi_reduction <add>, %314, %cst_128 [1] : vector<8x8xf32> to vector<8xf32>
      %316 = vector.shape_cast %315 : vector<8xf32> to vector<8x1xf32>
      %c5_i32 = arith.constant 5 : i32
      %317 = vector.broadcast %c5_i32 : i32 to vector<8x32xi32>
      %318 = arith.cmpi eq, %15, %317 : vector<8x32xi32>
      %cst_129 = arith.constant 0.000000e+00 : f32
      %319 = vector.shape_cast %316 : vector<8x1xf32> to vector<8x1xf32>
      %320 = vector.broadcast %319 : vector<8x1xf32> to vector<8x32xf32>
      %321 = vector.broadcast %cst_129 : f32 to vector<8x32xf32>
      %322 = arith.select %318, %320, %321 : vector<8x32xi1>, vector<8x32xf32>
      %323 = arith.addf %311, %322 : vector<8x32xf32>
      %c6_130 = arith.constant 6 : index
      %c0_131 = arith.constant 0 : index
      %c0_132 = arith.constant 0 : index
      %324 = vector.load %arg9[%c6_130, %c0_131, %c0_132] : memref<32x8x8xf32, #tpu.memory_space<vmem>>, vector<1x8x8xf32>
      %325 = vector.shape_cast %324 : vector<1x8x8xf32> to vector<8x8xf32>
      %326 = arith.mulf %236, %325 : vector<8x8xf32>
      %cst_133 = arith.constant dense<0.000000e+00> : vector<8xf32>
      %327 = vector.multi_reduction <add>, %326, %cst_133 [1] : vector<8x8xf32> to vector<8xf32>
      %328 = vector.shape_cast %327 : vector<8xf32> to vector<8x1xf32>
      %c6_i32 = arith.constant 6 : i32
      %329 = vector.broadcast %c6_i32 : i32 to vector<8x32xi32>
      %330 = arith.cmpi eq, %15, %329 : vector<8x32xi32>
      %cst_134 = arith.constant 0.000000e+00 : f32
      %331 = vector.shape_cast %328 : vector<8x1xf32> to vector<8x1xf32>
      %332 = vector.broadcast %331 : vector<8x1xf32> to vector<8x32xf32>
      %333 = vector.broadcast %cst_134 : f32 to vector<8x32xf32>
      %334 = arith.select %330, %332, %333 : vector<8x32xi1>, vector<8x32xf32>
      %335 = arith.addf %323, %334 : vector<8x32xf32>
      %c7_135 = arith.constant 7 : index
      %c0_136 = arith.constant 0 : index
      %c0_137 = arith.constant 0 : index
      %336 = vector.load %arg9[%c7_135, %c0_136, %c0_137] : memref<32x8x8xf32, #tpu.memory_space<vmem>>, vector<1x8x8xf32>
      %337 = vector.shape_cast %336 : vector<1x8x8xf32> to vector<8x8xf32>
      %338 = arith.mulf %236, %337 : vector<8x8xf32>
      %cst_138 = arith.constant dense<0.000000e+00> : vector<8xf32>
      %339 = vector.multi_reduction <add>, %338, %cst_138 [1] : vector<8x8xf32> to vector<8xf32>
      %340 = vector.shape_cast %339 : vector<8xf32> to vector<8x1xf32>
      %c7_i32 = arith.constant 7 : i32
      %341 = vector.broadcast %c7_i32 : i32 to vector<8x32xi32>
      %342 = arith.cmpi eq, %15, %341 : vector<8x32xi32>
      %cst_139 = arith.constant 0.000000e+00 : f32
      %343 = vector.shape_cast %340 : vector<8x1xf32> to vector<8x1xf32>
      %344 = vector.broadcast %343 : vector<8x1xf32> to vector<8x32xf32>
      %345 = vector.broadcast %cst_139 : f32 to vector<8x32xf32>
      %346 = arith.select %342, %344, %345 : vector<8x32xi1>, vector<8x32xf32>
      %347 = arith.addf %335, %346 : vector<8x32xf32>
      %c8_140 = arith.constant 8 : index
      %c0_141 = arith.constant 0 : index
      %c0_142 = arith.constant 0 : index
      %348 = vector.load %arg9[%c8_140, %c0_141, %c0_142] : memref<32x8x8xf32, #tpu.memory_space<vmem>>, vector<1x8x8xf32>
      %349 = vector.shape_cast %348 : vector<1x8x8xf32> to vector<8x8xf32>
      %350 = arith.mulf %236, %349 : vector<8x8xf32>
      %cst_143 = arith.constant dense<0.000000e+00> : vector<8xf32>
      %351 = vector.multi_reduction <add>, %350, %cst_143 [1] : vector<8x8xf32> to vector<8xf32>
      %352 = vector.shape_cast %351 : vector<8xf32> to vector<8x1xf32>
      %c8_i32_144 = arith.constant 8 : i32
      %353 = vector.broadcast %c8_i32_144 : i32 to vector<8x32xi32>
      %354 = arith.cmpi eq, %15, %353 : vector<8x32xi32>
      %cst_145 = arith.constant 0.000000e+00 : f32
      %355 = vector.shape_cast %352 : vector<8x1xf32> to vector<8x1xf32>
      %356 = vector.broadcast %355 : vector<8x1xf32> to vector<8x32xf32>
      %357 = vector.broadcast %cst_145 : f32 to vector<8x32xf32>
      %358 = arith.select %354, %356, %357 : vector<8x32xi1>, vector<8x32xf32>
      %359 = arith.addf %347, %358 : vector<8x32xf32>
      %c9_146 = arith.constant 9 : index
      %c0_147 = arith.constant 0 : index
      %c0_148 = arith.constant 0 : index
      %360 = vector.load %arg9[%c9_146, %c0_147, %c0_148] : memref<32x8x8xf32, #tpu.memory_space<vmem>>, vector<1x8x8xf32>
      %361 = vector.shape_cast %360 : vector<1x8x8xf32> to vector<8x8xf32>
      %362 = arith.mulf %236, %361 : vector<8x8xf32>
      %cst_149 = arith.constant dense<0.000000e+00> : vector<8xf32>
      %363 = vector.multi_reduction <add>, %362, %cst_149 [1] : vector<8x8xf32> to vector<8xf32>
      %364 = vector.shape_cast %363 : vector<8xf32> to vector<8x1xf32>
      %c9_i32 = arith.constant 9 : i32
      %365 = vector.broadcast %c9_i32 : i32 to vector<8x32xi32>
      %366 = arith.cmpi eq, %15, %365 : vector<8x32xi32>
      %cst_150 = arith.constant 0.000000e+00 : f32
      %367 = vector.shape_cast %364 : vector<8x1xf32> to vector<8x1xf32>
      %368 = vector.broadcast %367 : vector<8x1xf32> to vector<8x32xf32>
      %369 = vector.broadcast %cst_150 : f32 to vector<8x32xf32>
      %370 = arith.select %366, %368, %369 : vector<8x32xi1>, vector<8x32xf32>
      %371 = arith.addf %359, %370 : vector<8x32xf32>
      %c10_151 = arith.constant 10 : index
      %c0_152 = arith.constant 0 : index
      %c0_153 = arith.constant 0 : index
      %372 = vector.load %arg9[%c10_151, %c0_152, %c0_153] : memref<32x8x8xf32, #tpu.memory_space<vmem>>, vector<1x8x8xf32>
      %373 = vector.shape_cast %372 : vector<1x8x8xf32> to vector<8x8xf32>
      %374 = arith.mulf %236, %373 : vector<8x8xf32>
      %cst_154 = arith.constant dense<0.000000e+00> : vector<8xf32>
      %375 = vector.multi_reduction <add>, %374, %cst_154 [1] : vector<8x8xf32> to vector<8xf32>
      %376 = vector.shape_cast %375 : vector<8xf32> to vector<8x1xf32>
      %c10_i32 = arith.constant 10 : i32
      %377 = vector.broadcast %c10_i32 : i32 to vector<8x32xi32>
      %378 = arith.cmpi eq, %15, %377 : vector<8x32xi32>
      %cst_155 = arith.constant 0.000000e+00 : f32
      %379 = vector.shape_cast %376 : vector<8x1xf32> to vector<8x1xf32>
      %380 = vector.broadcast %379 : vector<8x1xf32> to vector<8x32xf32>
      %381 = vector.broadcast %cst_155 : f32 to vector<8x32xf32>
      %382 = arith.select %378, %380, %381 : vector<8x32xi1>, vector<8x32xf32>
      %383 = arith.addf %371, %382 : vector<8x32xf32>
      %c11_156 = arith.constant 11 : index
      %c0_157 = arith.constant 0 : index
      %c0_158 = arith.constant 0 : index
      %384 = vector.load %arg9[%c11_156, %c0_157, %c0_158] : memref<32x8x8xf32, #tpu.memory_space<vmem>>, vector<1x8x8xf32>
      %385 = vector.shape_cast %384 : vector<1x8x8xf32> to vector<8x8xf32>
      %386 = arith.mulf %236, %385 : vector<8x8xf32>
      %cst_159 = arith.constant dense<0.000000e+00> : vector<8xf32>
      %387 = vector.multi_reduction <add>, %386, %cst_159 [1] : vector<8x8xf32> to vector<8xf32>
      %388 = vector.shape_cast %387 : vector<8xf32> to vector<8x1xf32>
      %c11_i32 = arith.constant 11 : i32
      %389 = vector.broadcast %c11_i32 : i32 to vector<8x32xi32>
      %390 = arith.cmpi eq, %15, %389 : vector<8x32xi32>
      %cst_160 = arith.constant 0.000000e+00 : f32
      %391 = vector.shape_cast %388 : vector<8x1xf32> to vector<8x1xf32>
      %392 = vector.broadcast %391 : vector<8x1xf32> to vector<8x32xf32>
      %393 = vector.broadcast %cst_160 : f32 to vector<8x32xf32>
      %394 = arith.select %390, %392, %393 : vector<8x32xi1>, vector<8x32xf32>
      %395 = arith.addf %383, %394 : vector<8x32xf32>
      %c12_161 = arith.constant 12 : index
      %c0_162 = arith.constant 0 : index
      %c0_163 = arith.constant 0 : index
      %396 = vector.load %arg9[%c12_161, %c0_162, %c0_163] : memref<32x8x8xf32, #tpu.memory_space<vmem>>, vector<1x8x8xf32>
      %397 = vector.shape_cast %396 : vector<1x8x8xf32> to vector<8x8xf32>
      %398 = arith.mulf %236, %397 : vector<8x8xf32>
      %cst_164 = arith.constant dense<0.000000e+00> : vector<8xf32>
      %399 = vector.multi_reduction <add>, %398, %cst_164 [1] : vector<8x8xf32> to vector<8xf32>
      %400 = vector.shape_cast %399 : vector<8xf32> to vector<8x1xf32>
      %c12_i32 = arith.constant 12 : i32
      %401 = vector.broadcast %c12_i32 : i32 to vector<8x32xi32>
      %402 = arith.cmpi eq, %15, %401 : vector<8x32xi32>
      %cst_165 = arith.constant 0.000000e+00 : f32
      %403 = vector.shape_cast %400 : vector<8x1xf32> to vector<8x1xf32>
      %404 = vector.broadcast %403 : vector<8x1xf32> to vector<8x32xf32>
      %405 = vector.broadcast %cst_165 : f32 to vector<8x32xf32>
      %406 = arith.select %402, %404, %405 : vector<8x32xi1>, vector<8x32xf32>
      %407 = arith.addf %395, %406 : vector<8x32xf32>
      %c13_166 = arith.constant 13 : index
      %c0_167 = arith.constant 0 : index
      %c0_168 = arith.constant 0 : index
      %408 = vector.load %arg9[%c13_166, %c0_167, %c0_168] : memref<32x8x8xf32, #tpu.memory_space<vmem>>, vector<1x8x8xf32>
      %409 = vector.shape_cast %408 : vector<1x8x8xf32> to vector<8x8xf32>
      %410 = arith.mulf %236, %409 : vector<8x8xf32>
      %cst_169 = arith.constant dense<0.000000e+00> : vector<8xf32>
      %411 = vector.multi_reduction <add>, %410, %cst_169 [1] : vector<8x8xf32> to vector<8xf32>
      %412 = vector.shape_cast %411 : vector<8xf32> to vector<8x1xf32>
      %c13_i32 = arith.constant 13 : i32
      %413 = vector.broadcast %c13_i32 : i32 to vector<8x32xi32>
      %414 = arith.cmpi eq, %15, %413 : vector<8x32xi32>
      %cst_170 = arith.constant 0.000000e+00 : f32
      %415 = vector.shape_cast %412 : vector<8x1xf32> to vector<8x1xf32>
      %416 = vector.broadcast %415 : vector<8x1xf32> to vector<8x32xf32>
      %417 = vector.broadcast %cst_170 : f32 to vector<8x32xf32>
      %418 = arith.select %414, %416, %417 : vector<8x32xi1>, vector<8x32xf32>
      %419 = arith.addf %407, %418 : vector<8x32xf32>
      %c14_171 = arith.constant 14 : index
      %c0_172 = arith.constant 0 : index
      %c0_173 = arith.constant 0 : index
      %420 = vector.load %arg9[%c14_171, %c0_172, %c0_173] : memref<32x8x8xf32, #tpu.memory_space<vmem>>, vector<1x8x8xf32>
      %421 = vector.shape_cast %420 : vector<1x8x8xf32> to vector<8x8xf32>
      %422 = arith.mulf %236, %421 : vector<8x8xf32>
      %cst_174 = arith.constant dense<0.000000e+00> : vector<8xf32>
      %423 = vector.multi_reduction <add>, %422, %cst_174 [1] : vector<8x8xf32> to vector<8xf32>
      %424 = vector.shape_cast %423 : vector<8xf32> to vector<8x1xf32>
      %c14_i32 = arith.constant 14 : i32
      %425 = vector.broadcast %c14_i32 : i32 to vector<8x32xi32>
      %426 = arith.cmpi eq, %15, %425 : vector<8x32xi32>
      %cst_175 = arith.constant 0.000000e+00 : f32
      %427 = vector.shape_cast %424 : vector<8x1xf32> to vector<8x1xf32>
      %428 = vector.broadcast %427 : vector<8x1xf32> to vector<8x32xf32>
      %429 = vector.broadcast %cst_175 : f32 to vector<8x32xf32>
      %430 = arith.select %426, %428, %429 : vector<8x32xi1>, vector<8x32xf32>
      %431 = arith.addf %419, %430 : vector<8x32xf32>
      %c15_176 = arith.constant 15 : index
      %c0_177 = arith.constant 0 : index
      %c0_178 = arith.constant 0 : index
      %432 = vector.load %arg9[%c15_176, %c0_177, %c0_178] : memref<32x8x8xf32, #tpu.memory_space<vmem>>, vector<1x8x8xf32>
      %433 = vector.shape_cast %432 : vector<1x8x8xf32> to vector<8x8xf32>
      %434 = arith.mulf %236, %433 : vector<8x8xf32>
      %cst_179 = arith.constant dense<0.000000e+00> : vector<8xf32>
      %435 = vector.multi_reduction <add>, %434, %cst_179 [1] : vector<8x8xf32> to vector<8xf32>
      %436 = vector.shape_cast %435 : vector<8xf32> to vector<8x1xf32>
      %c15_i32 = arith.constant 15 : i32
      %437 = vector.broadcast %c15_i32 : i32 to vector<8x32xi32>
      %438 = arith.cmpi eq, %15, %437 : vector<8x32xi32>
      %cst_180 = arith.constant 0.000000e+00 : f32
      %439 = vector.shape_cast %436 : vector<8x1xf32> to vector<8x1xf32>
      %440 = vector.broadcast %439 : vector<8x1xf32> to vector<8x32xf32>
      %441 = vector.broadcast %cst_180 : f32 to vector<8x32xf32>
      %442 = arith.select %438, %440, %441 : vector<8x32xi1>, vector<8x32xf32>
      %443 = arith.addf %431, %442 : vector<8x32xf32>
      %c16_181 = arith.constant 16 : index
      %c0_182 = arith.constant 0 : index
      %c0_183 = arith.constant 0 : index
      %444 = vector.load %arg9[%c16_181, %c0_182, %c0_183] : memref<32x8x8xf32, #tpu.memory_space<vmem>>, vector<1x8x8xf32>
      %445 = vector.shape_cast %444 : vector<1x8x8xf32> to vector<8x8xf32>
      %446 = arith.mulf %236, %445 : vector<8x8xf32>
      %cst_184 = arith.constant dense<0.000000e+00> : vector<8xf32>
      %447 = vector.multi_reduction <add>, %446, %cst_184 [1] : vector<8x8xf32> to vector<8xf32>
      %448 = vector.shape_cast %447 : vector<8xf32> to vector<8x1xf32>
      %c16_i32 = arith.constant 16 : i32
      %449 = vector.broadcast %c16_i32 : i32 to vector<8x32xi32>
      %450 = arith.cmpi eq, %15, %449 : vector<8x32xi32>
      %cst_185 = arith.constant 0.000000e+00 : f32
      %451 = vector.shape_cast %448 : vector<8x1xf32> to vector<8x1xf32>
      %452 = vector.broadcast %451 : vector<8x1xf32> to vector<8x32xf32>
      %453 = vector.broadcast %cst_185 : f32 to vector<8x32xf32>
      %454 = arith.select %450, %452, %453 : vector<8x32xi1>, vector<8x32xf32>
      %455 = arith.addf %443, %454 : vector<8x32xf32>
      %c17_186 = arith.constant 17 : index
      %c0_187 = arith.constant 0 : index
      %c0_188 = arith.constant 0 : index
      %456 = vector.load %arg9[%c17_186, %c0_187, %c0_188] : memref<32x8x8xf32, #tpu.memory_space<vmem>>, vector<1x8x8xf32>
      %457 = vector.shape_cast %456 : vector<1x8x8xf32> to vector<8x8xf32>
      %458 = arith.mulf %236, %457 : vector<8x8xf32>
      %cst_189 = arith.constant dense<0.000000e+00> : vector<8xf32>
      %459 = vector.multi_reduction <add>, %458, %cst_189 [1] : vector<8x8xf32> to vector<8xf32>
      %460 = vector.shape_cast %459 : vector<8xf32> to vector<8x1xf32>
      %c17_i32 = arith.constant 17 : i32
      %461 = vector.broadcast %c17_i32 : i32 to vector<8x32xi32>
      %462 = arith.cmpi eq, %15, %461 : vector<8x32xi32>
      %cst_190 = arith.constant 0.000000e+00 : f32
      %463 = vector.shape_cast %460 : vector<8x1xf32> to vector<8x1xf32>
      %464 = vector.broadcast %463 : vector<8x1xf32> to vector<8x32xf32>
      %465 = vector.broadcast %cst_190 : f32 to vector<8x32xf32>
      %466 = arith.select %462, %464, %465 : vector<8x32xi1>, vector<8x32xf32>
      %467 = arith.addf %455, %466 : vector<8x32xf32>
      %c18_191 = arith.constant 18 : index
      %c0_192 = arith.constant 0 : index
      %c0_193 = arith.constant 0 : index
      %468 = vector.load %arg9[%c18_191, %c0_192, %c0_193] : memref<32x8x8xf32, #tpu.memory_space<vmem>>, vector<1x8x8xf32>
      %469 = vector.shape_cast %468 : vector<1x8x8xf32> to vector<8x8xf32>
      %470 = arith.mulf %236, %469 : vector<8x8xf32>
      %cst_194 = arith.constant dense<0.000000e+00> : vector<8xf32>
      %471 = vector.multi_reduction <add>, %470, %cst_194 [1] : vector<8x8xf32> to vector<8xf32>
      %472 = vector.shape_cast %471 : vector<8xf32> to vector<8x1xf32>
      %c18_i32 = arith.constant 18 : i32
      %473 = vector.broadcast %c18_i32 : i32 to vector<8x32xi32>
      %474 = arith.cmpi eq, %15, %473 : vector<8x32xi32>
      %cst_195 = arith.constant 0.000000e+00 : f32
      %475 = vector.shape_cast %472 : vector<8x1xf32> to vector<8x1xf32>
      %476 = vector.broadcast %475 : vector<8x1xf32> to vector<8x32xf32>
      %477 = vector.broadcast %cst_195 : f32 to vector<8x32xf32>
      %478 = arith.select %474, %476, %477 : vector<8x32xi1>, vector<8x32xf32>
      %479 = arith.addf %467, %478 : vector<8x32xf32>
      %c19_196 = arith.constant 19 : index
      %c0_197 = arith.constant 0 : index
      %c0_198 = arith.constant 0 : index
      %480 = vector.load %arg9[%c19_196, %c0_197, %c0_198] : memref<32x8x8xf32, #tpu.memory_space<vmem>>, vector<1x8x8xf32>
      %481 = vector.shape_cast %480 : vector<1x8x8xf32> to vector<8x8xf32>
      %482 = arith.mulf %236, %481 : vector<8x8xf32>
      %cst_199 = arith.constant dense<0.000000e+00> : vector<8xf32>
      %483 = vector.multi_reduction <add>, %482, %cst_199 [1] : vector<8x8xf32> to vector<8xf32>
      %484 = vector.shape_cast %483 : vector<8xf32> to vector<8x1xf32>
      %c19_i32 = arith.constant 19 : i32
      %485 = vector.broadcast %c19_i32 : i32 to vector<8x32xi32>
      %486 = arith.cmpi eq, %15, %485 : vector<8x32xi32>
      %cst_200 = arith.constant 0.000000e+00 : f32
      %487 = vector.shape_cast %484 : vector<8x1xf32> to vector<8x1xf32>
      %488 = vector.broadcast %487 : vector<8x1xf32> to vector<8x32xf32>
      %489 = vector.broadcast %cst_200 : f32 to vector<8x32xf32>
      %490 = arith.select %486, %488, %489 : vector<8x32xi1>, vector<8x32xf32>
      %491 = arith.addf %479, %490 : vector<8x32xf32>
      %c20_201 = arith.constant 20 : index
      %c0_202 = arith.constant 0 : index
      %c0_203 = arith.constant 0 : index
      %492 = vector.load %arg9[%c20_201, %c0_202, %c0_203] : memref<32x8x8xf32, #tpu.memory_space<vmem>>, vector<1x8x8xf32>
      %493 = vector.shape_cast %492 : vector<1x8x8xf32> to vector<8x8xf32>
      %494 = arith.mulf %236, %493 : vector<8x8xf32>
      %cst_204 = arith.constant dense<0.000000e+00> : vector<8xf32>
      %495 = vector.multi_reduction <add>, %494, %cst_204 [1] : vector<8x8xf32> to vector<8xf32>
      %496 = vector.shape_cast %495 : vector<8xf32> to vector<8x1xf32>
      %c20_i32 = arith.constant 20 : i32
      %497 = vector.broadcast %c20_i32 : i32 to vector<8x32xi32>
      %498 = arith.cmpi eq, %15, %497 : vector<8x32xi32>
      %cst_205 = arith.constant 0.000000e+00 : f32
      %499 = vector.shape_cast %496 : vector<8x1xf32> to vector<8x1xf32>
      %500 = vector.broadcast %499 : vector<8x1xf32> to vector<8x32xf32>
      %501 = vector.broadcast %cst_205 : f32 to vector<8x32xf32>
      %502 = arith.select %498, %500, %501 : vector<8x32xi1>, vector<8x32xf32>
      %503 = arith.addf %491, %502 : vector<8x32xf32>
      %c21_206 = arith.constant 21 : index
      %c0_207 = arith.constant 0 : index
      %c0_208 = arith.constant 0 : index
      %504 = vector.load %arg9[%c21_206, %c0_207, %c0_208] : memref<32x8x8xf32, #tpu.memory_space<vmem>>, vector<1x8x8xf32>
      %505 = vector.shape_cast %504 : vector<1x8x8xf32> to vector<8x8xf32>
      %506 = arith.mulf %236, %505 : vector<8x8xf32>
      %cst_209 = arith.constant dense<0.000000e+00> : vector<8xf32>
      %507 = vector.multi_reduction <add>, %506, %cst_209 [1] : vector<8x8xf32> to vector<8xf32>
      %508 = vector.shape_cast %507 : vector<8xf32> to vector<8x1xf32>
      %c21_i32 = arith.constant 21 : i32
      %509 = vector.broadcast %c21_i32 : i32 to vector<8x32xi32>
      %510 = arith.cmpi eq, %15, %509 : vector<8x32xi32>
      %cst_210 = arith.constant 0.000000e+00 : f32
      %511 = vector.shape_cast %508 : vector<8x1xf32> to vector<8x1xf32>
      %512 = vector.broadcast %511 : vector<8x1xf32> to vector<8x32xf32>
      %513 = vector.broadcast %cst_210 : f32 to vector<8x32xf32>
      %514 = arith.select %510, %512, %513 : vector<8x32xi1>, vector<8x32xf32>
      %515 = arith.addf %503, %514 : vector<8x32xf32>
      %c22_211 = arith.constant 22 : index
      %c0_212 = arith.constant 0 : index
      %c0_213 = arith.constant 0 : index
      %516 = vector.load %arg9[%c22_211, %c0_212, %c0_213] : memref<32x8x8xf32, #tpu.memory_space<vmem>>, vector<1x8x8xf32>
      %517 = vector.shape_cast %516 : vector<1x8x8xf32> to vector<8x8xf32>
      %518 = arith.mulf %236, %517 : vector<8x8xf32>
      %cst_214 = arith.constant dense<0.000000e+00> : vector<8xf32>
      %519 = vector.multi_reduction <add>, %518, %cst_214 [1] : vector<8x8xf32> to vector<8xf32>
      %520 = vector.shape_cast %519 : vector<8xf32> to vector<8x1xf32>
      %c22_i32 = arith.constant 22 : i32
      %521 = vector.broadcast %c22_i32 : i32 to vector<8x32xi32>
      %522 = arith.cmpi eq, %15, %521 : vector<8x32xi32>
      %cst_215 = arith.constant 0.000000e+00 : f32
      %523 = vector.shape_cast %520 : vector<8x1xf32> to vector<8x1xf32>
      %524 = vector.broadcast %523 : vector<8x1xf32> to vector<8x32xf32>
      %525 = vector.broadcast %cst_215 : f32 to vector<8x32xf32>
      %526 = arith.select %522, %524, %525 : vector<8x32xi1>, vector<8x32xf32>
      %527 = arith.addf %515, %526 : vector<8x32xf32>
      %c23_216 = arith.constant 23 : index
      %c0_217 = arith.constant 0 : index
      %c0_218 = arith.constant 0 : index
      %528 = vector.load %arg9[%c23_216, %c0_217, %c0_218] : memref<32x8x8xf32, #tpu.memory_space<vmem>>, vector<1x8x8xf32>
      %529 = vector.shape_cast %528 : vector<1x8x8xf32> to vector<8x8xf32>
      %530 = arith.mulf %236, %529 : vector<8x8xf32>
      %cst_219 = arith.constant dense<0.000000e+00> : vector<8xf32>
      %531 = vector.multi_reduction <add>, %530, %cst_219 [1] : vector<8x8xf32> to vector<8xf32>
      %532 = vector.shape_cast %531 : vector<8xf32> to vector<8x1xf32>
      %c23_i32 = arith.constant 23 : i32
      %533 = vector.broadcast %c23_i32 : i32 to vector<8x32xi32>
      %534 = arith.cmpi eq, %15, %533 : vector<8x32xi32>
      %cst_220 = arith.constant 0.000000e+00 : f32
      %535 = vector.shape_cast %532 : vector<8x1xf32> to vector<8x1xf32>
      %536 = vector.broadcast %535 : vector<8x1xf32> to vector<8x32xf32>
      %537 = vector.broadcast %cst_220 : f32 to vector<8x32xf32>
      %538 = arith.select %534, %536, %537 : vector<8x32xi1>, vector<8x32xf32>
      %539 = arith.addf %527, %538 : vector<8x32xf32>
      %c24_221 = arith.constant 24 : index
      %c0_222 = arith.constant 0 : index
      %c0_223 = arith.constant 0 : index
      %540 = vector.load %arg9[%c24_221, %c0_222, %c0_223] : memref<32x8x8xf32, #tpu.memory_space<vmem>>, vector<1x8x8xf32>
      %541 = vector.shape_cast %540 : vector<1x8x8xf32> to vector<8x8xf32>
      %542 = arith.mulf %236, %541 : vector<8x8xf32>
      %cst_224 = arith.constant dense<0.000000e+00> : vector<8xf32>
      %543 = vector.multi_reduction <add>, %542, %cst_224 [1] : vector<8x8xf32> to vector<8xf32>
      %544 = vector.shape_cast %543 : vector<8xf32> to vector<8x1xf32>
      %c24_i32 = arith.constant 24 : i32
      %545 = vector.broadcast %c24_i32 : i32 to vector<8x32xi32>
      %546 = arith.cmpi eq, %15, %545 : vector<8x32xi32>
      %cst_225 = arith.constant 0.000000e+00 : f32
      %547 = vector.shape_cast %544 : vector<8x1xf32> to vector<8x1xf32>
      %548 = vector.broadcast %547 : vector<8x1xf32> to vector<8x32xf32>
      %549 = vector.broadcast %cst_225 : f32 to vector<8x32xf32>
      %550 = arith.select %546, %548, %549 : vector<8x32xi1>, vector<8x32xf32>
      %551 = arith.addf %539, %550 : vector<8x32xf32>
      %c25_226 = arith.constant 25 : index
      %c0_227 = arith.constant 0 : index
      %c0_228 = arith.constant 0 : index
      %552 = vector.load %arg9[%c25_226, %c0_227, %c0_228] : memref<32x8x8xf32, #tpu.memory_space<vmem>>, vector<1x8x8xf32>
      %553 = vector.shape_cast %552 : vector<1x8x8xf32> to vector<8x8xf32>
      %554 = arith.mulf %236, %553 : vector<8x8xf32>
      %cst_229 = arith.constant dense<0.000000e+00> : vector<8xf32>
      %555 = vector.multi_reduction <add>, %554, %cst_229 [1] : vector<8x8xf32> to vector<8xf32>
      %556 = vector.shape_cast %555 : vector<8xf32> to vector<8x1xf32>
      %c25_i32 = arith.constant 25 : i32
      %557 = vector.broadcast %c25_i32 : i32 to vector<8x32xi32>
      %558 = arith.cmpi eq, %15, %557 : vector<8x32xi32>
      %cst_230 = arith.constant 0.000000e+00 : f32
      %559 = vector.shape_cast %556 : vector<8x1xf32> to vector<8x1xf32>
      %560 = vector.broadcast %559 : vector<8x1xf32> to vector<8x32xf32>
      %561 = vector.broadcast %cst_230 : f32 to vector<8x32xf32>
      %562 = arith.select %558, %560, %561 : vector<8x32xi1>, vector<8x32xf32>
      %563 = arith.addf %551, %562 : vector<8x32xf32>
      %c26_231 = arith.constant 26 : index
      %c0_232 = arith.constant 0 : index
      %c0_233 = arith.constant 0 : index
      %564 = vector.load %arg9[%c26_231, %c0_232, %c0_233] : memref<32x8x8xf32, #tpu.memory_space<vmem>>, vector<1x8x8xf32>
      %565 = vector.shape_cast %564 : vector<1x8x8xf32> to vector<8x8xf32>
      %566 = arith.mulf %236, %565 : vector<8x8xf32>
      %cst_234 = arith.constant dense<0.000000e+00> : vector<8xf32>
      %567 = vector.multi_reduction <add>, %566, %cst_234 [1] : vector<8x8xf32> to vector<8xf32>
      %568 = vector.shape_cast %567 : vector<8xf32> to vector<8x1xf32>
      %c26_i32 = arith.constant 26 : i32
      %569 = vector.broadcast %c26_i32 : i32 to vector<8x32xi32>
      %570 = arith.cmpi eq, %15, %569 : vector<8x32xi32>
      %cst_235 = arith.constant 0.000000e+00 : f32
      %571 = vector.shape_cast %568 : vector<8x1xf32> to vector<8x1xf32>
      %572 = vector.broadcast %571 : vector<8x1xf32> to vector<8x32xf32>
      %573 = vector.broadcast %cst_235 : f32 to vector<8x32xf32>
      %574 = arith.select %570, %572, %573 : vector<8x32xi1>, vector<8x32xf32>
      %575 = arith.addf %563, %574 : vector<8x32xf32>
      %c27_236 = arith.constant 27 : index
      %c0_237 = arith.constant 0 : index
      %c0_238 = arith.constant 0 : index
      %576 = vector.load %arg9[%c27_236, %c0_237, %c0_238] : memref<32x8x8xf32, #tpu.memory_space<vmem>>, vector<1x8x8xf32>
      %577 = vector.shape_cast %576 : vector<1x8x8xf32> to vector<8x8xf32>
      %578 = arith.mulf %236, %577 : vector<8x8xf32>
      %cst_239 = arith.constant dense<0.000000e+00> : vector<8xf32>
      %579 = vector.multi_reduction <add>, %578, %cst_239 [1] : vector<8x8xf32> to vector<8xf32>
      %580 = vector.shape_cast %579 : vector<8xf32> to vector<8x1xf32>
      %c27_i32 = arith.constant 27 : i32
      %581 = vector.broadcast %c27_i32 : i32 to vector<8x32xi32>
      %582 = arith.cmpi eq, %15, %581 : vector<8x32xi32>
      %cst_240 = arith.constant 0.000000e+00 : f32
      %583 = vector.shape_cast %580 : vector<8x1xf32> to vector<8x1xf32>
      %584 = vector.broadcast %583 : vector<8x1xf32> to vector<8x32xf32>
      %585 = vector.broadcast %cst_240 : f32 to vector<8x32xf32>
      %586 = arith.select %582, %584, %585 : vector<8x32xi1>, vector<8x32xf32>
      %587 = arith.addf %575, %586 : vector<8x32xf32>
      %c28_241 = arith.constant 28 : index
      %c0_242 = arith.constant 0 : index
      %c0_243 = arith.constant 0 : index
      %588 = vector.load %arg9[%c28_241, %c0_242, %c0_243] : memref<32x8x8xf32, #tpu.memory_space<vmem>>, vector<1x8x8xf32>
      %589 = vector.shape_cast %588 : vector<1x8x8xf32> to vector<8x8xf32>
      %590 = arith.mulf %236, %589 : vector<8x8xf32>
      %cst_244 = arith.constant dense<0.000000e+00> : vector<8xf32>
      %591 = vector.multi_reduction <add>, %590, %cst_244 [1] : vector<8x8xf32> to vector<8xf32>
      %592 = vector.shape_cast %591 : vector<8xf32> to vector<8x1xf32>
      %c28_i32 = arith.constant 28 : i32
      %593 = vector.broadcast %c28_i32 : i32 to vector<8x32xi32>
      %594 = arith.cmpi eq, %15, %593 : vector<8x32xi32>
      %cst_245 = arith.constant 0.000000e+00 : f32
      %595 = vector.shape_cast %592 : vector<8x1xf32> to vector<8x1xf32>
      %596 = vector.broadcast %595 : vector<8x1xf32> to vector<8x32xf32>
      %597 = vector.broadcast %cst_245 : f32 to vector<8x32xf32>
      %598 = arith.select %594, %596, %597 : vector<8x32xi1>, vector<8x32xf32>
      %599 = arith.addf %587, %598 : vector<8x32xf32>
      %c29_246 = arith.constant 29 : index
      %c0_247 = arith.constant 0 : index
      %c0_248 = arith.constant 0 : index
      %600 = vector.load %arg9[%c29_246, %c0_247, %c0_248] : memref<32x8x8xf32, #tpu.memory_space<vmem>>, vector<1x8x8xf32>
      %601 = vector.shape_cast %600 : vector<1x8x8xf32> to vector<8x8xf32>
      %602 = arith.mulf %236, %601 : vector<8x8xf32>
      %cst_249 = arith.constant dense<0.000000e+00> : vector<8xf32>
      %603 = vector.multi_reduction <add>, %602, %cst_249 [1] : vector<8x8xf32> to vector<8xf32>
      %604 = vector.shape_cast %603 : vector<8xf32> to vector<8x1xf32>
      %c29_i32 = arith.constant 29 : i32
      %605 = vector.broadcast %c29_i32 : i32 to vector<8x32xi32>
      %606 = arith.cmpi eq, %15, %605 : vector<8x32xi32>
      %cst_250 = arith.constant 0.000000e+00 : f32
      %607 = vector.shape_cast %604 : vector<8x1xf32> to vector<8x1xf32>
      %608 = vector.broadcast %607 : vector<8x1xf32> to vector<8x32xf32>
      %609 = vector.broadcast %cst_250 : f32 to vector<8x32xf32>
      %610 = arith.select %606, %608, %609 : vector<8x32xi1>, vector<8x32xf32>
      %611 = arith.addf %599, %610 : vector<8x32xf32>
      %c30_251 = arith.constant 30 : index
      %c0_252 = arith.constant 0 : index
      %c0_253 = arith.constant 0 : index
      %612 = vector.load %arg9[%c30_251, %c0_252, %c0_253] : memref<32x8x8xf32, #tpu.memory_space<vmem>>, vector<1x8x8xf32>
      %613 = vector.shape_cast %612 : vector<1x8x8xf32> to vector<8x8xf32>
      %614 = arith.mulf %236, %613 : vector<8x8xf32>
      %cst_254 = arith.constant dense<0.000000e+00> : vector<8xf32>
      %615 = vector.multi_reduction <add>, %614, %cst_254 [1] : vector<8x8xf32> to vector<8xf32>
      %616 = vector.shape_cast %615 : vector<8xf32> to vector<8x1xf32>
      %c30_i32 = arith.constant 30 : i32
      %617 = vector.broadcast %c30_i32 : i32 to vector<8x32xi32>
      %618 = arith.cmpi eq, %15, %617 : vector<8x32xi32>
      %cst_255 = arith.constant 0.000000e+00 : f32
      %619 = vector.shape_cast %616 : vector<8x1xf32> to vector<8x1xf32>
      %620 = vector.broadcast %619 : vector<8x1xf32> to vector<8x32xf32>
      %621 = vector.broadcast %cst_255 : f32 to vector<8x32xf32>
      %622 = arith.select %618, %620, %621 : vector<8x32xi1>, vector<8x32xf32>
      %623 = arith.addf %611, %622 : vector<8x32xf32>
      %c31_256 = arith.constant 31 : index
      %c0_257 = arith.constant 0 : index
      %c0_258 = arith.constant 0 : index
      %624 = vector.load %arg9[%c31_256, %c0_257, %c0_258] : memref<32x8x8xf32, #tpu.memory_space<vmem>>, vector<1x8x8xf32>
      %625 = vector.shape_cast %624 : vector<1x8x8xf32> to vector<8x8xf32>
      %626 = arith.mulf %236, %625 : vector<8x8xf32>
      %cst_259 = arith.constant dense<0.000000e+00> : vector<8xf32>
      %627 = vector.multi_reduction <add>, %626, %cst_259 [1] : vector<8x8xf32> to vector<8xf32>
      %628 = vector.shape_cast %627 : vector<8xf32> to vector<8x1xf32>
      %c31_i32 = arith.constant 31 : i32
      %629 = vector.broadcast %c31_i32 : i32 to vector<8x32xi32>
      %630 = arith.cmpi eq, %15, %629 : vector<8x32xi32>
      %cst_260 = arith.constant 0.000000e+00 : f32
      %631 = vector.shape_cast %628 : vector<8x1xf32> to vector<8x1xf32>
      %632 = vector.broadcast %631 : vector<8x1xf32> to vector<8x32xf32>
      %633 = vector.broadcast %cst_260 : f32 to vector<8x32xf32>
      %634 = arith.select %630, %632, %633 : vector<8x32xi1>, vector<8x32xf32>
      %635 = arith.addf %623, %634 : vector<8x32xf32>
      %c0_261 = arith.constant 0 : index
      %c0_262 = arith.constant 0 : index
      %c0_263 = arith.constant 0 : index
      %636 = vector.load %arg13[%c0_261, %c0_262, %c0_263] : memref<2x8x32xf32, #tpu.memory_space<vmem>>, vector<1x8x32xf32>
      %637 = vector.shape_cast %636 : vector<1x8x32xf32> to vector<8x32xf32>
      %638 = vector.shape_cast %635 : vector<8x32xf32> to vector<1x8x32xf32>
      tpu.vector_store %arg13[%c0_261, %c0_262, %c0_263], %638 {strides = array<i32>} : memref<2x8x32xf32, #tpu.memory_space<vmem>>, vector<1x8x32xf32>,
      %c0_264 = arith.constant 0 : index
      %c0_265 = arith.constant 0 : index
      %c0_266 = arith.constant 0 : index
      %639 = vector.load %arg11[%c0_264, %c0_265, %c0_266] : memref<2x8x1xf32, #tpu.memory_space<vmem>>, vector<1x8x1xf32>
      %640 = vector.shape_cast %639 : vector<1x8x1xf32> to vector<8x1xf32>
      %641 = vector.shape_cast %231 : vector<8x1xf32> to vector<1x8x1xf32>
      tpu.vector_store %arg11[%c0_264, %c0_265, %c0_266], %641 {strides = array<i32>} : memref<2x8x1xf32, #tpu.memory_space<vmem>>, vector<1x8x1xf32>,
      %c2_i32_267 = arith.constant 2 : i32
      %642 = arith.muli %arg1, %c2_i32_267 : i32
      %c1_i32_268 = arith.constant 1 : i32
      %643 = arith.addi %642, %c1_i32_268 : i32
      %644 = arith.index_cast %643 : i32 to index
      %645 = memref.load %arg3[%644] : memref<2xi32, #tpu.memory_space<smem>>
      %c1_269 = arith.constant 1 : index
      %c0_270 = arith.constant 0 : index
      %c0_271 = arith.constant 0 : index
      %646 = vector.load %arg5[%c1_269, %c0_270, %c0_271] : memref<2x8x32xf32, #tpu.memory_space<vmem>>, vector<1x8x32xf32>
      %647 = vector.shape_cast %646 : vector<1x8x32xf32> to vector<8x32xf32>
      %c1_272 = arith.constant 1 : index
      %c0_273 = arith.constant 0 : index
      %c0_274 = arith.constant 0 : index
      %648 = vector.load %arg7[%c1_272, %c0_273, %c0_274] : memref<2x8x32xf32, #tpu.memory_space<vmem>>, vector<1x8x32xf32>
      %649 = vector.shape_cast %648 : vector<1x8x32xf32> to vector<8x32xf32>
      %c1_275 = arith.constant 1 : index
      %c0_276 = arith.constant 0 : index
      %c0_277 = arith.constant 0 : index
      %650 = vector.load %arg5[%c1_275, %c0_276, %c0_277] : memref<2x8x32xf32, #tpu.memory_space<vmem>>, vector<1x8x32xf32>
      %651 = vector.shape_cast %650 : vector<1x8x32xf32> to vector<8x32xf32>
      %c1_278 = arith.constant 1 : index
      %c0_279 = arith.constant 0 : index
      %c0_280 = arith.constant 0 : index
      %652 = vector.load %arg6[%c1_278, %c0_279, %c0_280] : memref<2x8x32xf32, #tpu.memory_space<vmem>>, vector<1x8x32xf32>
      %653 = vector.shape_cast %652 : vector<1x8x32xf32> to vector<8x32xf32>
      %cst_281 = arith.constant dense<0.000000e+00> : vector<8x8xf32>
      %654 = tpu.matmul %651, %653, %cst_281 {dimension_numbers = #tpu.dot_dimension_numbers<[1], [1], [0], [0], [0, 0, 1, 0], [], []>} : vector<8x32xf32>, vector<8x32xf32>, vector<8x8xf32> -> vector<8x8xf32>
      %655 = vector.extract_strided_slice %647 {offsets = [0, 0], sizes = [8, 1], strides = [1, 1]} : vector<8x32xf32> to vector<8x1xf32>
      %c0_282 = arith.constant 0 : index
      %c0_283 = arith.constant 0 : index
      %c0_284 = arith.constant 0 : index
      %656 = vector.load %arg8[%c0_282, %c0_283, %c0_284] : memref<32x8x8xf32, #tpu.memory_space<vmem>>, vector<1x8x8xf32>
      %657 = vector.shape_cast %656 : vector<1x8x8xf32> to vector<8x8xf32>
      %658 = vector.broadcast %655 : vector<8x1xf32> to vector<8x8xf32>
      %659 = arith.mulf %658, %657 : vector<8x8xf32>
      %660 = arith.addf %654, %659 : vector<8x8xf32>
      %661 = vector.extract_strided_slice %647 {offsets = [0, 1], sizes = [8, 1], strides = [1, 1]} : vector<8x32xf32> to vector<8x1xf32>
      %c1_285 = arith.constant 1 : index
      %c0_286 = arith.constant 0 : index
      %c0_287 = arith.constant 0 : index
      %662 = vector.load %arg8[%c1_285, %c0_286, %c0_287] : memref<32x8x8xf32, #tpu.memory_space<vmem>>, vector<1x8x8xf32>
      %663 = vector.shape_cast %662 : vector<1x8x8xf32> to vector<8x8xf32>
      %664 = vector.broadcast %661 : vector<8x1xf32> to vector<8x8xf32>
      %665 = arith.mulf %664, %663 : vector<8x8xf32>
      %666 = arith.addf %660, %665 : vector<8x8xf32>
      %667 = vector.extract_strided_slice %647 {offsets = [0, 2], sizes = [8, 1], strides = [1, 1]} : vector<8x32xf32> to vector<8x1xf32>
      %c2_288 = arith.constant 2 : index
      %c0_289 = arith.constant 0 : index
      %c0_290 = arith.constant 0 : index
      %668 = vector.load %arg8[%c2_288, %c0_289, %c0_290] : memref<32x8x8xf32, #tpu.memory_space<vmem>>, vector<1x8x8xf32>
      %669 = vector.shape_cast %668 : vector<1x8x8xf32> to vector<8x8xf32>
      %670 = vector.broadcast %667 : vector<8x1xf32> to vector<8x8xf32>
      %671 = arith.mulf %670, %669 : vector<8x8xf32>
      %672 = arith.addf %666, %671 : vector<8x8xf32>
      %673 = vector.extract_strided_slice %647 {offsets = [0, 3], sizes = [8, 1], strides = [1, 1]} : vector<8x32xf32> to vector<8x1xf32>
      %c3_291 = arith.constant 3 : index
      %c0_292 = arith.constant 0 : index
      %c0_293 = arith.constant 0 : index
      %674 = vector.load %arg8[%c3_291, %c0_292, %c0_293] : memref<32x8x8xf32, #tpu.memory_space<vmem>>, vector<1x8x8xf32>
      %675 = vector.shape_cast %674 : vector<1x8x8xf32> to vector<8x8xf32>
      %676 = vector.broadcast %673 : vector<8x1xf32> to vector<8x8xf32>
      %677 = arith.mulf %676, %675 : vector<8x8xf32>
      %678 = arith.addf %672, %677 : vector<8x8xf32>
      %679 = vector.extract_strided_slice %647 {offsets = [0, 4], sizes = [8, 1], strides = [1, 1]} : vector<8x32xf32> to vector<8x1xf32>
      %c4_294 = arith.constant 4 : index
      %c0_295 = arith.constant 0 : index
      %c0_296 = arith.constant 0 : index
      %680 = vector.load %arg8[%c4_294, %c0_295, %c0_296] : memref<32x8x8xf32, #tpu.memory_space<vmem>>, vector<1x8x8xf32>
      %681 = vector.shape_cast %680 : vector<1x8x8xf32> to vector<8x8xf32>
      %682 = vector.broadcast %679 : vector<8x1xf32> to vector<8x8xf32>
      %683 = arith.mulf %682, %681 : vector<8x8xf32>
      %684 = arith.addf %678, %683 : vector<8x8xf32>
      %685 = vector.extract_strided_slice %647 {offsets = [0, 5], sizes = [8, 1], strides = [1, 1]} : vector<8x32xf32> to vector<8x1xf32>
      %c5_297 = arith.constant 5 : index
      %c0_298 = arith.constant 0 : index
      %c0_299 = arith.constant 0 : index
      %686 = vector.load %arg8[%c5_297, %c0_298, %c0_299] : memref<32x8x8xf32, #tpu.memory_space<vmem>>, vector<1x8x8xf32>
      %687 = vector.shape_cast %686 : vector<1x8x8xf32> to vector<8x8xf32>
      %688 = vector.broadcast %685 : vector<8x1xf32> to vector<8x8xf32>
      %689 = arith.mulf %688, %687 : vector<8x8xf32>
      %690 = arith.addf %684, %689 : vector<8x8xf32>
      %691 = vector.extract_strided_slice %647 {offsets = [0, 6], sizes = [8, 1], strides = [1, 1]} : vector<8x32xf32> to vector<8x1xf32>
      %c6_300 = arith.constant 6 : index
      %c0_301 = arith.constant 0 : index
      %c0_302 = arith.constant 0 : index
      %692 = vector.load %arg8[%c6_300, %c0_301, %c0_302] : memref<32x8x8xf32, #tpu.memory_space<vmem>>, vector<1x8x8xf32>
      %693 = vector.shape_cast %692 : vector<1x8x8xf32> to vector<8x8xf32>
      %694 = vector.broadcast %691 : vector<8x1xf32> to vector<8x8xf32>
      %695 = arith.mulf %694, %693 : vector<8x8xf32>
      %696 = arith.addf %690, %695 : vector<8x8xf32>
      %697 = vector.extract_strided_slice %647 {offsets = [0, 7], sizes = [8, 1], strides = [1, 1]} : vector<8x32xf32> to vector<8x1xf32>
      %c7_303 = arith.constant 7 : index
      %c0_304 = arith.constant 0 : index
      %c0_305 = arith.constant 0 : index
      %698 = vector.load %arg8[%c7_303, %c0_304, %c0_305] : memref<32x8x8xf32, #tpu.memory_space<vmem>>, vector<1x8x8xf32>
      %699 = vector.shape_cast %698 : vector<1x8x8xf32> to vector<8x8xf32>
      %700 = vector.broadcast %697 : vector<8x1xf32> to vector<8x8xf32>
      %701 = arith.mulf %700, %699 : vector<8x8xf32>
      %702 = arith.addf %696, %701 : vector<8x8xf32>
      %703 = vector.extract_strided_slice %647 {offsets = [0, 8], sizes = [8, 1], strides = [1, 1]} : vector<8x32xf32> to vector<8x1xf32>
      %c8_306 = arith.constant 8 : index
      %c0_307 = arith.constant 0 : index
      %c0_308 = arith.constant 0 : index
      %704 = vector.load %arg8[%c8_306, %c0_307, %c0_308] : memref<32x8x8xf32, #tpu.memory_space<vmem>>, vector<1x8x8xf32>
      %705 = vector.shape_cast %704 : vector<1x8x8xf32> to vector<8x8xf32>
      %706 = vector.broadcast %703 : vector<8x1xf32> to vector<8x8xf32>
      %707 = arith.mulf %706, %705 : vector<8x8xf32>
      %708 = arith.addf %702, %707 : vector<8x8xf32>
      %709 = vector.extract_strided_slice %647 {offsets = [0, 9], sizes = [8, 1], strides = [1, 1]} : vector<8x32xf32> to vector<8x1xf32>
      %c9_309 = arith.constant 9 : index
      %c0_310 = arith.constant 0 : index
      %c0_311 = arith.constant 0 : index
      %710 = vector.load %arg8[%c9_309, %c0_310, %c0_311] : memref<32x8x8xf32, #tpu.memory_space<vmem>>, vector<1x8x8xf32>
      %711 = vector.shape_cast %710 : vector<1x8x8xf32> to vector<8x8xf32>
      %712 = vector.broadcast %709 : vector<8x1xf32> to vector<8x8xf32>
      %713 = arith.mulf %712, %711 : vector<8x8xf32>
      %714 = arith.addf %708, %713 : vector<8x8xf32>
      %715 = vector.extract_strided_slice %647 {offsets = [0, 10], sizes = [8, 1], strides = [1, 1]} : vector<8x32xf32> to vector<8x1xf32>
      %c10_312 = arith.constant 10 : index
      %c0_313 = arith.constant 0 : index
      %c0_314 = arith.constant 0 : index
      %716 = vector.load %arg8[%c10_312, %c0_313, %c0_314] : memref<32x8x8xf32, #tpu.memory_space<vmem>>, vector<1x8x8xf32>
      %717 = vector.shape_cast %716 : vector<1x8x8xf32> to vector<8x8xf32>
      %718 = vector.broadcast %715 : vector<8x1xf32> to vector<8x8xf32>
      %719 = arith.mulf %718, %717 : vector<8x8xf32>
      %720 = arith.addf %714, %719 : vector<8x8xf32>
      %721 = vector.extract_strided_slice %647 {offsets = [0, 11], sizes = [8, 1], strides = [1, 1]} : vector<8x32xf32> to vector<8x1xf32>
      %c11_315 = arith.constant 11 : index
      %c0_316 = arith.constant 0 : index
      %c0_317 = arith.constant 0 : index
      %722 = vector.load %arg8[%c11_315, %c0_316, %c0_317] : memref<32x8x8xf32, #tpu.memory_space<vmem>>, vector<1x8x8xf32>
      %723 = vector.shape_cast %722 : vector<1x8x8xf32> to vector<8x8xf32>
      %724 = vector.broadcast %721 : vector<8x1xf32> to vector<8x8xf32>
      %725 = arith.mulf %724, %723 : vector<8x8xf32>
      %726 = arith.addf %720, %725 : vector<8x8xf32>
      %727 = vector.extract_strided_slice %647 {offsets = [0, 12], sizes = [8, 1], strides = [1, 1]} : vector<8x32xf32> to vector<8x1xf32>
      %c12_318 = arith.constant 12 : index
      %c0_319 = arith.constant 0 : index
      %c0_320 = arith.constant 0 : index
      %728 = vector.load %arg8[%c12_318, %c0_319, %c0_320] : memref<32x8x8xf32, #tpu.memory_space<vmem>>, vector<1x8x8xf32>
      %729 = vector.shape_cast %728 : vector<1x8x8xf32> to vector<8x8xf32>
      %730 = vector.broadcast %727 : vector<8x1xf32> to vector<8x8xf32>
      %731 = arith.mulf %730, %729 : vector<8x8xf32>
      %732 = arith.addf %726, %731 : vector<8x8xf32>
      %733 = vector.extract_strided_slice %647 {offsets = [0, 13], sizes = [8, 1], strides = [1, 1]} : vector<8x32xf32> to vector<8x1xf32>
      %c13_321 = arith.constant 13 : index
      %c0_322 = arith.constant 0 : index
      %c0_323 = arith.constant 0 : index
      %734 = vector.load %arg8[%c13_321, %c0_322, %c0_323] : memref<32x8x8xf32, #tpu.memory_space<vmem>>, vector<1x8x8xf32>
      %735 = vector.shape_cast %734 : vector<1x8x8xf32> to vector<8x8xf32>
      %736 = vector.broadcast %733 : vector<8x1xf32> to vector<8x8xf32>
      %737 = arith.mulf %736, %735 : vector<8x8xf32>
      %738 = arith.addf %732, %737 : vector<8x8xf32>
      %739 = vector.extract_strided_slice %647 {offsets = [0, 14], sizes = [8, 1], strides = [1, 1]} : vector<8x32xf32> to vector<8x1xf32>
      %c14_324 = arith.constant 14 : index
      %c0_325 = arith.constant 0 : index
      %c0_326 = arith.constant 0 : index
      %740 = vector.load %arg8[%c14_324, %c0_325, %c0_326] : memref<32x8x8xf32, #tpu.memory_space<vmem>>, vector<1x8x8xf32>
      %741 = vector.shape_cast %740 : vector<1x8x8xf32> to vector<8x8xf32>
      %742 = vector.broadcast %739 : vector<8x1xf32> to vector<8x8xf32>
      %743 = arith.mulf %742, %741 : vector<8x8xf32>
      %744 = arith.addf %738, %743 : vector<8x8xf32>
      %745 = vector.extract_strided_slice %647 {offsets = [0, 15], sizes = [8, 1], strides = [1, 1]} : vector<8x32xf32> to vector<8x1xf32>
      %c15_327 = arith.constant 15 : index
      %c0_328 = arith.constant 0 : index
      %c0_329 = arith.constant 0 : index
      %746 = vector.load %arg8[%c15_327, %c0_328, %c0_329] : memref<32x8x8xf32, #tpu.memory_space<vmem>>, vector<1x8x8xf32>
      %747 = vector.shape_cast %746 : vector<1x8x8xf32> to vector<8x8xf32>
      %748 = vector.broadcast %745 : vector<8x1xf32> to vector<8x8xf32>
      %749 = arith.mulf %748, %747 : vector<8x8xf32>
      %750 = arith.addf %744, %749 : vector<8x8xf32>
      %751 = vector.extract_strided_slice %647 {offsets = [0, 16], sizes = [8, 1], strides = [1, 1]} : vector<8x32xf32> to vector<8x1xf32>
      %c16_330 = arith.constant 16 : index
      %c0_331 = arith.constant 0 : index
      %c0_332 = arith.constant 0 : index
      %752 = vector.load %arg8[%c16_330, %c0_331, %c0_332] : memref<32x8x8xf32, #tpu.memory_space<vmem>>, vector<1x8x8xf32>
      %753 = vector.shape_cast %752 : vector<1x8x8xf32> to vector<8x8xf32>
      %754 = vector.broadcast %751 : vector<8x1xf32> to vector<8x8xf32>
      %755 = arith.mulf %754, %753 : vector<8x8xf32>
      %756 = arith.addf %750, %755 : vector<8x8xf32>
      %757 = vector.extract_strided_slice %647 {offsets = [0, 17], sizes = [8, 1], strides = [1, 1]} : vector<8x32xf32> to vector<8x1xf32>
      %c17_333 = arith.constant 17 : index
      %c0_334 = arith.constant 0 : index
      %c0_335 = arith.constant 0 : index
      %758 = vector.load %arg8[%c17_333, %c0_334, %c0_335] : memref<32x8x8xf32, #tpu.memory_space<vmem>>, vector<1x8x8xf32>
      %759 = vector.shape_cast %758 : vector<1x8x8xf32> to vector<8x8xf32>
      %760 = vector.broadcast %757 : vector<8x1xf32> to vector<8x8xf32>
      %761 = arith.mulf %760, %759 : vector<8x8xf32>
      %762 = arith.addf %756, %761 : vector<8x8xf32>
      %763 = vector.extract_strided_slice %647 {offsets = [0, 18], sizes = [8, 1], strides = [1, 1]} : vector<8x32xf32> to vector<8x1xf32>
      %c18_336 = arith.constant 18 : index
      %c0_337 = arith.constant 0 : index
      %c0_338 = arith.constant 0 : index
      %764 = vector.load %arg8[%c18_336, %c0_337, %c0_338] : memref<32x8x8xf32, #tpu.memory_space<vmem>>, vector<1x8x8xf32>
      %765 = vector.shape_cast %764 : vector<1x8x8xf32> to vector<8x8xf32>
      %766 = vector.broadcast %763 : vector<8x1xf32> to vector<8x8xf32>
      %767 = arith.mulf %766, %765 : vector<8x8xf32>
      %768 = arith.addf %762, %767 : vector<8x8xf32>
      %769 = vector.extract_strided_slice %647 {offsets = [0, 19], sizes = [8, 1], strides = [1, 1]} : vector<8x32xf32> to vector<8x1xf32>
      %c19_339 = arith.constant 19 : index
      %c0_340 = arith.constant 0 : index
      %c0_341 = arith.constant 0 : index
      %770 = vector.load %arg8[%c19_339, %c0_340, %c0_341] : memref<32x8x8xf32, #tpu.memory_space<vmem>>, vector<1x8x8xf32>
      %771 = vector.shape_cast %770 : vector<1x8x8xf32> to vector<8x8xf32>
      %772 = vector.broadcast %769 : vector<8x1xf32> to vector<8x8xf32>
      %773 = arith.mulf %772, %771 : vector<8x8xf32>
      %774 = arith.addf %768, %773 : vector<8x8xf32>
      %775 = vector.extract_strided_slice %647 {offsets = [0, 20], sizes = [8, 1], strides = [1, 1]} : vector<8x32xf32> to vector<8x1xf32>
      %c20_342 = arith.constant 20 : index
      %c0_343 = arith.constant 0 : index
      %c0_344 = arith.constant 0 : index
      %776 = vector.load %arg8[%c20_342, %c0_343, %c0_344] : memref<32x8x8xf32, #tpu.memory_space<vmem>>, vector<1x8x8xf32>
      %777 = vector.shape_cast %776 : vector<1x8x8xf32> to vector<8x8xf32>
      %778 = vector.broadcast %775 : vector<8x1xf32> to vector<8x8xf32>
      %779 = arith.mulf %778, %777 : vector<8x8xf32>
      %780 = arith.addf %774, %779 : vector<8x8xf32>
      %781 = vector.extract_strided_slice %647 {offsets = [0, 21], sizes = [8, 1], strides = [1, 1]} : vector<8x32xf32> to vector<8x1xf32>
      %c21_345 = arith.constant 21 : index
      %c0_346 = arith.constant 0 : index
      %c0_347 = arith.constant 0 : index
      %782 = vector.load %arg8[%c21_345, %c0_346, %c0_347] : memref<32x8x8xf32, #tpu.memory_space<vmem>>, vector<1x8x8xf32>
      %783 = vector.shape_cast %782 : vector<1x8x8xf32> to vector<8x8xf32>
      %784 = vector.broadcast %781 : vector<8x1xf32> to vector<8x8xf32>
      %785 = arith.mulf %784, %783 : vector<8x8xf32>
      %786 = arith.addf %780, %785 : vector<8x8xf32>
      %787 = vector.extract_strided_slice %647 {offsets = [0, 22], sizes = [8, 1], strides = [1, 1]} : vector<8x32xf32> to vector<8x1xf32>
      %c22_348 = arith.constant 22 : index
      %c0_349 = arith.constant 0 : index
      %c0_350 = arith.constant 0 : index
      %788 = vector.load %arg8[%c22_348, %c0_349, %c0_350] : memref<32x8x8xf32, #tpu.memory_space<vmem>>, vector<1x8x8xf32>
      %789 = vector.shape_cast %788 : vector<1x8x8xf32> to vector<8x8xf32>
      %790 = vector.broadcast %787 : vector<8x1xf32> to vector<8x8xf32>
      %791 = arith.mulf %790, %789 : vector<8x8xf32>
      %792 = arith.addf %786, %791 : vector<8x8xf32>
      %793 = vector.extract_strided_slice %647 {offsets = [0, 23], sizes = [8, 1], strides = [1, 1]} : vector<8x32xf32> to vector<8x1xf32>
      %c23_351 = arith.constant 23 : index
      %c0_352 = arith.constant 0 : index
      %c0_353 = arith.constant 0 : index
      %794 = vector.load %arg8[%c23_351, %c0_352, %c0_353] : memref<32x8x8xf32, #tpu.memory_space<vmem>>, vector<1x8x8xf32>
      %795 = vector.shape_cast %794 : vector<1x8x8xf32> to vector<8x8xf32>
      %796 = vector.broadcast %793 : vector<8x1xf32> to vector<8x8xf32>
      %797 = arith.mulf %796, %795 : vector<8x8xf32>
      %798 = arith.addf %792, %797 : vector<8x8xf32>
      %799 = vector.extract_strided_slice %647 {offsets = [0, 24], sizes = [8, 1], strides = [1, 1]} : vector<8x32xf32> to vector<8x1xf32>
      %c24_354 = arith.constant 24 : index
      %c0_355 = arith.constant 0 : index
      %c0_356 = arith.constant 0 : index
      %800 = vector.load %arg8[%c24_354, %c0_355, %c0_356] : memref<32x8x8xf32, #tpu.memory_space<vmem>>, vector<1x8x8xf32>
      %801 = vector.shape_cast %800 : vector<1x8x8xf32> to vector<8x8xf32>
      %802 = vector.broadcast %799 : vector<8x1xf32> to vector<8x8xf32>
      %803 = arith.mulf %802, %801 : vector<8x8xf32>
      %804 = arith.addf %798, %803 : vector<8x8xf32>
      %805 = vector.extract_strided_slice %647 {offsets = [0, 25], sizes = [8, 1], strides = [1, 1]} : vector<8x32xf32> to vector<8x1xf32>
      %c25_357 = arith.constant 25 : index
      %c0_358 = arith.constant 0 : index
      %c0_359 = arith.constant 0 : index
      %806 = vector.load %arg8[%c25_357, %c0_358, %c0_359] : memref<32x8x8xf32, #tpu.memory_space<vmem>>, vector<1x8x8xf32>
      %807 = vector.shape_cast %806 : vector<1x8x8xf32> to vector<8x8xf32>
      %808 = vector.broadcast %805 : vector<8x1xf32> to vector<8x8xf32>
      %809 = arith.mulf %808, %807 : vector<8x8xf32>
      %810 = arith.addf %804, %809 : vector<8x8xf32>
      %811 = vector.extract_strided_slice %647 {offsets = [0, 26], sizes = [8, 1], strides = [1, 1]} : vector<8x32xf32> to vector<8x1xf32>
      %c26_360 = arith.constant 26 : index
      %c0_361 = arith.constant 0 : index
      %c0_362 = arith.constant 0 : index
      %812 = vector.load %arg8[%c26_360, %c0_361, %c0_362] : memref<32x8x8xf32, #tpu.memory_space<vmem>>, vector<1x8x8xf32>
      %813 = vector.shape_cast %812 : vector<1x8x8xf32> to vector<8x8xf32>
      %814 = vector.broadcast %811 : vector<8x1xf32> to vector<8x8xf32>
      %815 = arith.mulf %814, %813 : vector<8x8xf32>
      %816 = arith.addf %810, %815 : vector<8x8xf32>
      %817 = vector.extract_strided_slice %647 {offsets = [0, 27], sizes = [8, 1], strides = [1, 1]} : vector<8x32xf32> to vector<8x1xf32>
      %c27_363 = arith.constant 27 : index
      %c0_364 = arith.constant 0 : index
      %c0_365 = arith.constant 0 : index
      %818 = vector.load %arg8[%c27_363, %c0_364, %c0_365] : memref<32x8x8xf32, #tpu.memory_space<vmem>>, vector<1x8x8xf32>
      %819 = vector.shape_cast %818 : vector<1x8x8xf32> to vector<8x8xf32>
      %820 = vector.broadcast %817 : vector<8x1xf32> to vector<8x8xf32>
      %821 = arith.mulf %820, %819 : vector<8x8xf32>
      %822 = arith.addf %816, %821 : vector<8x8xf32>
      %823 = vector.extract_strided_slice %647 {offsets = [0, 28], sizes = [8, 1], strides = [1, 1]} : vector<8x32xf32> to vector<8x1xf32>
      %c28_366 = arith.constant 28 : index
      %c0_367 = arith.constant 0 : index
      %c0_368 = arith.constant 0 : index
      %824 = vector.load %arg8[%c28_366, %c0_367, %c0_368] : memref<32x8x8xf32, #tpu.memory_space<vmem>>, vector<1x8x8xf32>
      %825 = vector.shape_cast %824 : vector<1x8x8xf32> to vector<8x8xf32>
      %826 = vector.broadcast %823 : vector<8x1xf32> to vector<8x8xf32>
      %827 = arith.mulf %826, %825 : vector<8x8xf32>
      %828 = arith.addf %822, %827 : vector<8x8xf32>
      %829 = vector.extract_strided_slice %647 {offsets = [0, 29], sizes = [8, 1], strides = [1, 1]} : vector<8x32xf32> to vector<8x1xf32>
      %c29_369 = arith.constant 29 : index
      %c0_370 = arith.constant 0 : index
      %c0_371 = arith.constant 0 : index
      %830 = vector.load %arg8[%c29_369, %c0_370, %c0_371] : memref<32x8x8xf32, #tpu.memory_space<vmem>>, vector<1x8x8xf32>
      %831 = vector.shape_cast %830 : vector<1x8x8xf32> to vector<8x8xf32>
      %832 = vector.broadcast %829 : vector<8x1xf32> to vector<8x8xf32>
      %833 = arith.mulf %832, %831 : vector<8x8xf32>
      %834 = arith.addf %828, %833 : vector<8x8xf32>
      %835 = vector.extract_strided_slice %647 {offsets = [0, 30], sizes = [8, 1], strides = [1, 1]} : vector<8x32xf32> to vector<8x1xf32>
      %c30_372 = arith.constant 30 : index
      %c0_373 = arith.constant 0 : index
      %c0_374 = arith.constant 0 : index
      %836 = vector.load %arg8[%c30_372, %c0_373, %c0_374] : memref<32x8x8xf32, #tpu.memory_space<vmem>>, vector<1x8x8xf32>
      %837 = vector.shape_cast %836 : vector<1x8x8xf32> to vector<8x8xf32>
      %838 = vector.broadcast %835 : vector<8x1xf32> to vector<8x8xf32>
      %839 = arith.mulf %838, %837 : vector<8x8xf32>
      %840 = arith.addf %834, %839 : vector<8x8xf32>
      %841 = vector.extract_strided_slice %647 {offsets = [0, 31], sizes = [8, 1], strides = [1, 1]} : vector<8x32xf32> to vector<8x1xf32>
      %c31_375 = arith.constant 31 : index
      %c0_376 = arith.constant 0 : index
      %c0_377 = arith.constant 0 : index
      %842 = vector.load %arg8[%c31_375, %c0_376, %c0_377] : memref<32x8x8xf32, #tpu.memory_space<vmem>>, vector<1x8x8xf32>
      %843 = vector.shape_cast %842 : vector<1x8x8xf32> to vector<8x8xf32>
      %844 = vector.broadcast %841 : vector<8x1xf32> to vector<8x8xf32>
      %845 = arith.mulf %844, %843 : vector<8x8xf32>
      %846 = arith.addf %840, %845 : vector<8x8xf32>
      %cst_378 = arith.constant 0.176776692 : f32
      %847 = vector.broadcast %cst_378 : f32 to vector<8x8xf32>
      %848 = arith.mulf %846, %847 : vector<8x8xf32>
      %849 = vector.broadcast %645 : i32 to vector<8x8xi32>
      %850 = arith.cmpi slt, %14, %849 : vector<8x8xi32>
      %cst_379 = arith.constant -1.000000e+06 : f32
      %851 = vector.broadcast %cst_379 : f32 to vector<8x8xf32>
      %852 = arith.select %850, %848, %851 : vector<8x8xi1>, vector<8x8xf32>
      %c1_380 = arith.constant 1 : index
      %c0_381 = arith.constant 0 : index
      %c0_382 = arith.constant 0 : index
      %853 = vector.load %arg11[%c1_380, %c0_381, %c0_382] : memref<2x8x1xf32, #tpu.memory_space<vmem>>, vector<1x8x1xf32>
      %854 = vector.shape_cast %853 : vector<1x8x1xf32> to vector<8x1xf32>
      %cst_383 = arith.constant dense<0xFF800000> : vector<8xf32>
      %855 = vector.multi_reduction <maximumf>, %852, %cst_383 [1] : vector<8x8xf32> to vector<8xf32>
      %856 = vector.shape_cast %855 : vector<8xf32> to vector<8x1xf32>
      %857 = arith.maximumf %854, %856 : vector<8x1xf32>
      %858 = arith.subf %854, %857 : vector<8x1xf32>
      %859 = math.exp %858 : vector<8x1xf32>
      %860 = vector.broadcast %857 : vector<8x1xf32> to vector<8x8xf32>
      %861 = arith.subf %852, %860 : vector<8x8xf32>
      %862 = math.exp %861 : vector<8x8xf32>
      %c1_384 = arith.constant 1 : index
      %c0_385 = arith.constant 0 : index
      %c0_386 = arith.constant 0 : index
      %863 = vector.load %arg12[%c1_384, %c0_385, %c0_386] : memref<2x8x1xf32, #tpu.memory_space<vmem>>, vector<1x8x1xf32>
      %864 = vector.shape_cast %863 : vector<1x8x1xf32> to vector<8x1xf32>
      %865 = arith.mulf %859, %864 : vector<8x1xf32>
      %cst_387 = arith.constant dense<0.000000e+00> : vector<8xf32>
      %866 = vector.multi_reduction <add>, %862, %cst_387 [1] : vector<8x8xf32> to vector<8xf32>
      %867 = vector.shape_cast %866 : vector<8xf32> to vector<8x1xf32>
      %868 = arith.addf %865, %867 : vector<8x1xf32>
      %c1_388 = arith.constant 1 : index
      %c0_389 = arith.constant 0 : index
      %c0_390 = arith.constant 0 : index
      %869 = vector.load %arg12[%c1_388, %c0_389, %c0_390] : memref<2x8x1xf32, #tpu.memory_space<vmem>>, vector<1x8x1xf32>
      %870 = vector.shape_cast %869 : vector<1x8x1xf32> to vector<8x1xf32>
      %871 = vector.shape_cast %868 : vector<8x1xf32> to vector<1x8x1xf32>
      tpu.vector_store %arg12[%c1_388, %c0_389, %c0_390], %871 {strides = array<i32>} : memref<2x8x1xf32, #tpu.memory_space<vmem>>, vector<1x8x1xf32>,
      %c1_391 = arith.constant 1 : index
      %c0_392 = arith.constant 0 : index
      %c0_393 = arith.constant 0 : index
      %872 = vector.load %arg13[%c1_391, %c0_392, %c0_393] : memref<2x8x32xf32, #tpu.memory_space<vmem>>, vector<1x8x32xf32>
      %873 = vector.shape_cast %872 : vector<1x8x32xf32> to vector<8x32xf32>
      %874 = vector.broadcast %859 : vector<8x1xf32> to vector<8x32xf32>
      %875 = arith.mulf %874, %873 : vector<8x32xf32>
      %cst_394 = arith.constant dense<0.000000e+00> : vector<8x32xf32>
      %876 = tpu.matmul %862, %649, %cst_394 {dimension_numbers = #tpu.dot_dimension_numbers<[1], [0], [0], [1], [0, 0, 1, 1], [], []>} : vector<8x8xf32>, vector<8x32xf32>, vector<8x32xf32> -> vector<8x32xf32>
      %877 = arith.addf %875, %876 : vector<8x32xf32>
      %c0_395 = arith.constant 0 : index
      %c0_396 = arith.constant 0 : index
      %c0_397 = arith.constant 0 : index
      %878 = vector.load %arg9[%c0_395, %c0_396, %c0_397] : memref<32x8x8xf32, #tpu.memory_space<vmem>>, vector<1x8x8xf32>
      %879 = vector.shape_cast %878 : vector<1x8x8xf32> to vector<8x8xf32>
      %880 = arith.mulf %862, %879 : vector<8x8xf32>
      %cst_398 = arith.constant dense<0.000000e+00> : vector<8xf32>
      %881 = vector.multi_reduction <add>, %880, %cst_398 [1] : vector<8x8xf32> to vector<8xf32>
      %882 = vector.shape_cast %881 : vector<8xf32> to vector<8x1xf32>
      %c0_i32_399 = arith.constant 0 : i32
      %883 = vector.broadcast %c0_i32_399 : i32 to vector<8x32xi32>
      %884 = arith.cmpi eq, %15, %883 : vector<8x32xi32>
      %cst_400 = arith.constant 0.000000e+00 : f32
      %885 = vector.shape_cast %882 : vector<8x1xf32> to vector<8x1xf32>
      %886 = vector.broadcast %885 : vector<8x1xf32> to vector<8x32xf32>
      %887 = vector.broadcast %cst_400 : f32 to vector<8x32xf32>
      %888 = arith.select %884, %886, %887 : vector<8x32xi1>, vector<8x32xf32>
      %889 = arith.addf %877, %888 : vector<8x32xf32>
      %c1_401 = arith.constant 1 : index
      %c0_402 = arith.constant 0 : index
      %c0_403 = arith.constant 0 : index
      %890 = vector.load %arg9[%c1_401, %c0_402, %c0_403] : memref<32x8x8xf32, #tpu.memory_space<vmem>>, vector<1x8x8xf32>
      %891 = vector.shape_cast %890 : vector<1x8x8xf32> to vector<8x8xf32>
      %892 = arith.mulf %862, %891 : vector<8x8xf32>
      %cst_404 = arith.constant dense<0.000000e+00> : vector<8xf32>
      %893 = vector.multi_reduction <add>, %892, %cst_404 [1] : vector<8x8xf32> to vector<8xf32>
      %894 = vector.shape_cast %893 : vector<8xf32> to vector<8x1xf32>
      %c1_i32_405 = arith.constant 1 : i32
      %895 = vector.broadcast %c1_i32_405 : i32 to vector<8x32xi32>
      %896 = arith.cmpi eq, %15, %895 : vector<8x32xi32>
      %cst_406 = arith.constant 0.000000e+00 : f32
      %897 = vector.shape_cast %894 : vector<8x1xf32> to vector<8x1xf32>
      %898 = vector.broadcast %897 : vector<8x1xf32> to vector<8x32xf32>
      %899 = vector.broadcast %cst_406 : f32 to vector<8x32xf32>
      %900 = arith.select %896, %898, %899 : vector<8x32xi1>, vector<8x32xf32>
      %901 = arith.addf %889, %900 : vector<8x32xf32>
      %c2_407 = arith.constant 2 : index
      %c0_408 = arith.constant 0 : index
      %c0_409 = arith.constant 0 : index
      %902 = vector.load %arg9[%c2_407, %c0_408, %c0_409] : memref<32x8x8xf32, #tpu.memory_space<vmem>>, vector<1x8x8xf32>
      %903 = vector.shape_cast %902 : vector<1x8x8xf32> to vector<8x8xf32>
      %904 = arith.mulf %862, %903 : vector<8x8xf32>
      %cst_410 = arith.constant dense<0.000000e+00> : vector<8xf32>
      %905 = vector.multi_reduction <add>, %904, %cst_410 [1] : vector<8x8xf32> to vector<8xf32>
      %906 = vector.shape_cast %905 : vector<8xf32> to vector<8x1xf32>
      %c2_i32_411 = arith.constant 2 : i32
      %907 = vector.broadcast %c2_i32_411 : i32 to vector<8x32xi32>
      %908 = arith.cmpi eq, %15, %907 : vector<8x32xi32>
      %cst_412 = arith.constant 0.000000e+00 : f32
      %909 = vector.shape_cast %906 : vector<8x1xf32> to vector<8x1xf32>
      %910 = vector.broadcast %909 : vector<8x1xf32> to vector<8x32xf32>
      %911 = vector.broadcast %cst_412 : f32 to vector<8x32xf32>
      %912 = arith.select %908, %910, %911 : vector<8x32xi1>, vector<8x32xf32>
      %913 = arith.addf %901, %912 : vector<8x32xf32>
      %c3_413 = arith.constant 3 : index
      %c0_414 = arith.constant 0 : index
      %c0_415 = arith.constant 0 : index
      %914 = vector.load %arg9[%c3_413, %c0_414, %c0_415] : memref<32x8x8xf32, #tpu.memory_space<vmem>>, vector<1x8x8xf32>
      %915 = vector.shape_cast %914 : vector<1x8x8xf32> to vector<8x8xf32>
      %916 = arith.mulf %862, %915 : vector<8x8xf32>
      %cst_416 = arith.constant dense<0.000000e+00> : vector<8xf32>
      %917 = vector.multi_reduction <add>, %916, %cst_416 [1] : vector<8x8xf32> to vector<8xf32>
      %918 = vector.shape_cast %917 : vector<8xf32> to vector<8x1xf32>
      %c3_i32_417 = arith.constant 3 : i32
      %919 = vector.broadcast %c3_i32_417 : i32 to vector<8x32xi32>
      %920 = arith.cmpi eq, %15, %919 : vector<8x32xi32>
      %cst_418 = arith.constant 0.000000e+00 : f32
      %921 = vector.shape_cast %918 : vector<8x1xf32> to vector<8x1xf32>
      %922 = vector.broadcast %921 : vector<8x1xf32> to vector<8x32xf32>
      %923 = vector.broadcast %cst_418 : f32 to vector<8x32xf32>
      %924 = arith.select %920, %922, %923 : vector<8x32xi1>, vector<8x32xf32>
      %925 = arith.addf %913, %924 : vector<8x32xf32>
      %c4_419 = arith.constant 4 : index
      %c0_420 = arith.constant 0 : index
      %c0_421 = arith.constant 0 : index
      %926 = vector.load %arg9[%c4_419, %c0_420, %c0_421] : memref<32x8x8xf32, #tpu.memory_space<vmem>>, vector<1x8x8xf32>
      %927 = vector.shape_cast %926 : vector<1x8x8xf32> to vector<8x8xf32>
      %928 = arith.mulf %862, %927 : vector<8x8xf32>
      %cst_422 = arith.constant dense<0.000000e+00> : vector<8xf32>
      %929 = vector.multi_reduction <add>, %928, %cst_422 [1] : vector<8x8xf32> to vector<8xf32>
      %930 = vector.shape_cast %929 : vector<8xf32> to vector<8x1xf32>
      %c4_i32_423 = arith.constant 4 : i32
      %931 = vector.broadcast %c4_i32_423 : i32 to vector<8x32xi32>
      %932 = arith.cmpi eq, %15, %931 : vector<8x32xi32>
      %cst_424 = arith.constant 0.000000e+00 : f32
      %933 = vector.shape_cast %930 : vector<8x1xf32> to vector<8x1xf32>
      %934 = vector.broadcast %933 : vector<8x1xf32> to vector<8x32xf32>
      %935 = vector.broadcast %cst_424 : f32 to vector<8x32xf32>
      %936 = arith.select %932, %934, %935 : vector<8x32xi1>, vector<8x32xf32>
      %937 = arith.addf %925, %936 : vector<8x32xf32>
      %c5_425 = arith.constant 5 : index
      %c0_426 = arith.constant 0 : index
      %c0_427 = arith.constant 0 : index
      %938 = vector.load %arg9[%c5_425, %c0_426, %c0_427] : memref<32x8x8xf32, #tpu.memory_space<vmem>>, vector<1x8x8xf32>
      %939 = vector.shape_cast %938 : vector<1x8x8xf32> to vector<8x8xf32>
      %940 = arith.mulf %862, %939 : vector<8x8xf32>
      %cst_428 = arith.constant dense<0.000000e+00> : vector<8xf32>
      %941 = vector.multi_reduction <add>, %940, %cst_428 [1] : vector<8x8xf32> to vector<8xf32>
      %942 = vector.shape_cast %941 : vector<8xf32> to vector<8x1xf32>
      %c5_i32_429 = arith.constant 5 : i32
      %943 = vector.broadcast %c5_i32_429 : i32 to vector<8x32xi32>
      %944 = arith.cmpi eq, %15, %943 : vector<8x32xi32>
      %cst_430 = arith.constant 0.000000e+00 : f32
      %945 = vector.shape_cast %942 : vector<8x1xf32> to vector<8x1xf32>
      %946 = vector.broadcast %945 : vector<8x1xf32> to vector<8x32xf32>
      %947 = vector.broadcast %cst_430 : f32 to vector<8x32xf32>
      %948 = arith.select %944, %946, %947 : vector<8x32xi1>, vector<8x32xf32>
      %949 = arith.addf %937, %948 : vector<8x32xf32>
      %c6_431 = arith.constant 6 : index
      %c0_432 = arith.constant 0 : index
      %c0_433 = arith.constant 0 : index
      %950 = vector.load %arg9[%c6_431, %c0_432, %c0_433] : memref<32x8x8xf32, #tpu.memory_space<vmem>>, vector<1x8x8xf32>
      %951 = vector.shape_cast %950 : vector<1x8x8xf32> to vector<8x8xf32>
      %952 = arith.mulf %862, %951 : vector<8x8xf32>
      %cst_434 = arith.constant dense<0.000000e+00> : vector<8xf32>
      %953 = vector.multi_reduction <add>, %952, %cst_434 [1] : vector<8x8xf32> to vector<8xf32>
      %954 = vector.shape_cast %953 : vector<8xf32> to vector<8x1xf32>
      %c6_i32_435 = arith.constant 6 : i32
      %955 = vector.broadcast %c6_i32_435 : i32 to vector<8x32xi32>
      %956 = arith.cmpi eq, %15, %955 : vector<8x32xi32>
      %cst_436 = arith.constant 0.000000e+00 : f32
      %957 = vector.shape_cast %954 : vector<8x1xf32> to vector<8x1xf32>
      %958 = vector.broadcast %957 : vector<8x1xf32> to vector<8x32xf32>
      %959 = vector.broadcast %cst_436 : f32 to vector<8x32xf32>
      %960 = arith.select %956, %958, %959 : vector<8x32xi1>, vector<8x32xf32>
      %961 = arith.addf %949, %960 : vector<8x32xf32>
      %c7_437 = arith.constant 7 : index
      %c0_438 = arith.constant 0 : index
      %c0_439 = arith.constant 0 : index
      %962 = vector.load %arg9[%c7_437, %c0_438, %c0_439] : memref<32x8x8xf32, #tpu.memory_space<vmem>>, vector<1x8x8xf32>
      %963 = vector.shape_cast %962 : vector<1x8x8xf32> to vector<8x8xf32>
      %964 = arith.mulf %862, %963 : vector<8x8xf32>
      %cst_440 = arith.constant dense<0.000000e+00> : vector<8xf32>
      %965 = vector.multi_reduction <add>, %964, %cst_440 [1] : vector<8x8xf32> to vector<8xf32>
      %966 = vector.shape_cast %965 : vector<8xf32> to vector<8x1xf32>
      %c7_i32_441 = arith.constant 7 : i32
      %967 = vector.broadcast %c7_i32_441 : i32 to vector<8x32xi32>
      %968 = arith.cmpi eq, %15, %967 : vector<8x32xi32>
      %cst_442 = arith.constant 0.000000e+00 : f32
      %969 = vector.shape_cast %966 : vector<8x1xf32> to vector<8x1xf32>
      %970 = vector.broadcast %969 : vector<8x1xf32> to vector<8x32xf32>
      %971 = vector.broadcast %cst_442 : f32 to vector<8x32xf32>
      %972 = arith.select %968, %970, %971 : vector<8x32xi1>, vector<8x32xf32>
      %973 = arith.addf %961, %972 : vector<8x32xf32>
      %c8_443 = arith.constant 8 : index
      %c0_444 = arith.constant 0 : index
      %c0_445 = arith.constant 0 : index
      %974 = vector.load %arg9[%c8_443, %c0_444, %c0_445] : memref<32x8x8xf32, #tpu.memory_space<vmem>>, vector<1x8x8xf32>
      %975 = vector.shape_cast %974 : vector<1x8x8xf32> to vector<8x8xf32>
      %976 = arith.mulf %862, %975 : vector<8x8xf32>
      %cst_446 = arith.constant dense<0.000000e+00> : vector<8xf32>
      %977 = vector.multi_reduction <add>, %976, %cst_446 [1] : vector<8x8xf32> to vector<8xf32>
      %978 = vector.shape_cast %977 : vector<8xf32> to vector<8x1xf32>
      %c8_i32_447 = arith.constant 8 : i32
      %979 = vector.broadcast %c8_i32_447 : i32 to vector<8x32xi32>
      %980 = arith.cmpi eq, %15, %979 : vector<8x32xi32>
      %cst_448 = arith.constant 0.000000e+00 : f32
      %981 = vector.shape_cast %978 : vector<8x1xf32> to vector<8x1xf32>
      %982 = vector.broadcast %981 : vector<8x1xf32> to vector<8x32xf32>
      %983 = vector.broadcast %cst_448 : f32 to vector<8x32xf32>
      %984 = arith.select %980, %982, %983 : vector<8x32xi1>, vector<8x32xf32>
      %985 = arith.addf %973, %984 : vector<8x32xf32>
      %c9_449 = arith.constant 9 : index
      %c0_450 = arith.constant 0 : index
      %c0_451 = arith.constant 0 : index
      %986 = vector.load %arg9[%c9_449, %c0_450, %c0_451] : memref<32x8x8xf32, #tpu.memory_space<vmem>>, vector<1x8x8xf32>
      %987 = vector.shape_cast %986 : vector<1x8x8xf32> to vector<8x8xf32>
      %988 = arith.mulf %862, %987 : vector<8x8xf32>
      %cst_452 = arith.constant dense<0.000000e+00> : vector<8xf32>
      %989 = vector.multi_reduction <add>, %988, %cst_452 [1] : vector<8x8xf32> to vector<8xf32>
      %990 = vector.shape_cast %989 : vector<8xf32> to vector<8x1xf32>
      %c9_i32_453 = arith.constant 9 : i32
      %991 = vector.broadcast %c9_i32_453 : i32 to vector<8x32xi32>
      %992 = arith.cmpi eq, %15, %991 : vector<8x32xi32>
      %cst_454 = arith.constant 0.000000e+00 : f32
      %993 = vector.shape_cast %990 : vector<8x1xf32> to vector<8x1xf32>
      %994 = vector.broadcast %993 : vector<8x1xf32> to vector<8x32xf32>
      %995 = vector.broadcast %cst_454 : f32 to vector<8x32xf32>
      %996 = arith.select %992, %994, %995 : vector<8x32xi1>, vector<8x32xf32>
      %997 = arith.addf %985, %996 : vector<8x32xf32>
      %c10_455 = arith.constant 10 : index
      %c0_456 = arith.constant 0 : index
      %c0_457 = arith.constant 0 : index
      %998 = vector.load %arg9[%c10_455, %c0_456, %c0_457] : memref<32x8x8xf32, #tpu.memory_space<vmem>>, vector<1x8x8xf32>
      %999 = vector.shape_cast %998 : vector<1x8x8xf32> to vector<8x8xf32>
      %1000 = arith.mulf %862, %999 : vector<8x8xf32>
      %cst_458 = arith.constant dense<0.000000e+00> : vector<8xf32>
      %1001 = vector.multi_reduction <add>, %1000, %cst_458 [1] : vector<8x8xf32> to vector<8xf32>
      %1002 = vector.shape_cast %1001 : vector<8xf32> to vector<8x1xf32>
      %c10_i32_459 = arith.constant 10 : i32
      %1003 = vector.broadcast %c10_i32_459 : i32 to vector<8x32xi32>
      %1004 = arith.cmpi eq, %15, %1003 : vector<8x32xi32>
      %cst_460 = arith.constant 0.000000e+00 : f32
      %1005 = vector.shape_cast %1002 : vector<8x1xf32> to vector<8x1xf32>
      %1006 = vector.broadcast %1005 : vector<8x1xf32> to vector<8x32xf32>
      %1007 = vector.broadcast %cst_460 : f32 to vector<8x32xf32>
      %1008 = arith.select %1004, %1006, %1007 : vector<8x32xi1>, vector<8x32xf32>
      %1009 = arith.addf %997, %1008 : vector<8x32xf32>
      %c11_461 = arith.constant 11 : index
      %c0_462 = arith.constant 0 : index
      %c0_463 = arith.constant 0 : index
      %1010 = vector.load %arg9[%c11_461, %c0_462, %c0_463] : memref<32x8x8xf32, #tpu.memory_space<vmem>>, vector<1x8x8xf32>
      %1011 = vector.shape_cast %1010 : vector<1x8x8xf32> to vector<8x8xf32>
      %1012 = arith.mulf %862, %1011 : vector<8x8xf32>
      %cst_464 = arith.constant dense<0.000000e+00> : vector<8xf32>
      %1013 = vector.multi_reduction <add>, %1012, %cst_464 [1] : vector<8x8xf32> to vector<8xf32>
      %1014 = vector.shape_cast %1013 : vector<8xf32> to vector<8x1xf32>
      %c11_i32_465 = arith.constant 11 : i32
      %1015 = vector.broadcast %c11_i32_465 : i32 to vector<8x32xi32>
      %1016 = arith.cmpi eq, %15, %1015 : vector<8x32xi32>
      %cst_466 = arith.constant 0.000000e+00 : f32
      %1017 = vector.shape_cast %1014 : vector<8x1xf32> to vector<8x1xf32>
      %1018 = vector.broadcast %1017 : vector<8x1xf32> to vector<8x32xf32>
      %1019 = vector.broadcast %cst_466 : f32 to vector<8x32xf32>
      %1020 = arith.select %1016, %1018, %1019 : vector<8x32xi1>, vector<8x32xf32>
      %1021 = arith.addf %1009, %1020 : vector<8x32xf32>
      %c12_467 = arith.constant 12 : index
      %c0_468 = arith.constant 0 : index
      %c0_469 = arith.constant 0 : index
      %1022 = vector.load %arg9[%c12_467, %c0_468, %c0_469] : memref<32x8x8xf32, #tpu.memory_space<vmem>>, vector<1x8x8xf32>
      %1023 = vector.shape_cast %1022 : vector<1x8x8xf32> to vector<8x8xf32>
      %1024 = arith.mulf %862, %1023 : vector<8x8xf32>
      %cst_470 = arith.constant dense<0.000000e+00> : vector<8xf32>
      %1025 = vector.multi_reduction <add>, %1024, %cst_470 [1] : vector<8x8xf32> to vector<8xf32>
      %1026 = vector.shape_cast %1025 : vector<8xf32> to vector<8x1xf32>
      %c12_i32_471 = arith.constant 12 : i32
      %1027 = vector.broadcast %c12_i32_471 : i32 to vector<8x32xi32>
      %1028 = arith.cmpi eq, %15, %1027 : vector<8x32xi32>
      %cst_472 = arith.constant 0.000000e+00 : f32
      %1029 = vector.shape_cast %1026 : vector<8x1xf32> to vector<8x1xf32>
      %1030 = vector.broadcast %1029 : vector<8x1xf32> to vector<8x32xf32>
      %1031 = vector.broadcast %cst_472 : f32 to vector<8x32xf32>
      %1032 = arith.select %1028, %1030, %1031 : vector<8x32xi1>, vector<8x32xf32>
      %1033 = arith.addf %1021, %1032 : vector<8x32xf32>
      %c13_473 = arith.constant 13 : index
      %c0_474 = arith.constant 0 : index
      %c0_475 = arith.constant 0 : index
      %1034 = vector.load %arg9[%c13_473, %c0_474, %c0_475] : memref<32x8x8xf32, #tpu.memory_space<vmem>>, vector<1x8x8xf32>
      %1035 = vector.shape_cast %1034 : vector<1x8x8xf32> to vector<8x8xf32>
      %1036 = arith.mulf %862, %1035 : vector<8x8xf32>
      %cst_476 = arith.constant dense<0.000000e+00> : vector<8xf32>
      %1037 = vector.multi_reduction <add>, %1036, %cst_476 [1] : vector<8x8xf32> to vector<8xf32>
      %1038 = vector.shape_cast %1037 : vector<8xf32> to vector<8x1xf32>
      %c13_i32_477 = arith.constant 13 : i32
      %1039 = vector.broadcast %c13_i32_477 : i32 to vector<8x32xi32>
      %1040 = arith.cmpi eq, %15, %1039 : vector<8x32xi32>
      %cst_478 = arith.constant 0.000000e+00 : f32
      %1041 = vector.shape_cast %1038 : vector<8x1xf32> to vector<8x1xf32>
      %1042 = vector.broadcast %1041 : vector<8x1xf32> to vector<8x32xf32>
      %1043 = vector.broadcast %cst_478 : f32 to vector<8x32xf32>
      %1044 = arith.select %1040, %1042, %1043 : vector<8x32xi1>, vector<8x32xf32>
      %1045 = arith.addf %1033, %1044 : vector<8x32xf32>
      %c14_479 = arith.constant 14 : index
      %c0_480 = arith.constant 0 : index
      %c0_481 = arith.constant 0 : index
      %1046 = vector.load %arg9[%c14_479, %c0_480, %c0_481] : memref<32x8x8xf32, #tpu.memory_space<vmem>>, vector<1x8x8xf32>
      %1047 = vector.shape_cast %1046 : vector<1x8x8xf32> to vector<8x8xf32>
      %1048 = arith.mulf %862, %1047 : vector<8x8xf32>
      %cst_482 = arith.constant dense<0.000000e+00> : vector<8xf32>
      %1049 = vector.multi_reduction <add>, %1048, %cst_482 [1] : vector<8x8xf32> to vector<8xf32>
      %1050 = vector.shape_cast %1049 : vector<8xf32> to vector<8x1xf32>
      %c14_i32_483 = arith.constant 14 : i32
      %1051 = vector.broadcast %c14_i32_483 : i32 to vector<8x32xi32>
      %1052 = arith.cmpi eq, %15, %1051 : vector<8x32xi32>
      %cst_484 = arith.constant 0.000000e+00 : f32
      %1053 = vector.shape_cast %1050 : vector<8x1xf32> to vector<8x1xf32>
      %1054 = vector.broadcast %1053 : vector<8x1xf32> to vector<8x32xf32>
      %1055 = vector.broadcast %cst_484 : f32 to vector<8x32xf32>
      %1056 = arith.select %1052, %1054, %1055 : vector<8x32xi1>, vector<8x32xf32>
      %1057 = arith.addf %1045, %1056 : vector<8x32xf32>
      %c15_485 = arith.constant 15 : index
      %c0_486 = arith.constant 0 : index
      %c0_487 = arith.constant 0 : index
      %1058 = vector.load %arg9[%c15_485, %c0_486, %c0_487] : memref<32x8x8xf32, #tpu.memory_space<vmem>>, vector<1x8x8xf32>
      %1059 = vector.shape_cast %1058 : vector<1x8x8xf32> to vector<8x8xf32>
      %1060 = arith.mulf %862, %1059 : vector<8x8xf32>
      %cst_488 = arith.constant dense<0.000000e+00> : vector<8xf32>
      %1061 = vector.multi_reduction <add>, %1060, %cst_488 [1] : vector<8x8xf32> to vector<8xf32>
      %1062 = vector.shape_cast %1061 : vector<8xf32> to vector<8x1xf32>
      %c15_i32_489 = arith.constant 15 : i32
      %1063 = vector.broadcast %c15_i32_489 : i32 to vector<8x32xi32>
      %1064 = arith.cmpi eq, %15, %1063 : vector<8x32xi32>
      %cst_490 = arith.constant 0.000000e+00 : f32
      %1065 = vector.shape_cast %1062 : vector<8x1xf32> to vector<8x1xf32>
      %1066 = vector.broadcast %1065 : vector<8x1xf32> to vector<8x32xf32>
      %1067 = vector.broadcast %cst_490 : f32 to vector<8x32xf32>
      %1068 = arith.select %1064, %1066, %1067 : vector<8x32xi1>, vector<8x32xf32>
      %1069 = arith.addf %1057, %1068 : vector<8x32xf32>
      %c16_491 = arith.constant 16 : index
      %c0_492 = arith.constant 0 : index
      %c0_493 = arith.constant 0 : index
      %1070 = vector.load %arg9[%c16_491, %c0_492, %c0_493] : memref<32x8x8xf32, #tpu.memory_space<vmem>>, vector<1x8x8xf32>
      %1071 = vector.shape_cast %1070 : vector<1x8x8xf32> to vector<8x8xf32>
      %1072 = arith.mulf %862, %1071 : vector<8x8xf32>
      %cst_494 = arith.constant dense<0.000000e+00> : vector<8xf32>
      %1073 = vector.multi_reduction <add>, %1072, %cst_494 [1] : vector<8x8xf32> to vector<8xf32>
      %1074 = vector.shape_cast %1073 : vector<8xf32> to vector<8x1xf32>
      %c16_i32_495 = arith.constant 16 : i32
      %1075 = vector.broadcast %c16_i32_495 : i32 to vector<8x32xi32>
      %1076 = arith.cmpi eq, %15, %1075 : vector<8x32xi32>
      %cst_496 = arith.constant 0.000000e+00 : f32
      %1077 = vector.shape_cast %1074 : vector<8x1xf32> to vector<8x1xf32>
      %1078 = vector.broadcast %1077 : vector<8x1xf32> to vector<8x32xf32>
      %1079 = vector.broadcast %cst_496 : f32 to vector<8x32xf32>
      %1080 = arith.select %1076, %1078, %1079 : vector<8x32xi1>, vector<8x32xf32>
      %1081 = arith.addf %1069, %1080 : vector<8x32xf32>
      %c17_497 = arith.constant 17 : index
      %c0_498 = arith.constant 0 : index
      %c0_499 = arith.constant 0 : index
      %1082 = vector.load %arg9[%c17_497, %c0_498, %c0_499] : memref<32x8x8xf32, #tpu.memory_space<vmem>>, vector<1x8x8xf32>
      %1083 = vector.shape_cast %1082 : vector<1x8x8xf32> to vector<8x8xf32>
      %1084 = arith.mulf %862, %1083 : vector<8x8xf32>
      %cst_500 = arith.constant dense<0.000000e+00> : vector<8xf32>
      %1085 = vector.multi_reduction <add>, %1084, %cst_500 [1] : vector<8x8xf32> to vector<8xf32>
      %1086 = vector.shape_cast %1085 : vector<8xf32> to vector<8x1xf32>
      %c17_i32_501 = arith.constant 17 : i32
      %1087 = vector.broadcast %c17_i32_501 : i32 to vector<8x32xi32>
      %1088 = arith.cmpi eq, %15, %1087 : vector<8x32xi32>
      %cst_502 = arith.constant 0.000000e+00 : f32
      %1089 = vector.shape_cast %1086 : vector<8x1xf32> to vector<8x1xf32>
      %1090 = vector.broadcast %1089 : vector<8x1xf32> to vector<8x32xf32>
      %1091 = vector.broadcast %cst_502 : f32 to vector<8x32xf32>
      %1092 = arith.select %1088, %1090, %1091 : vector<8x32xi1>, vector<8x32xf32>
      %1093 = arith.addf %1081, %1092 : vector<8x32xf32>
      %c18_503 = arith.constant 18 : index
      %c0_504 = arith.constant 0 : index
      %c0_505 = arith.constant 0 : index
      %1094 = vector.load %arg9[%c18_503, %c0_504, %c0_505] : memref<32x8x8xf32, #tpu.memory_space<vmem>>, vector<1x8x8xf32>
      %1095 = vector.shape_cast %1094 : vector<1x8x8xf32> to vector<8x8xf32>
      %1096 = arith.mulf %862, %1095 : vector<8x8xf32>
      %cst_506 = arith.constant dense<0.000000e+00> : vector<8xf32>
      %1097 = vector.multi_reduction <add>, %1096, %cst_506 [1] : vector<8x8xf32> to vector<8xf32>
      %1098 = vector.shape_cast %1097 : vector<8xf32> to vector<8x1xf32>
      %c18_i32_507 = arith.constant 18 : i32
      %1099 = vector.broadcast %c18_i32_507 : i32 to vector<8x32xi32>
      %1100 = arith.cmpi eq, %15, %1099 : vector<8x32xi32>
      %cst_508 = arith.constant 0.000000e+00 : f32
      %1101 = vector.shape_cast %1098 : vector<8x1xf32> to vector<8x1xf32>
      %1102 = vector.broadcast %1101 : vector<8x1xf32> to vector<8x32xf32>
      %1103 = vector.broadcast %cst_508 : f32 to vector<8x32xf32>
      %1104 = arith.select %1100, %1102, %1103 : vector<8x32xi1>, vector<8x32xf32>
      %1105 = arith.addf %1093, %1104 : vector<8x32xf32>
      %c19_509 = arith.constant 19 : index
      %c0_510 = arith.constant 0 : index
      %c0_511 = arith.constant 0 : index
      %1106 = vector.load %arg9[%c19_509, %c0_510, %c0_511] : memref<32x8x8xf32, #tpu.memory_space<vmem>>, vector<1x8x8xf32>
      %1107 = vector.shape_cast %1106 : vector<1x8x8xf32> to vector<8x8xf32>
      %1108 = arith.mulf %862, %1107 : vector<8x8xf32>
      %cst_512 = arith.constant dense<0.000000e+00> : vector<8xf32>
      %1109 = vector.multi_reduction <add>, %1108, %cst_512 [1] : vector<8x8xf32> to vector<8xf32>
      %1110 = vector.shape_cast %1109 : vector<8xf32> to vector<8x1xf32>
      %c19_i32_513 = arith.constant 19 : i32
      %1111 = vector.broadcast %c19_i32_513 : i32 to vector<8x32xi32>
      %1112 = arith.cmpi eq, %15, %1111 : vector<8x32xi32>
      %cst_514 = arith.constant 0.000000e+00 : f32
      %1113 = vector.shape_cast %1110 : vector<8x1xf32> to vector<8x1xf32>
      %1114 = vector.broadcast %1113 : vector<8x1xf32> to vector<8x32xf32>
      %1115 = vector.broadcast %cst_514 : f32 to vector<8x32xf32>
      %1116 = arith.select %1112, %1114, %1115 : vector<8x32xi1>, vector<8x32xf32>
      %1117 = arith.addf %1105, %1116 : vector<8x32xf32>
      %c20_515 = arith.constant 20 : index
      %c0_516 = arith.constant 0 : index
      %c0_517 = arith.constant 0 : index
      %1118 = vector.load %arg9[%c20_515, %c0_516, %c0_517] : memref<32x8x8xf32, #tpu.memory_space<vmem>>, vector<1x8x8xf32>
      %1119 = vector.shape_cast %1118 : vector<1x8x8xf32> to vector<8x8xf32>
      %1120 = arith.mulf %862, %1119 : vector<8x8xf32>
      %cst_518 = arith.constant dense<0.000000e+00> : vector<8xf32>
      %1121 = vector.multi_reduction <add>, %1120, %cst_518 [1] : vector<8x8xf32> to vector<8xf32>
      %1122 = vector.shape_cast %1121 : vector<8xf32> to vector<8x1xf32>
      %c20_i32_519 = arith.constant 20 : i32
      %1123 = vector.broadcast %c20_i32_519 : i32 to vector<8x32xi32>
      %1124 = arith.cmpi eq, %15, %1123 : vector<8x32xi32>
      %cst_520 = arith.constant 0.000000e+00 : f32
      %1125 = vector.shape_cast %1122 : vector<8x1xf32> to vector<8x1xf32>
      %1126 = vector.broadcast %1125 : vector<8x1xf32> to vector<8x32xf32>
      %1127 = vector.broadcast %cst_520 : f32 to vector<8x32xf32>
      %1128 = arith.select %1124, %1126, %1127 : vector<8x32xi1>, vector<8x32xf32>
      %1129 = arith.addf %1117, %1128 : vector<8x32xf32>
      %c21_521 = arith.constant 21 : index
      %c0_522 = arith.constant 0 : index
      %c0_523 = arith.constant 0 : index
      %1130 = vector.load %arg9[%c21_521, %c0_522, %c0_523] : memref<32x8x8xf32, #tpu.memory_space<vmem>>, vector<1x8x8xf32>
      %1131 = vector.shape_cast %1130 : vector<1x8x8xf32> to vector<8x8xf32>
      %1132 = arith.mulf %862, %1131 : vector<8x8xf32>
      %cst_524 = arith.constant dense<0.000000e+00> : vector<8xf32>
      %1133 = vector.multi_reduction <add>, %1132, %cst_524 [1] : vector<8x8xf32> to vector<8xf32>
      %1134 = vector.shape_cast %1133 : vector<8xf32> to vector<8x1xf32>
      %c21_i32_525 = arith.constant 21 : i32
      %1135 = vector.broadcast %c21_i32_525 : i32 to vector<8x32xi32>
      %1136 = arith.cmpi eq, %15, %1135 : vector<8x32xi32>
      %cst_526 = arith.constant 0.000000e+00 : f32
      %1137 = vector.shape_cast %1134 : vector<8x1xf32> to vector<8x1xf32>
      %1138 = vector.broadcast %1137 : vector<8x1xf32> to vector<8x32xf32>
      %1139 = vector.broadcast %cst_526 : f32 to vector<8x32xf32>
      %1140 = arith.select %1136, %1138, %1139 : vector<8x32xi1>, vector<8x32xf32>
      %1141 = arith.addf %1129, %1140 : vector<8x32xf32>
      %c22_527 = arith.constant 22 : index
      %c0_528 = arith.constant 0 : index
      %c0_529 = arith.constant 0 : index
      %1142 = vector.load %arg9[%c22_527, %c0_528, %c0_529] : memref<32x8x8xf32, #tpu.memory_space<vmem>>, vector<1x8x8xf32>
      %1143 = vector.shape_cast %1142 : vector<1x8x8xf32> to vector<8x8xf32>
      %1144 = arith.mulf %862, %1143 : vector<8x8xf32>
      %cst_530 = arith.constant dense<0.000000e+00> : vector<8xf32>
      %1145 = vector.multi_reduction <add>, %1144, %cst_530 [1] : vector<8x8xf32> to vector<8xf32>
      %1146 = vector.shape_cast %1145 : vector<8xf32> to vector<8x1xf32>
      %c22_i32_531 = arith.constant 22 : i32
      %1147 = vector.broadcast %c22_i32_531 : i32 to vector<8x32xi32>
      %1148 = arith.cmpi eq, %15, %1147 : vector<8x32xi32>
      %cst_532 = arith.constant 0.000000e+00 : f32
      %1149 = vector.shape_cast %1146 : vector<8x1xf32> to vector<8x1xf32>
      %1150 = vector.broadcast %1149 : vector<8x1xf32> to vector<8x32xf32>
      %1151 = vector.broadcast %cst_532 : f32 to vector<8x32xf32>
      %1152 = arith.select %1148, %1150, %1151 : vector<8x32xi1>, vector<8x32xf32>
      %1153 = arith.addf %1141, %1152 : vector<8x32xf32>
      %c23_533 = arith.constant 23 : index
      %c0_534 = arith.constant 0 : index
      %c0_535 = arith.constant 0 : index
      %1154 = vector.load %arg9[%c23_533, %c0_534, %c0_535] : memref<32x8x8xf32, #tpu.memory_space<vmem>>, vector<1x8x8xf32>
      %1155 = vector.shape_cast %1154 : vector<1x8x8xf32> to vector<8x8xf32>
      %1156 = arith.mulf %862, %1155 : vector<8x8xf32>
      %cst_536 = arith.constant dense<0.000000e+00> : vector<8xf32>
      %1157 = vector.multi_reduction <add>, %1156, %cst_536 [1] : vector<8x8xf32> to vector<8xf32>
      %1158 = vector.shape_cast %1157 : vector<8xf32> to vector<8x1xf32>
      %c23_i32_537 = arith.constant 23 : i32
      %1159 = vector.broadcast %c23_i32_537 : i32 to vector<8x32xi32>
      %1160 = arith.cmpi eq, %15, %1159 : vector<8x32xi32>
      %cst_538 = arith.constant 0.000000e+00 : f32
      %1161 = vector.shape_cast %1158 : vector<8x1xf32> to vector<8x1xf32>
      %1162 = vector.broadcast %1161 : vector<8x1xf32> to vector<8x32xf32>
      %1163 = vector.broadcast %cst_538 : f32 to vector<8x32xf32>
      %1164 = arith.select %1160, %1162, %1163 : vector<8x32xi1>, vector<8x32xf32>
      %1165 = arith.addf %1153, %1164 : vector<8x32xf32>
      %c24_539 = arith.constant 24 : index
      %c0_540 = arith.constant 0 : index
      %c0_541 = arith.constant 0 : index
      %1166 = vector.load %arg9[%c24_539, %c0_540, %c0_541] : memref<32x8x8xf32, #tpu.memory_space<vmem>>, vector<1x8x8xf32>
      %1167 = vector.shape_cast %1166 : vector<1x8x8xf32> to vector<8x8xf32>
      %1168 = arith.mulf %862, %1167 : vector<8x8xf32>
      %cst_542 = arith.constant dense<0.000000e+00> : vector<8xf32>
      %1169 = vector.multi_reduction <add>, %1168, %cst_542 [1] : vector<8x8xf32> to vector<8xf32>
      %1170 = vector.shape_cast %1169 : vector<8xf32> to vector<8x1xf32>
      %c24_i32_543 = arith.constant 24 : i32
      %1171 = vector.broadcast %c24_i32_543 : i32 to vector<8x32xi32>
      %1172 = arith.cmpi eq, %15, %1171 : vector<8x32xi32>
      %cst_544 = arith.constant 0.000000e+00 : f32
      %1173 = vector.shape_cast %1170 : vector<8x1xf32> to vector<8x1xf32>
      %1174 = vector.broadcast %1173 : vector<8x1xf32> to vector<8x32xf32>
      %1175 = vector.broadcast %cst_544 : f32 to vector<8x32xf32>
      %1176 = arith.select %1172, %1174, %1175 : vector<8x32xi1>, vector<8x32xf32>
      %1177 = arith.addf %1165, %1176 : vector<8x32xf32>
      %c25_545 = arith.constant 25 : index
      %c0_546 = arith.constant 0 : index
      %c0_547 = arith.constant 0 : index
      %1178 = vector.load %arg9[%c25_545, %c0_546, %c0_547] : memref<32x8x8xf32, #tpu.memory_space<vmem>>, vector<1x8x8xf32>
      %1179 = vector.shape_cast %1178 : vector<1x8x8xf32> to vector<8x8xf32>
      %1180 = arith.mulf %862, %1179 : vector<8x8xf32>
      %cst_548 = arith.constant dense<0.000000e+00> : vector<8xf32>
      %1181 = vector.multi_reduction <add>, %1180, %cst_548 [1] : vector<8x8xf32> to vector<8xf32>
      %1182 = vector.shape_cast %1181 : vector<8xf32> to vector<8x1xf32>
      %c25_i32_549 = arith.constant 25 : i32
      %1183 = vector.broadcast %c25_i32_549 : i32 to vector<8x32xi32>
      %1184 = arith.cmpi eq, %15, %1183 : vector<8x32xi32>
      %cst_550 = arith.constant 0.000000e+00 : f32
      %1185 = vector.shape_cast %1182 : vector<8x1xf32> to vector<8x1xf32>
      %1186 = vector.broadcast %1185 : vector<8x1xf32> to vector<8x32xf32>
      %1187 = vector.broadcast %cst_550 : f32 to vector<8x32xf32>
      %1188 = arith.select %1184, %1186, %1187 : vector<8x32xi1>, vector<8x32xf32>
      %1189 = arith.addf %1177, %1188 : vector<8x32xf32>
      %c26_551 = arith.constant 26 : index
      %c0_552 = arith.constant 0 : index
      %c0_553 = arith.constant 0 : index
      %1190 = vector.load %arg9[%c26_551, %c0_552, %c0_553] : memref<32x8x8xf32, #tpu.memory_space<vmem>>, vector<1x8x8xf32>
      %1191 = vector.shape_cast %1190 : vector<1x8x8xf32> to vector<8x8xf32>
      %1192 = arith.mulf %862, %1191 : vector<8x8xf32>
      %cst_554 = arith.constant dense<0.000000e+00> : vector<8xf32>
      %1193 = vector.multi_reduction <add>, %1192, %cst_554 [1] : vector<8x8xf32> to vector<8xf32>
      %1194 = vector.shape_cast %1193 : vector<8xf32> to vector<8x1xf32>
      %c26_i32_555 = arith.constant 26 : i32
      %1195 = vector.broadcast %c26_i32_555 : i32 to vector<8x32xi32>
      %1196 = arith.cmpi eq, %15, %1195 : vector<8x32xi32>
      %cst_556 = arith.constant 0.000000e+00 : f32
      %1197 = vector.shape_cast %1194 : vector<8x1xf32> to vector<8x1xf32>
      %1198 = vector.broadcast %1197 : vector<8x1xf32> to vector<8x32xf32>
      %1199 = vector.broadcast %cst_556 : f32 to vector<8x32xf32>
      %1200 = arith.select %1196, %1198, %1199 : vector<8x32xi1>, vector<8x32xf32>
      %1201 = arith.addf %1189, %1200 : vector<8x32xf32>
      %c27_557 = arith.constant 27 : index
      %c0_558 = arith.constant 0 : index
      %c0_559 = arith.constant 0 : index
      %1202 = vector.load %arg9[%c27_557, %c0_558, %c0_559] : memref<32x8x8xf32, #tpu.memory_space<vmem>>, vector<1x8x8xf32>
      %1203 = vector.shape_cast %1202 : vector<1x8x8xf32> to vector<8x8xf32>
      %1204 = arith.mulf %862, %1203 : vector<8x8xf32>
      %cst_560 = arith.constant dense<0.000000e+00> : vector<8xf32>
      %1205 = vector.multi_reduction <add>, %1204, %cst_560 [1] : vector<8x8xf32> to vector<8xf32>
      %1206 = vector.shape_cast %1205 : vector<8xf32> to vector<8x1xf32>
      %c27_i32_561 = arith.constant 27 : i32
      %1207 = vector.broadcast %c27_i32_561 : i32 to vector<8x32xi32>
      %1208 = arith.cmpi eq, %15, %1207 : vector<8x32xi32>
      %cst_562 = arith.constant 0.000000e+00 : f32
      %1209 = vector.shape_cast %1206 : vector<8x1xf32> to vector<8x1xf32>
      %1210 = vector.broadcast %1209 : vector<8x1xf32> to vector<8x32xf32>
      %1211 = vector.broadcast %cst_562 : f32 to vector<8x32xf32>
      %1212 = arith.select %1208, %1210, %1211 : vector<8x32xi1>, vector<8x32xf32>
      %1213 = arith.addf %1201, %1212 : vector<8x32xf32>
      %c28_563 = arith.constant 28 : index
      %c0_564 = arith.constant 0 : index
      %c0_565 = arith.constant 0 : index
      %1214 = vector.load %arg9[%c28_563, %c0_564, %c0_565] : memref<32x8x8xf32, #tpu.memory_space<vmem>>, vector<1x8x8xf32>
      %1215 = vector.shape_cast %1214 : vector<1x8x8xf32> to vector<8x8xf32>
      %1216 = arith.mulf %862, %1215 : vector<8x8xf32>
      %cst_566 = arith.constant dense<0.000000e+00> : vector<8xf32>
      %1217 = vector.multi_reduction <add>, %1216, %cst_566 [1] : vector<8x8xf32> to vector<8xf32>
      %1218 = vector.shape_cast %1217 : vector<8xf32> to vector<8x1xf32>
      %c28_i32_567 = arith.constant 28 : i32
      %1219 = vector.broadcast %c28_i32_567 : i32 to vector<8x32xi32>
      %1220 = arith.cmpi eq, %15, %1219 : vector<8x32xi32>
      %cst_568 = arith.constant 0.000000e+00 : f32
      %1221 = vector.shape_cast %1218 : vector<8x1xf32> to vector<8x1xf32>
      %1222 = vector.broadcast %1221 : vector<8x1xf32> to vector<8x32xf32>
      %1223 = vector.broadcast %cst_568 : f32 to vector<8x32xf32>
      %1224 = arith.select %1220, %1222, %1223 : vector<8x32xi1>, vector<8x32xf32>
      %1225 = arith.addf %1213, %1224 : vector<8x32xf32>
      %c29_569 = arith.constant 29 : index
      %c0_570 = arith.constant 0 : index
      %c0_571 = arith.constant 0 : index
      %1226 = vector.load %arg9[%c29_569, %c0_570, %c0_571] : memref<32x8x8xf32, #tpu.memory_space<vmem>>, vector<1x8x8xf32>
      %1227 = vector.shape_cast %1226 : vector<1x8x8xf32> to vector<8x8xf32>
      %1228 = arith.mulf %862, %1227 : vector<8x8xf32>
      %cst_572 = arith.constant dense<0.000000e+00> : vector<8xf32>
      %1229 = vector.multi_reduction <add>, %1228, %cst_572 [1] : vector<8x8xf32> to vector<8xf32>
      %1230 = vector.shape_cast %1229 : vector<8xf32> to vector<8x1xf32>
      %c29_i32_573 = arith.constant 29 : i32
      %1231 = vector.broadcast %c29_i32_573 : i32 to vector<8x32xi32>
      %1232 = arith.cmpi eq, %15, %1231 : vector<8x32xi32>
      %cst_574 = arith.constant 0.000000e+00 : f32
      %1233 = vector.shape_cast %1230 : vector<8x1xf32> to vector<8x1xf32>
      %1234 = vector.broadcast %1233 : vector<8x1xf32> to vector<8x32xf32>
      %1235 = vector.broadcast %cst_574 : f32 to vector<8x32xf32>
      %1236 = arith.select %1232, %1234, %1235 : vector<8x32xi1>, vector<8x32xf32>
      %1237 = arith.addf %1225, %1236 : vector<8x32xf32>
      %c30_575 = arith.constant 30 : index
      %c0_576 = arith.constant 0 : index
      %c0_577 = arith.constant 0 : index
      %1238 = vector.load %arg9[%c30_575, %c0_576, %c0_577] : memref<32x8x8xf32, #tpu.memory_space<vmem>>, vector<1x8x8xf32>
      %1239 = vector.shape_cast %1238 : vector<1x8x8xf32> to vector<8x8xf32>
      %1240 = arith.mulf %862, %1239 : vector<8x8xf32>
      %cst_578 = arith.constant dense<0.000000e+00> : vector<8xf32>
      %1241 = vector.multi_reduction <add>, %1240, %cst_578 [1] : vector<8x8xf32> to vector<8xf32>
      %1242 = vector.shape_cast %1241 : vector<8xf32> to vector<8x1xf32>
      %c30_i32_579 = arith.constant 30 : i32
      %1243 = vector.broadcast %c30_i32_579 : i32 to vector<8x32xi32>
      %1244 = arith.cmpi eq, %15, %1243 : vector<8x32xi32>
      %cst_580 = arith.constant 0.000000e+00 : f32
      %1245 = vector.shape_cast %1242 : vector<8x1xf32> to vector<8x1xf32>
      %1246 = vector.broadcast %1245 : vector<8x1xf32> to vector<8x32xf32>
      %1247 = vector.broadcast %cst_580 : f32 to vector<8x32xf32>
      %1248 = arith.select %1244, %1246, %1247 : vector<8x32xi1>, vector<8x32xf32>
      %1249 = arith.addf %1237, %1248 : vector<8x32xf32>
      %c31_581 = arith.constant 31 : index
      %c0_582 = arith.constant 0 : index
      %c0_583 = arith.constant 0 : index
      %1250 = vector.load %arg9[%c31_581, %c0_582, %c0_583] : memref<32x8x8xf32, #tpu.memory_space<vmem>>, vector<1x8x8xf32>
      %1251 = vector.shape_cast %1250 : vector<1x8x8xf32> to vector<8x8xf32>
      %1252 = arith.mulf %862, %1251 : vector<8x8xf32>
      %cst_584 = arith.constant dense<0.000000e+00> : vector<8xf32>
      %1253 = vector.multi_reduction <add>, %1252, %cst_584 [1] : vector<8x8xf32> to vector<8xf32>
      %1254 = vector.shape_cast %1253 : vector<8xf32> to vector<8x1xf32>
      %c31_i32_585 = arith.constant 31 : i32
      %1255 = vector.broadcast %c31_i32_585 : i32 to vector<8x32xi32>
      %1256 = arith.cmpi eq, %15, %1255 : vector<8x32xi32>
      %cst_586 = arith.constant 0.000000e+00 : f32
      %1257 = vector.shape_cast %1254 : vector<8x1xf32> to vector<8x1xf32>
      %1258 = vector.broadcast %1257 : vector<8x1xf32> to vector<8x32xf32>
      %1259 = vector.broadcast %cst_586 : f32 to vector<8x32xf32>
      %1260 = arith.select %1256, %1258, %1259 : vector<8x32xi1>, vector<8x32xf32>
      %1261 = arith.addf %1249, %1260 : vector<8x32xf32>
      %c1_587 = arith.constant 1 : index
      %c0_588 = arith.constant 0 : index
      %c0_589 = arith.constant 0 : index
      %1262 = vector.load %arg13[%c1_587, %c0_588, %c0_589] : memref<2x8x32xf32, #tpu.memory_space<vmem>>, vector<1x8x32xf32>
      %1263 = vector.shape_cast %1262 : vector<1x8x32xf32> to vector<8x32xf32>
      %1264 = vector.shape_cast %1261 : vector<8x32xf32> to vector<1x8x32xf32>
      tpu.vector_store %arg13[%c1_587, %c0_588, %c0_589], %1264 {strides = array<i32>} : memref<2x8x32xf32, #tpu.memory_space<vmem>>, vector<1x8x32xf32>,
      %c1_590 = arith.constant 1 : index
      %c0_591 = arith.constant 0 : index
      %c0_592 = arith.constant 0 : index
      %1265 = vector.load %arg11[%c1_590, %c0_591, %c0_592] : memref<2x8x1xf32, #tpu.memory_space<vmem>>, vector<1x8x1xf32>
      %1266 = vector.shape_cast %1265 : vector<1x8x1xf32> to vector<8x1xf32>
      %1267 = vector.shape_cast %857 : vector<8x1xf32> to vector<1x8x1xf32>
      tpu.vector_store %arg11[%c1_590, %c0_591, %c0_592], %1267 {strides = array<i32>} : memref<2x8x1xf32, #tpu.memory_space<vmem>>, vector<1x8x1xf32>,
    } else {
    }
    %c0_i32_2 = arith.constant 0 : i32
    %9 = arith.cmpi eq, %arg2, %c0_i32_2 : i32
    %10 = arith.extui %9 : i1 to i32
    %c0_i32_3 = arith.constant 0 : i32
    %11 = arith.cmpi ne, %10, %c0_i32_3 : i32
    scf.if %11 {
      %c0 = arith.constant 0 : index
      %c0_4 = arith.constant 0 : index
      %c0_5 = arith.constant 0 : index
      %12 = vector.load %arg13[%c0, %c0_4, %c0_5] : memref<2x8x32xf32, #tpu.memory_space<vmem>>, vector<1x8x32xf32>
      %13 = vector.shape_cast %12 : vector<1x8x32xf32> to vector<8x32xf32>
      %c0_6 = arith.constant 0 : index
      %c0_7 = arith.constant 0 : index
      %c0_8 = arith.constant 0 : index
      %14 = vector.load %arg12[%c0_6, %c0_7, %c0_8] : memref<2x8x1xf32, #tpu.memory_space<vmem>>, vector<1x8x1xf32>
      %15 = vector.shape_cast %14 : vector<1x8x1xf32> to vector<8x1xf32>
      %16 = vector.broadcast %15 : vector<8x1xf32> to vector<8x32xf32>
      %17 = arith.divf %13, %16 : vector<8x32xf32>
      %c0_9 = arith.constant 0 : index
      %c0_10 = arith.constant 0 : index
      %c0_11 = arith.constant 0 : index
      %18 = vector.load %arg10[%c0_9, %c0_10, %c0_11] : memref<2x8x32xf32, #tpu.memory_space<vmem>>, vector<1x8x32xf32>
      %19 = vector.shape_cast %18 : vector<1x8x32xf32> to vector<8x32xf32>
      %20 = vector.shape_cast %17 : vector<8x32xf32> to vector<1x8x32xf32>
      tpu.vector_store %arg10[%c0_9, %c0_10, %c0_11], %20 {strides = array<i32>} : memref<2x8x32xf32, #tpu.memory_space<vmem>>, vector<1x8x32xf32>,
      %c1 = arith.constant 1 : index
      %c0_12 = arith.constant 0 : index
      %c0_13 = arith.constant 0 : index
      %21 = vector.load %arg13[%c1, %c0_12, %c0_13] : memref<2x8x32xf32, #tpu.memory_space<vmem>>, vector<1x8x32xf32>
      %22 = vector.shape_cast %21 : vector<1x8x32xf32> to vector<8x32xf32>
      %c1_14 = arith.constant 1 : index
      %c0_15 = arith.constant 0 : index
      %c0_16 = arith.constant 0 : index
      %23 = vector.load %arg12[%c1_14, %c0_15, %c0_16] : memref<2x8x1xf32, #tpu.memory_space<vmem>>, vector<1x8x1xf32>
      %24 = vector.shape_cast %23 : vector<1x8x1xf32> to vector<8x1xf32>
      %25 = vector.broadcast %24 : vector<8x1xf32> to vector<8x32xf32>
      %26 = arith.divf %22, %25 : vector<8x32xf32>
      %c1_17 = arith.constant 1 : index
      %c0_18 = arith.constant 0 : index
      %c0_19 = arith.constant 0 : index
      %27 = vector.load %arg10[%c1_17, %c0_18, %c0_19] : memref<2x8x32xf32, #tpu.memory_space<vmem>>, vector<1x8x32xf32>
      %28 = vector.shape_cast %27 : vector<1x8x32xf32> to vector<8x32xf32>
      %29 = vector.shape_cast %26 : vector<8x32xf32> to vector<1x8x32xf32>
      tpu.vector_store %arg10[%c1_17, %c0_18, %c0_19], %29 {strides = array<i32>} : memref<2x8x32xf32, #tpu.memory_space<vmem>>, vector<1x8x32xf32>,
    } else {
    }
    return
  }
  func.func @transform_0(%arg0: i32, %arg1: i32, %arg2: i32, %arg3: memref<2xi32, #tpu.memory_space<smem>>, %arg4: memref<1xi32, #tpu.memory_space<smem>>) -> (i32, i32, i32) {
    %c0_i32 = arith.constant 0 : i32
    %c0_i32_0 = arith.constant 0 : i32
    return %arg1, %arg0, %c0_i32 : i32, i32, i32
  }
  func.func @transform_1(%arg0: i32, %arg1: i32, %arg2: i32, %arg3: memref<2xi32, #tpu.memory_space<smem>>, %arg4: memref<1xi32, #tpu.memory_space<smem>>) -> (i32, i32, i32) {
    %0 = arith.index_cast %arg1 : i32 to index
    %1 = memref.load %arg4[%0] : memref<1xi32, #tpu.memory_space<smem>>
    %c1_i32 = arith.constant 1 : i32
    %2 = arith.subi %1, %c1_i32 : i32
    %c0_i32 = arith.constant 0 : i32
    %3 = arith.maxsi %2, %c0_i32 : i32
    %4 = arith.minsi %arg2, %3 : i32
    %c0_i32_0 = arith.constant 0 : i32
    %c0_i32_1 = arith.constant 0 : i32
    return %arg1, %4, %c0_i32_0 : i32, i32, i32
  }
  func.func @transform_2(%arg0: i32, %arg1: i32, %arg2: i32, %arg3: memref<2xi32, #tpu.memory_space<smem>>, %arg4: memref<1xi32, #tpu.memory_space<smem>>) -> (i32, i32, i32) {
    %0 = arith.index_cast %arg1 : i32 to index
    %1 = memref.load %arg4[%0] : memref<1xi32, #tpu.memory_space<smem>>
    %c1_i32 = arith.constant 1 : i32
    %2 = arith.subi %1, %c1_i32 : i32
    %c0_i32 = arith.constant 0 : i32
    %3 = arith.maxsi %2, %c0_i32 : i32
    %4 = arith.minsi %arg2, %3 : i32
    %c0_i32_0 = arith.constant 0 : i32
    %c0_i32_1 = arith.constant 0 : i32
    return %arg1, %4, %c0_i32_0 : i32, i32, i32
  }
  func.func @transform_3(%arg0: i32, %arg1: i32, %arg2: i32, %arg3: memref<2xi32, #tpu.memory_space<smem>>, %arg4: memref<1xi32, #tpu.memory_space<smem>>) -> (i32, i32, i32) {
    %0 = arith.index_cast %arg1 : i32 to index
    %1 = memref.load %arg4[%0] : memref<1xi32, #tpu.memory_space<smem>>
    %c1_i32 = arith.constant 1 : i32
    %2 = arith.subi %1, %c1_i32 : i32
    %c0_i32 = arith.constant 0 : i32
    %3 = arith.maxsi %2, %c0_i32 : i32
    %4 = arith.minsi %arg2, %3 : i32
    %c0_i32_0 = arith.constant 0 : i32
    %c0_i32_1 = arith.constant 0 : i32
    return %c0_i32_0, %arg0, %4 : i32, i32, i32
  }
  func.func @transform_4(%arg0: i32, %arg1: i32, %arg2: i32, %arg3: memref<2xi32, #tpu.memory_space<smem>>, %arg4: memref<1xi32, #tpu.memory_space<smem>>) -> (i32, i32, i32) {
    %0 = arith.index_cast %arg1 : i32 to index
    %1 = memref.load %arg4[%0] : memref<1xi32, #tpu.memory_space<smem>>
    %c1_i32 = arith.constant 1 : i32
    %2 = arith.subi %1, %c1_i32 : i32
    %c0_i32 = arith.constant 0 : i32
    %3 = arith.maxsi %2, %c0_i32 : i32
    %4 = arith.minsi %arg2, %3 : i32
    %c0_i32_0 = arith.constant 0 : i32
    %c0_i32_1 = arith.constant 0 : i32
    return %c0_i32_0, %arg0, %4 : i32, i32, i32
  }
  func.func @transform_5(%arg0: i32, %arg1: i32, %arg2: i32, %arg3: memref<2xi32, #tpu.memory_space<smem>>, %arg4: memref<1xi32, #tpu.memory_space<smem>>) -> (i32, i32, i32) {
    %c0_i32 = arith.constant 0 : i32
    %c0_i32_0 = arith.constant 0 : i32
    return %arg1, %arg0, %c0_i32 : i32, i32, i32
  }
}

</mosaic_0001>

<llo_original>
// kernel: tpu_custom_call.1
$region0: #{tpu_custom_call.1}
  #allocation0 [shape = 'u32[]', space=smem, size = 0x4, offset = 0x4, fixed_abs, tag = 'smem constant byte address 0x4 - core index']
  #allocation1 [shape = 'u32[144,128]{1,0:T(1,128)}', space=vmem, size = 0x12000, scoped, tag = 'internal scratch']
  #allocation2 [shape = 'f32[2,8,1]{2,1,0:T(8,128)}', space=vmem, size = 0x2000, scoped, tag = 'scratch operand']
  #allocation3 [shape = 'f32[2,8,1]{2,1,0:T(8,128)}', space=vmem, size = 0x2000, scoped, tag = 'scratch operand']
  #allocation4 [shape = 'f32[2,8,32]{2,1,0:T(8,128)}', space=vmem, size = 0x2000, scoped, tag = 'scratch operand']
  #allocation5 [shape = 's32[1]{0}', space=sflag, size = 0x4, scoped, tag = 'scoped memory for tpu_custom_call.1']
  #allocation6 [shape = 'u8[512]{0}', space=smem, size = 0x200, scoped, tag = 'prefetched SMEM operand 0']
  #allocation7 [shape = 's32[1]{0:T(128)S(6)}', space=smem, size = 0x200, scoped, tag = 'prefetched SMEM operand 1']
  %s0 = inlined_call_operand.vmem [shape: s32[2], index: 0, kind: input, shape index: {}]
  %s1 = inlined_call_operand.<no memory space> [shape: s32[1], index: 1, kind: input, shape index: {}]
  %s2 = inlined_call_operand.vmem [shape: f32[2,8,32], index: 2, kind: input, shape index: {}]
  %s3 = inlined_call_operand.vmem [shape: f32[2,8,32], index: 3, kind: input, shape index: {}]
  %s4 = inlined_call_operand.vmem [shape: f32[2,8,32], index: 4, kind: input, shape index: {}]
  %s5 = inlined_call_operand.vmem [shape: f32[32,8,8], index: 5, kind: input, shape index: {}]
  %s6 = inlined_call_operand.vmem [shape: f32[32,8,8], index: 6, kind: input, shape index: {}]
  %s7 = inlined_call_operand.hbm [shape: f32[2,8,32], index: 7, kind: output, shape index: {}]
  %s8 = sld [smem:[#allocation0]]
  $region42: #{tpu_custom_call.1} parent=0
    _
  %s10 = ssub.s32 1, %s8
  %s11 = scalar_select 0, %s10, %s8
  %s12 = sshll.u32 %s0, 4
  %s13 = int_to_ptr.vmem [resolvable:$true] %s12
  %15 = dma.vmem_to_smem %s13, 16, [#allocation6], [#allocation5]
  %16 = sst [smem:[#allocation7]] %s1
  %17 = dma.done [#allocation5], 16
  %18 = sfence
  $region1: #{tpu_custom_call.1} parent=0
    #allocation8 [shape = 'u8[8192]{0}', space=vmem, size = 0x2000, scoped, tag = 'output window, operand 0, single buffered']
    #allocation9 [shape = 's32[1]{0}', space=sflag, size = 0x4, scoped, tag = 'scoped memory for tpu_custom_call.1']
    %19 = vsyncpa [#allocation9], 0
    // Predicated region
    $region2: #{tpu_custom_call.1} parent=1 // pred_check
      _
    $region3: #{tpu_custom_call.1} parent=1 // pred_check_branch
      %21 = sbr.rel (0) target = $region5
    $region4: #{tpu_custom_call.1} parent=1 // pred_region
      _
    $region5: #{tpu_custom_call.1} parent=1 // pred_fallthru
      _
    // Predicated region
    $region6: #{tpu_custom_call.1} parent=1 // pred_check
      _
    $region7: #{tpu_custom_call.1} parent=1 // pred_check_branch
      %23 = sbr.rel (0) target = $region9
    $region8: #{tpu_custom_call.1} parent=1 // pred_region
      %s24 = sld [smem:[#allocation7]]
      %s25 = ssub.s32 %s24, 1
      %p26 = scmp.gt.s32.totalorder %s25, 0
      %s27 = scalar_select %p26, %s25, 0
      %p28 = scmp.lt.s32.totalorder 0, %s27
      %s29 = scalar_select %p28, 0, %s27
      %p30 = scmp.lt.s32.totalorder %s29, 0
      %s31 = scalar_select %p30, %s29, 0
      %s32 = smul.addr %s31, 8
      %s33 = scalar_lea.vmem %s3, %s32
      %s34 = sld [smem:[#allocation7]]
      %s35 = ssub.s32 %s34, 1
      %p36 = scmp.gt.s32.totalorder %s35, 0
      %s37 = scalar_select %p36, %s35, 0
      %p38 = scmp.lt.s32.totalorder 0, %s37
      %s39 = scalar_select %p38, 0, %s37
    $region9: #{tpu_custom_call.1} parent=1 // pred_fallthru
      _
    // Predicated region
    $region10: #{tpu_custom_call.1} parent=1 // pred_check
      _
    $region11: #{tpu_custom_call.1} parent=1 // pred_check_branch
      %41 = sbr.rel (0) target = $region13
    $region12: #{tpu_custom_call.1} parent=1 // pred_region
      %s42 = sld [smem:[#allocation7]]
      %s43 = ssub.s32 %s42, 1
      %p44 = scmp.gt.s32.totalorder %s43, 0
      %s45 = scalar_select %p44, %s43, 0
      %p46 = scmp.lt.s32.totalorder 0, %s45
      %s47 = scalar_select %p46, 0, %s45
      %p48 = scmp.lt.s32.totalorder %s47, 0
      %s49 = scalar_select %p48, %s47, 0
      %s50 = smul.addr %s49, 8
      %s51 = scalar_lea.vmem %s4, %s50
      %s52 = sld [smem:[#allocation7]]
      %s53 = ssub.s32 %s52, 1
      %p54 = scmp.gt.s32.totalorder %s53, 0
      %s55 = scalar_select %p54, %s53, 0
      %p56 = scmp.lt.s32.totalorder 0, %s55
      %s57 = scalar_select %p56, 0, %s55
    $region13: #{tpu_custom_call.1} parent=1 // pred_fallthru
      _
    // Predicated region
    $region14: #{tpu_custom_call.1} parent=1 // pred_check
      _
    $region15: #{tpu_custom_call.1} parent=1 // pred_check_branch
      %59 = sbr.rel (0) target = $region17
    $region16: #{tpu_custom_call.1} parent=1 // pred_region
      %s60 = sld [smem:[#allocation7]]
      %s61 = ssub.s32 %s60, 1
      %p62 = scmp.gt.s32.totalorder %s61, 0
      %s63 = scalar_select %p62, %s61, 0
      %p64 = scmp.lt.s32.totalorder 0, %s63
      %s65 = scalar_select %p64, 0, %s63
      %p66 = scmp.lt.s32.totalorder %s65, 0
      %s67 = scalar_select %p66, %s65, 0
      %s68 = smul.addr %s67, 8
      %s69 = scalar_lea.vmem %s5, %s68
      %s70 = sld [smem:[#allocation7]]
      %s71 = ssub.s32 %s70, 1
      %p72 = scmp.gt.s32.totalorder %s71, 0
      %s73 = scalar_select %p72, %s71, 0
      %p74 = scmp.lt.s32.totalorder 0, %s73
      %s75 = scalar_select %p74, 0, %s73
    $region17: #{tpu_custom_call.1} parent=1 // pred_fallthru
      _
    // Predicated region
    $region18: #{tpu_custom_call.1} parent=1 // pred_check
      _
    $region19: #{tpu_custom_call.1} parent=1 // pred_check_branch
      %77 = sbr.rel (0) target = $region21
    $region20: #{tpu_custom_call.1} parent=1 // pred_region
      %s78 = sld [smem:[#allocation7]]
      %s79 = ssub.s32 %s78, 1
      %p80 = scmp.gt.s32.totalorder %s79, 0
      %s81 = scalar_select %p80, %s79, 0
      %p82 = scmp.lt.s32.totalorder 0, %s81
      %s83 = scalar_select %p82, 0, %s81
      %p84 = scmp.lt.s32.totalorder %s83, 0
      %s85 = scalar_select %p84, %s83, 0
      %s86 = smul.addr %s85, 8
      %s87 = scalar_lea.vmem %s6, %s86
      %s88 = sld [smem:[#allocation7]]
      %s89 = ssub.s32 %s88, 1
      %p90 = scmp.gt.s32.totalorder %s89, 0
      %s91 = scalar_select %p90, %s89, 0
      %p92 = scmp.lt.s32.totalorder 0, %s91
      %s93 = scalar_select %p92, 0, %s91
    $region21: #{tpu_custom_call.1} parent=1 // pred_fallthru
      _
    %s94 = sld [smem:[#allocation7]]
    %s95 = ssub.s32 %s94, 1
    %p96 = scmp.gt.s32.totalorder %s95, 0
    %s97 = scalar_select %p96, %s95, 0
    %p98 = scmp.lt.s32.totalorder 0, %s97
    %s99 = scalar_select %p98, 0, %s97
    %p100 = scmp.lt.s32.totalorder %s99, 0
    %s101 = scalar_select %p100, %s99, 0
    %s102 = smul.addr %s101, 8
    %s103 = scalar_lea.vmem %s3, %s102
    %s104 = sld [smem:[#allocation7]]
    %s105 = ssub.s32 %s104, 1
    %p106 = scmp.gt.s32.totalorder %s105, 0
    %s107 = scalar_select %p106, %s105, 0
    %p108 = scmp.lt.s32.totalorder 0, %s107
    %s109 = scalar_select %p108, 0, %s107
    %p110 = scmp.lt.s32.totalorder %s109, 0
    %s111 = scalar_select %p110, %s109, 0
    %s112 = smul.addr %s111, 8
    %s113 = scalar_lea.vmem %s4, %s112
    %s114 = sld [smem:[#allocation7]]
    %s115 = ssub.s32 %s114, 1
    %p116 = scmp.gt.s32.totalorder %s115, 0
    %s117 = scalar_select %p116, %s115, 0
    %p118 = scmp.lt.s32.totalorder 0, %s117
    %s119 = scalar_select %p118, 0, %s117
    %p120 = scmp.lt.s32.totalorder %s119, 0
    %s121 = scalar_select %p120, %s119, 0
    %s122 = smul.addr %s121, 8
    %s123 = scalar_lea.vmem %s5, %s122
    %s124 = sld [smem:[#allocation7]]
    %s125 = ssub.s32 %s124, 1
    %p126 = scmp.gt.s32.totalorder %s125, 0
    %s127 = scalar_select %p126, %s125, 0
    %p128 = scmp.lt.s32.totalorder 0, %s127
    %s129 = scalar_select %p128, 0, %s127
    %p130 = scmp.lt.s32.totalorder %s129, 0
    %s131 = scalar_select %p130, %s129, 0
    %s132 = smul.addr %s131, 8
    %s133 = scalar_lea.vmem %s6, %s132
    %s134 = sld [smem:[#allocation7]]
    %s135 = ssub.s32 %s134, 1
    %p136 = scmp.gt.s32.totalorder %s135, 0
    %s137 = scalar_select %p136, %s135, 0
    %p138 = scmp.lt.s32.totalorder 0, %s137
    %s139 = scalar_select %p138, 0, %s137
    %p140 = scmp.lt.s32.totalorder %s139, 0
    %s141 = scalar_select %p140, %s139, 0
    %s142 = smul.addr %s141, 8
    %s143 = scalar_lea.vmem %s3, %s142
    %s144 = sld [smem:[#allocation7]]
    %s145 = ssub.s32 %s144, 1
    %p146 = scmp.gt.s32.totalorder %s145, 0
    %s147 = scalar_select %p146, %s145, 0
    %p148 = scmp.lt.s32.totalorder 0, %s147
    %s149 = scalar_select %p148, 0, %s147
    %s150 = sld [smem:[#allocation7]]
    %s151 = ssub.s32 %s150, 1
    %p152 = scmp.gt.s32.totalorder %s151, 0
    %s153 = scalar_select %p152, %s151, 0
    %p154 = scmp.lt.s32.totalorder 0, %s153
    %s155 = scalar_select %p154, 0, %s153
    %p156 = scmp.lt.s32.totalorder %s155, 0
    %s157 = scalar_select %p156, %s155, 0
    %s158 = smul.addr %s157, 8
    %s159 = scalar_lea.vmem %s4, %s158
    %s160 = sld [smem:[#allocation7]]
    %s161 = ssub.s32 %s160, 1
    %p162 = scmp.gt.s32.totalorder %s161, 0
    %s163 = scalar_select %p162, %s161, 0
    %p164 = scmp.lt.s32.totalorder 0, %s163
    %s165 = scalar_select %p164, 0, %s163
    %s166 = sld [smem:[#allocation7]]
    %s167 = ssub.s32 %s166, 1
    %p168 = scmp.gt.s32.totalorder %s167, 0
    %s169 = scalar_select %p168, %s167, 0
    %p170 = scmp.lt.s32.totalorder 0, %s169
    %s171 = scalar_select %p170, 0, %s169
    %p172 = scmp.lt.s32.totalorder %s171, 0
    %s173 = scalar_select %p172, %s171, 0
    %s174 = smul.addr %s173, 8
    %s175 = scalar_lea.vmem %s5, %s174
    %s176 = sld [smem:[#allocation7]]
    %s177 = ssub.s32 %s176, 1
    %p178 = scmp.gt.s32.totalorder %s177, 0
    %s179 = scalar_select %p178, %s177, 0
    %p180 = scmp.lt.s32.totalorder 0, %s179
    %s181 = scalar_select %p180, 0, %s179
    %s182 = sld [smem:[#allocation7]]
    %s183 = ssub.s32 %s182, 1
    %p184 = scmp.gt.s32.totalorder %s183, 0
    %s185 = scalar_select %p184, %s183, 0
    %p186 = scmp.lt.s32.totalorder 0, %s185
    %s187 = scalar_select %p186, 0, %s185
    %p188 = scmp.lt.s32.totalorder %s187, 0
    %s189 = scalar_select %p188, %s187, 0
    %s190 = smul.addr %s189, 8
    %s191 = scalar_lea.vmem %s6, %s190
    %s192 = sld [smem:[#allocation7]]
    %s193 = ssub.s32 %s192, 1
    %p194 = scmp.gt.s32.totalorder %s193, 0
    %s195 = scalar_select %p194, %s193, 0
    %p196 = scmp.lt.s32.totalorder 0, %s195
    %s197 = scalar_select %p196, 0, %s195
    %s198 = smul.u32 0, 8
    %p199 = scmp.eq.s32.totalorder 0, 0
    // Predicated region
    $region22: #{tpu_custom_call.1} parent=1 // pred_check
      %p200 = pneg %p199
    $region23: #{tpu_custom_call.1} parent=1 // pred_check_branch
      %202 = sbr.rel (%p200) target = $region25
    $region24: #{tpu_custom_call.1} parent=1 // pred_region
      %vm203 = vcmask 7168
      %204 = vst.msk [vmem:[#allocation2] sm:$0xff] %vm203, -1e+30
      %205 = vst.msk [vmem:[#allocation2 + $0x8] sm:$0xff] %vm203, -1e+30
      %206 = vst.msk [vmem:[#allocation3] sm:$0xff] %vm203, 0.0
      %207 = vst.msk [vmem:[#allocation3 + $0x8] sm:$0xff] %vm203, 0.0
      %vm208 = vcmask 261120
      %209 = vst.msk [vmem:[#allocation4] sm:$0xff] %vm208, 0.0
      %210 = vst.msk [vmem:[#allocation4 + $0x8] sm:$0xff] %vm208, 0.0
    $region25: #{tpu_custom_call.1} parent=1 // pred_fallthru
      _
    %s211 = sld [smem:[#allocation7]]
    %p212 = scmp.lt.s32.totalorder 0, %s211
    // Predicated region
    $region26: #{tpu_custom_call.1} parent=1 // pred_check
      %p213 = pneg %p212
    $region27: #{tpu_custom_call.1} parent=1 // pred_check_branch
      %215 = sbr.rel (%p213) target = $region29
    $region28: #{tpu_custom_call.1} parent=1 // pred_region
      %v216 = vlaneseq
      %v217 = vand.u32 %v216, 127
      %v218 = vstv %s198
      %v219 = vadd.s32 %v218, %v217
      %s220 = smul.u32 0, 2
      %s221 = sld [smem:[#allocation6 + %s220]]
      %v222 = vld [vmem:[%s2] sm:$0xff]
      %v223 = vld [vmem:[%s159] sm:$0xff]
      %v224 = vld [vmem:[%s143] sm:$0xff]
      %v225 = vld [vmem:[%s175] sm:$0xff]
      %227 = vset.pattern.permute.xlu0 0
      %228 = vperm.xlu0 %227, %v222
      %v229 = vpop.permute.xlu0 %228
      %v231 = vmul.f32 %v229, %v225
      %vm232 = vcmask 261120
      %v233 = vsel %vm232, %v222, 0
      %v236 = vsel %vm232, %v224, 0
      %238 = vmatprep.subr.mxu0 0.0
      %239 = vmatpush1.xpose.msra.mxu0 0.0
      %240 = vmatprep.subr.mxu0 0.0
      %241 = vmatpush1.xpose.msra.mxu0 0.0
      %242 = vmatprep.subr.mxu0 0.0
      %243 = vmatpush1.xpose.msra.mxu0 0.0
      %244 = vmatprep.subr.mxu0 0.0
      %245 = vmatpush1.xpose.msra.mxu0 0.0
      %246 = vmatprep.subr.mxu0 0.0
      %247 = vmatpush1.xpose.msra.mxu0 0.0
      %248 = vmatprep.subr.mxu0 0.0
      %249 = vmatpush1.xpose.msra.mxu0 0.0
      %250 = vmatprep.subr.mxu0 0.0
      %251 = vmatpush1.xpose.msra.mxu0 0.0
      %252 = vmatprep.subr.mxu0 0.0
      %253 = vmatpush1.xpose.msra.mxu0 0.0
      %254 = vmatprep.subr.mxu0 0.0
      %255 = vmatpush1.xpose.msra.mxu0 0.0
      %256 = vmatprep.subr.mxu0 0.0
      %257 = vmatpush1.xpose.msra.mxu0 0.0
      %258 = vmatprep.subr.mxu0 0.0
      %259 = vmatpush1.xpose.msra.mxu0 0.0
      %260 = vmatprep.subr.mxu0 0.0
      %261 = vmatpush1.xpose.msra.mxu0 0.0
      %262 = vmatprep.subr.mxu0 0.0
      %263 = vmatpush1.xpose.msra.mxu0 0.0
      %264 = vmatprep.subr.mxu0 0.0
      %265 = vmatpush1.xpose.msra.mxu0 0.0
      %266 = vmatprep.subr.mxu0 0.0
      %267 = vmatpush1.xpose.msra.mxu0 0.0
      %268 = vmatprep.subr.mxu0 0.0
      %269 = vmatpush1.xpose.msra.mxu0 %v236
      %270 = vmatprep.subr.mxu0 0.0
      %271 = vmatpush2.xpose.msra.mxu0 0.0
      %272 = vmatprep.subr.mxu0 0.0
      %273 = vmatpush2.xpose.msra.mxu0 0.0
      %274 = vmatprep.subr.mxu0 0.0
      %275 = vmatpush2.xpose.msra.mxu0 0.0
      %276 = vmatprep.subr.mxu0 0.0
      %277 = vmatpush2.xpose.msra.mxu0 0.0
      %278 = vmatprep.subr.mxu0 0.0
      %279 = vmatpush2.xpose.msra.mxu0 0.0
      %280 = vmatprep.subr.mxu0 0.0
      %281 = vmatpush2.xpose.msra.mxu0 0.0
      %282 = vmatprep.subr.mxu0 0.0
      %283 = vmatpush2.xpose.msra.mxu0 0.0
      %284 = vmatprep.subr.mxu0 0.0
      %285 = vmatpush2.xpose.msra.mxu0 0.0
      %286 = vmatprep.subr.mxu0 0.0
      %287 = vmatpush2.xpose.msra.mxu0 0.0
      %288 = vmatprep.subr.mxu0 0.0
      %289 = vmatpush2.xpose.msra.mxu0 0.0
      %290 = vmatprep.subr.mxu0 0.0
      %291 = vmatpush2.xpose.msra.mxu0 0.0
      %292 = vmatprep.subr.mxu0 0.0
      %293 = vmatpush2.xpose.msra.mxu0 0.0
      %294 = vmatprep.subr.mxu0 0.0
      %295 = vmatpush2.xpose.msra.mxu0 0.0
      %296 = vmatprep.subr.mxu0 0.0
      %297 = vmatpush2.xpose.msra.mxu0 0.0
      %298 = vmatprep.subr.mxu0 0.0
      %299 = vmatpush2.xpose.msra.mxu0 0.0
      %300 = vmatprep.subr.mxu0 0.0
      %301 = vmatpush2.xpose.msra.mxu0 0.0
      %302 = vmatprep.mubr.f32.mxu0 0.0
      %303 = vmatmul.mubr.f32.gmra.mxu0 %v233
      %v304 = vpop.f32.mrf.mxu0
      %v305 = vadd.f32 %v231, %v304
      %v306 = vpop.f32.mrf.mxu0
      %307 = vdwg.mxu0
      %s308 = scalar_lea.vmem %s175, 8
      %v309 = vld [vmem:[%s308] sm:$0xff]
      %310 = vset.pattern.permute.xlu0 1
      %311 = vperm.xlu0 %310, %v222
      %v312 = vpop.permute.xlu0 %311
      %v314 = vmul.f32 %v312, %v309
      %v315 = vadd.f32 %v305, %v314
      %s316 = scalar_lea.vmem %s175, 16
      %v317 = vld [vmem:[%s316] sm:$0xff]
      %318 = vset.pattern.permute.xlu0 2
      %319 = vperm.xlu0 %318, %v222
      %v320 = vpop.permute.xlu0 %319
      %v322 = vmul.f32 %v320, %v317
      %v323 = vadd.f32 %v315, %v322
      %s324 = scalar_lea.vmem %s175, 24
      %v325 = vld [vmem:[%s324] sm:$0xff]
      %326 = vset.pattern.permute.xlu0 3
      %327 = vperm.xlu0 %326, %v222
      %v328 = vpop.permute.xlu0 %327
      %v330 = vmul.f32 %v328, %v325
      %v331 = vadd.f32 %v323, %v330
      %s332 = scalar_lea.vmem %s175, 32
      %v333 = vld [vmem:[%s332] sm:$0xff]
      %334 = vset.pattern.permute.xlu0 4
      %335 = vperm.xlu0 %334, %v222
      %v336 = vpop.permute.xlu0 %335
      %v338 = vmul.f32 %v336, %v333
      %v339 = vadd.f32 %v331, %v338
      %s340 = scalar_lea.vmem %s175, 40
      %v341 = vld [vmem:[%s340] sm:$0xff]
      %342 = vset.pattern.permute.xlu0 5
      %343 = vperm.xlu0 %342, %v222
      %v344 = vpop.permute.xlu0 %343
      %v346 = vmul.f32 %v344, %v341
      %v347 = vadd.f32 %v339, %v346
      %s348 = scalar_lea.vmem %s175, 48
      %v349 = vld [vmem:[%s348] sm:$0xff]
      %350 = vset.pattern.permute.xlu0 6
      %351 = vperm.xlu0 %350, %v222
      %v352 = vpop.permute.xlu0 %351
      %v354 = vmul.f32 %v352, %v349
      %v355 = vadd.f32 %v347, %v354
      %s356 = scalar_lea.vmem %s175, 56
      %v357 = vld [vmem:[%s356] sm:$0xff]
      %358 = vset.pattern.permute.xlu0 7
      %359 = vperm.xlu0 %358, %v222
      %v360 = vpop.permute.xlu0 %359
      %v362 = vmul.f32 %v360, %v357
      %v363 = vadd.f32 %v355, %v362
      %s364 = scalar_lea.vmem %s175, 64
      %v365 = vld [vmem:[%s364] sm:$0xff]
      %366 = vset.pattern.permute.xlu0 8
      %367 = vperm.xlu0 %366, %v222
      %v368 = vpop.permute.xlu0 %367
      %v370 = vmul.f32 %v368, %v365
      %v371 = vadd.f32 %v363, %v370
      %s372 = scalar_lea.vmem %s175, 72
      %v373 = vld [vmem:[%s372] sm:$0xff]
      %374 = vset.pattern.permute.xlu0 9
      %375 = vperm.xlu0 %374, %v222
      %v376 = vpop.permute.xlu0 %375
      %v378 = vmul.f32 %v376, %v373
      %v379 = vadd.f32 %v371, %v378
      %s380 = scalar_lea.vmem %s175, 80
      %v381 = vld [vmem:[%s380] sm:$0xff]
      %382 = vset.pattern.permute.xlu0 10
      %383 = vperm.xlu0 %382, %v222
      %v384 = vpop.permute.xlu0 %383
      %v386 = vmul.f32 %v384, %v381
      %v387 = vadd.f32 %v379, %v386
      %s388 = scalar_lea.vmem %s175, 88
      %v389 = vld [vmem:[%s388] sm:$0xff]
      %390 = vset.pattern.permute.xlu0 11
      %391 = vperm.xlu0 %390, %v222
      %v392 = vpop.permute.xlu0 %391
      %v394 = vmul.f32 %v392, %v389
      %v395 = vadd.f32 %v387, %v394
      %s396 = scalar_lea.vmem %s175, 96
      %v397 = vld [vmem:[%s396] sm:$0xff]
      %398 = vset.pattern.permute.xlu0 12
      %399 = vperm.xlu0 %398, %v222
      %v400 = vpop.permute.xlu0 %399
      %v402 = vmul.f32 %v400, %v397
      %v403 = vadd.f32 %v395, %v402
      %s404 = scalar_lea.vmem %s175, 104
      %v405 = vld [vmem:[%s404] sm:$0xff]
      %406 = vset.pattern.permute.xlu0 13
      %407 = vperm.xlu0 %406, %v222
      %v408 = vpop.permute.xlu0 %407
      %v410 = vmul.f32 %v408, %v405
      %v411 = vadd.f32 %v403, %v410
      %s412 = scalar_lea.vmem %s175, 112
      %v413 = vld [vmem:[%s412] sm:$0xff]
      %414 = vset.pattern.permute.xlu0 14
      %415 = vperm.xlu0 %414, %v222
      %v416 = vpop.permute.xlu0 %415
      %v418 = vmul.f32 %v416, %v413
      %v419 = vadd.f32 %v411, %v418
      %s420 = scalar_lea.vmem %s175, 120
      %v421 = vld [vmem:[%s420] sm:$0xff]
      %422 = vset.pattern.permute.xlu0 15
      %423 = vperm.xlu0 %422, %v222
      %v424 = vpop.permute.xlu0 %423
      %v426 = vmul.f32 %v424, %v421
      %v427 = vadd.f32 %v419, %v426
      %s428 = scalar_lea.vmem %s175, 128
      %v429 = vld [vmem:[%s428] sm:$0xff]
      %430 = vset.pattern.permute.xlu0 16
      %431 = vperm.xlu0 %430, %v222
      %v432 = vpop.permute.xlu0 %431
      %v434 = vmul.f32 %v432, %v429
      %v435 = vadd.f32 %v427, %v434
      %s436 = scalar_lea.vmem %s175, 136
      %v437 = vld [vmem:[%s436] sm:$0xff]
      %438 = vset.pattern.permute.xlu0 17
      %439 = vperm.xlu0 %438, %v222
      %v440 = vpop.permute.xlu0 %439
      %v442 = vmul.f32 %v440, %v437
      %v443 = vadd.f32 %v435, %v442
      %s444 = scalar_lea.vmem %s175, 144
      %v445 = vld [vmem:[%s444] sm:$0xff]
      %446 = vset.pattern.permute.xlu0 18
      %447 = vperm.xlu0 %446, %v222
      %v448 = vpop.permute.xlu0 %447
      %v450 = vmul.f32 %v448, %v445
      %v451 = vadd.f32 %v443, %v450
      %s452 = scalar_lea.vmem %s175, 152
      %v453 = vld [vmem:[%s452] sm:$0xff]
      %454 = vset.pattern.permute.xlu0 19
      %455 = vperm.xlu0 %454, %v222
      %v456 = vpop.permute.xlu0 %455
      %v458 = vmul.f32 %v456, %v453
      %v459 = vadd.f32 %v451, %v458
      %s460 = scalar_lea.vmem %s175, 160
      %v461 = vld [vmem:[%s460] sm:$0xff]
      %462 = vset.pattern.permute.xlu0 20
      %463 = vperm.xlu0 %462, %v222
      %v464 = vpop.permute.xlu0 %463
      %v466 = vmul.f32 %v464, %v461
      %v467 = vadd.f32 %v459, %v466
      %s468 = scalar_lea.vmem %s175, 168
      %v469 = vld [vmem:[%s468] sm:$0xff]
      %470 = vset.pattern.permute.xlu0 21
      %471 = vperm.xlu0 %470, %v222
      %v472 = vpop.permute.xlu0 %471
      %v474 = vmul.f32 %v472, %v469
      %v475 = vadd.f32 %v467, %v474
      %s476 = scalar_lea.vmem %s175, 176
      %v477 = vld [vmem:[%s476] sm:$0xff]
      %478 = vset.pattern.permute.xlu0 22
      %479 = vperm.xlu0 %478, %v222
      %v480 = vpop.permute.xlu0 %479
      %v482 = vmul.f32 %v480, %v477
      %v483 = vadd.f32 %v475, %v482
      %s484 = scalar_lea.vmem %s175, 184
      %v485 = vld [vmem:[%s484] sm:$0xff]
      %486 = vset.pattern.permute.xlu0 23
      %487 = vperm.xlu0 %486, %v222
      %v488 = vpop.permute.xlu0 %487
      %v490 = vmul.f32 %v488, %v485
      %v491 = vadd.f32 %v483, %v490
      %s492 = scalar_lea.vmem %s175, 192
      %v493 = vld [vmem:[%s492] sm:$0xff]
      %494 = vset.pattern.permute.xlu0 24
      %495 = vperm.xlu0 %494, %v222
      %v496 = vpop.permute.xlu0 %495
      %v498 = vmul.f32 %v496, %v493
      %v499 = vadd.f32 %v491, %v498
      %s500 = scalar_lea.vmem %s175, 200
      %v501 = vld [vmem:[%s500] sm:$0xff]
      %502 = vset.pattern.permute.xlu0 25
      %503 = vperm.xlu0 %502, %v222
      %v504 = vpop.permute.xlu0 %503
      %v506 = vmul.f32 %v504, %v501
      %v507 = vadd.f32 %v499, %v506
      %s508 = scalar_lea.vmem %s175, 208
      %v509 = vld [vmem:[%s508] sm:$0xff]
      %510 = vset.pattern.permute.xlu0 26
      %511 = vperm.xlu0 %510, %v222
      %v512 = vpop.permute.xlu0 %511
      %v514 = vmul.f32 %v512, %v509
      %v515 = vadd.f32 %v507, %v514
      %s516 = scalar_lea.vmem %s175, 216
      %v517 = vld [vmem:[%s516] sm:$0xff]
      %518 = vset.pattern.permute.xlu0 27
      %519 = vperm.xlu0 %518, %v222
      %v520 = vpop.permute.xlu0 %519
      %v522 = vmul.f32 %v520, %v517
      %v523 = vadd.f32 %v515, %v522
      %s524 = scalar_lea.vmem %s175, 224
      %v525 = vld [vmem:[%s524] sm:$0xff]
      %526 = vset.pattern.permute.xlu0 28
      %527 = vperm.xlu0 %526, %v222
      %v528 = vpop.permute.xlu0 %527
      %v530 = vmul.f32 %v528, %v525
      %v531 = vadd.f32 %v523, %v530
      %s532 = scalar_lea.vmem %s175, 232
      %v533 = vld [vmem:[%s532] sm:$0xff]
      %534 = vset.pattern.permute.xlu0 29
      %535 = vperm.xlu0 %534, %v222
      %v536 = vpop.permute.xlu0 %535
      %v538 = vmul.f32 %v536, %v533
      %v539 = vadd.f32 %v531, %v538
      %s540 = scalar_lea.vmem %s175, 240
      %v541 = vld [vmem:[%s540] sm:$0xff]
      %542 = vset.pattern.permute.xlu0 30
      %543 = vperm.xlu0 %542, %v222
      %v544 = vpop.permute.xlu0 %543
      %v546 = vmul.f32 %v544, %v541
      %v547 = vadd.f32 %v539, %v546
      %s548 = scalar_lea.vmem %s175, 248
      %v549 = vld [vmem:[%s548] sm:$0xff]
      %550 = vset.pattern.permute.xlu0 31
      %551 = vperm.xlu0 %550, %v222
      %v552 = vpop.permute.xlu0 %551
      %v554 = vmul.f32 %v552, %v549
      %v555 = vadd.f32 %v547, %v554
      %v556 = vmul.f32 %v555, 0.17677669
      %v557 = vstv %s221
      %vm558 = vcmp.lt.s32.totalorder %v219, %v557
      %v559 = vsel %vm558, %v556, -1000000.0
      %v560 = vld [vmem:[#allocation2] sm:$0xff]
      %vm561 = vcmask 64512
      %v562 = vsel %vm561, %v559, -inf
      %563 = vmax.xlane.f32.xlu0 %v562
      %v564 = vpop.xlane.xlu0 %563
      %v565 = vmax.f32 %v560, %v564
      %v566 = vsub.f32 %v560, %v565
      %v567 = vmul.f32 %v566, 1.442695
      %v568 = vpow.pop %v567
      %570 = vset.pattern.permute.xlu0 0
      %571 = vperm.xlu0 %570, %v565
      %v572 = vpop.permute.xlu0 %571
      %v574 = vsub.f32 %v559, %v572
      %v575 = vmul.f32 %v574, 1.442695
      %v576 = vpow.pop %v575
      %v577 = vld [vmem:[#allocation3] sm:$0xff]
      %v578 = vmul.f32 %v568, %v577
      %v579 = vsel %vm561, %v576, 0.0
      %580 = vadd.xlane.f32.xlu0 %v579
      %v581 = vpop.xlane.xlu0 %580
      %v582 = vadd.f32 %v578, %v581
      %vm583 = vcmask 7168
      %584 = vst.msk [vmem:[#allocation3] sm:$0xff] %vm583, %v582
      %v585 = vld [vmem:[#allocation4] sm:$0xff]
      %587 = vset.pattern.permute.xlu0 0
      %588 = vperm.xlu0 %587, %v568
      %v589 = vpop.permute.xlu0 %588
      %v591 = vmul.f32 %v589, %v585
      %v593 = vsel %vm561, %v576, 0
      %595 = vmatprep.subr.mxu0 0.0
      %596 = vmatpush1.msra.mxu0 0.0
      %597 = vmatprep.subr.mxu0 0.0
      %598 = vmatpush1.msra.mxu0 0.0
      %599 = vmatprep.subr.mxu0 0.0
      %600 = vmatpush1.msra.mxu0 0.0
      %601 = vmatprep.subr.mxu0 0.0
      %602 = vmatpush1.msra.mxu0 0.0
      %603 = vmatprep.subr.mxu0 0.0
      %604 = vmatpush1.msra.mxu0 0.0
      %605 = vmatprep.subr.mxu0 0.0
      %606 = vmatpush1.msra.mxu0 0.0
      %607 = vmatprep.subr.mxu0 0.0
      %608 = vmatpush1.msra.mxu0 0.0
      %609 = vmatprep.subr.mxu0 0.0
      %610 = vmatpush1.msra.mxu0 0.0
      %611 = vmatprep.subr.mxu0 0.0
      %612 = vmatpush1.msra.mxu0 0.0
      %613 = vmatprep.subr.mxu0 0.0
      %614 = vmatpush1.msra.mxu0 0.0
      %615 = vmatprep.subr.mxu0 0.0
      %616 = vmatpush1.msra.mxu0 0.0
      %617 = vmatprep.subr.mxu0 0.0
      %618 = vmatpush1.msra.mxu0 0.0
      %619 = vmatprep.subr.mxu0 0.0
      %620 = vmatpush1.msra.mxu0 0.0
      %621 = vmatprep.subr.mxu0 0.0
      %622 = vmatpush1.msra.mxu0 0.0
      %623 = vmatprep.subr.mxu0 0.0
      %624 = vmatpush1.msra.mxu0 0.0
      %625 = vmatprep.subr.mxu0 0.0
      %626 = vmatpush1.msra.mxu0 %v223
      %627 = vmatprep.subr.mxu0 0.0
      %628 = vmatpush2.msra.mxu0 0.0
      %629 = vmatprep.subr.mxu0 0.0
      %630 = vmatpush2.msra.mxu0 0.0
      %631 = vmatprep.subr.mxu0 0.0
      %632 = vmatpush2.msra.mxu0 0.0
      %633 = vmatprep.subr.mxu0 0.0
      %634 = vmatpush2.msra.mxu0 0.0
      %635 = vmatprep.subr.mxu0 0.0
      %636 = vmatpush2.msra.mxu0 0.0
      %637 = vmatprep.subr.mxu0 0.0
      %638 = vmatpush2.msra.mxu0 0.0
      %639 = vmatprep.subr.mxu0 0.0
      %640 = vmatpush2.msra.mxu0 0.0
      %641 = vmatprep.subr.mxu0 0.0
      %642 = vmatpush2.msra.mxu0 0.0
      %643 = vmatprep.subr.mxu0 0.0
      %644 = vmatpush2.msra.mxu0 0.0
      %645 = vmatprep.subr.mxu0 0.0
      %646 = vmatpush2.msra.mxu0 0.0
      %647 = vmatprep.subr.mxu0 0.0
      %648 = vmatpush2.msra.mxu0 0.0
      %649 = vmatprep.subr.mxu0 0.0
      %650 = vmatpush2.msra.mxu0 0.0
      %651 = vmatprep.subr.mxu0 0.0
      %652 = vmatpush2.msra.mxu0 0.0
      %653 = vmatprep.subr.mxu0 0.0
      %654 = vmatpush2.msra.mxu0 0.0
      %655 = vmatprep.subr.mxu0 0.0
      %656 = vmatpush2.msra.mxu0 0.0
      %657 = vmatprep.subr.mxu0 0.0
      %658 = vmatpush2.msra.mxu0 0.0
      %659 = vmatprep.mubr.f32.mxu0 0.0
      %660 = vmatmul.mubr.f32.gmra.mxu0 %v593
      %v661 = vpop.f32.mrf.mxu0
      %v662 = vadd.f32 0.0, %v661
      %v663 = vpop.f32.mrf.mxu0
      %664 = vdwg.mxu0
      %v665 = vadd.f32 %v591, %v662
      %v666 = vld [vmem:[%s191] sm:$0xff]
      %v667 = vmul.f32 %v576, %v666
      %v668 = vsel %vm561, %v667, 0.0
      %669 = vadd.xlane.f32.xlu0 %v668
      %v670 = vpop.xlane.xlu0 %669
      %vm671 = vcmp.eq.s32.totalorder %v217, 0
      %v672 = vsel %vm671, %v670, 0.0
      %v673 = vadd.f32 %v665, %v672
      %s674 = scalar_lea.vmem %s191, 8
      %v675 = vld [vmem:[%s674] sm:$0xff]
      %v676 = vmul.f32 %v576, %v675
      %v677 = vsel %vm561, %v676, 0.0
      %678 = vadd.xlane.f32.xlu0 %v677
      %v679 = vpop.xlane.xlu0 %678
      %vm680 = vcmp.eq.s32.totalorder %v217, 1
      %v681 = vsel %vm680, %v679, 0.0
      %v682 = vadd.f32 %v673, %v681
      %s683 = scalar_lea.vmem %s191, 16
      %v684 = vld [vmem:[%s683] sm:$0xff]
      %v685 = vmul.f32 %v576, %v684
      %v686 = vsel %vm561, %v685, 0.0
      %687 = vadd.xlane.f32.xlu0 %v686
      %v688 = vpop.xlane.xlu0 %687
      %vm689 = vcmp.eq.s32.totalorder %v217, 2
      %v690 = vsel %vm689, %v688, 0.0
      %v691 = vadd.f32 %v682, %v690
      %s692 = scalar_lea.vmem %s191, 24
      %v693 = vld [vmem:[%s692] sm:$0xff]
      %v694 = vmul.f32 %v576, %v693
      %v695 = vsel %vm561, %v694, 0.0
      %696 = vadd.xlane.f32.xlu0 %v695
      %v697 = vpop.xlane.xlu0 %696
      %vm698 = vcmp.eq.s32.totalorder %v217, 3
      %v699 = vsel %vm698, %v697, 0.0
      %v700 = vadd.f32 %v691, %v699
      %s701 = scalar_lea.vmem %s191, 32
      %v702 = vld [vmem:[%s701] sm:$0xff]
      %v703 = vmul.f32 %v576, %v702
      %v704 = vsel %vm561, %v703, 0.0
      %705 = vadd.xlane.f32.xlu0 %v704
      %v706 = vpop.xlane.xlu0 %705
      %vm707 = vcmp.eq.s32.totalorder %v217, 4
      %v708 = vsel %vm707, %v706, 0.0
      %v709 = vadd.f32 %v700, %v708
      %s710 = scalar_lea.vmem %s191, 40
      %v711 = vld [vmem:[%s710] sm:$0xff]
      %v712 = vmul.f32 %v576, %v711
      %v713 = vsel %vm561, %v712, 0.0
      %714 = vadd.xlane.f32.xlu0 %v713
      %v715 = vpop.xlane.xlu0 %714
      %vm716 = vcmp.eq.s32.totalorder %v217, 5
      %v717 = vsel %vm716, %v715, 0.0
      %v718 = vadd.f32 %v709, %v717
      %s719 = scalar_lea.vmem %s191, 48
      %v720 = vld [vmem:[%s719] sm:$0xff]
      %v721 = vmul.f32 %v576, %v720
      %v722 = vsel %vm561, %v721, 0.0
      %723 = vadd.xlane.f32.xlu0 %v722
      %v724 = vpop.xlane.xlu0 %723
      %vm725 = vcmp.eq.s32.totalorder %v217, 6
      %v726 = vsel %vm725, %v724, 0.0
      %v727 = vadd.f32 %v718, %v726
      %s728 = scalar_lea.vmem %s191, 56
      %v729 = vld [vmem:[%s728] sm:$0xff]
      %v730 = vmul.f32 %v576, %v729
      %v731 = vsel %vm561, %v730, 0.0
      %732 = vadd.xlane.f32.xlu0 %v731
      %v733 = vpop.xlane.xlu0 %732
      %vm734 = vcmp.eq.s32.totalorder %v217, 7
      %v735 = vsel %vm734, %v733, 0.0
      %v736 = vadd.f32 %v727, %v735
      %s737 = scalar_lea.vmem %s191, 64
      %v738 = vld [vmem:[%s737] sm:$0xff]
      %v739 = vmul.f32 %v576, %v738
      %v740 = vsel %vm561, %v739, 0.0
      %741 = vadd.xlane.f32.xlu0 %v740
      %v742 = vpop.xlane.xlu0 %741
      %vm743 = vcmp.eq.s32.totalorder %v217, 8
      %v744 = vsel %vm743, %v742, 0.0
      %v745 = vadd.f32 %v736, %v744
      %s746 = scalar_lea.vmem %s191, 72
      %v747 = vld [vmem:[%s746] sm:$0xff]
      %v748 = vmul.f32 %v576, %v747
      %v749 = vsel %vm561, %v748, 0.0
      %750 = vadd.xlane.f32.xlu0 %v749
      %v751 = vpop.xlane.xlu0 %750
      %vm752 = vcmp.eq.s32.totalorder %v217, 9
      %v753 = vsel %vm752, %v751, 0.0
      %v754 = vadd.f32 %v745, %v753
      %s755 = scalar_lea.vmem %s191, 80
      %v756 = vld [vmem:[%s755] sm:$0xff]
      %v757 = vmul.f32 %v576, %v756
      %v758 = vsel %vm561, %v757, 0.0
      %759 = vadd.xlane.f32.xlu0 %v758
      %v760 = vpop.xlane.xlu0 %759
      %vm761 = vcmp.eq.s32.totalorder %v217, 10
      %v762 = vsel %vm761, %v760, 0.0
      %v763 = vadd.f32 %v754, %v762
      %s764 = scalar_lea.vmem %s191, 88
      %v765 = vld [vmem:[%s764] sm:$0xff]
      %v766 = vmul.f32 %v576, %v765
      %v767 = vsel %vm561, %v766, 0.0
      %768 = vadd.xlane.f32.xlu0 %v767
      %v769 = vpop.xlane.xlu0 %768
      %vm770 = vcmp.eq.s32.totalorder %v217, 11
      %v771 = vsel %vm770, %v769, 0.0
      %v772 = vadd.f32 %v763, %v771
      %s773 = scalar_lea.vmem %s191, 96
      %v774 = vld [vmem:[%s773] sm:$0xff]
      %v775 = vmul.f32 %v576, %v774
      %v776 = vsel %vm561, %v775, 0.0
      %777 = vadd.xlane.f32.xlu0 %v776
      %v778 = vpop.xlane.xlu0 %777
      %vm779 = vcmp.eq.s32.totalorder %v217, 12
      %v780 = vsel %vm779, %v778, 0.0
      %v781 = vadd.f32 %v772, %v780
      %s782 = scalar_lea.vmem %s191, 104
      %v783 = vld [vmem:[%s782] sm:$0xff]
      %v784 = vmul.f32 %v576, %v783
      %v785 = vsel %vm561, %v784, 0.0
      %786 = vadd.xlane.f32.xlu0 %v785
      %v787 = vpop.xlane.xlu0 %786
      %vm788 = vcmp.eq.s32.totalorder %v217, 13
      %v789 = vsel %vm788, %v787, 0.0
      %v790 = vadd.f32 %v781, %v789
      %s791 = scalar_lea.vmem %s191, 112
      %v792 = vld [vmem:[%s791] sm:$0xff]
      %v793 = vmul.f32 %v576, %v792
      %v794 = vsel %vm561, %v793, 0.0
      %795 = vadd.xlane.f32.xlu0 %v794
      %v796 = vpop.xlane.xlu0 %795
      %vm797 = vcmp.eq.s32.totalorder %v217, 14
      %v798 = vsel %vm797, %v796, 0.0
      %v799 = vadd.f32 %v790, %v798
      %s800 = scalar_lea.vmem %s191, 120
      %v801 = vld [vmem:[%s800] sm:$0xff]
      %v802 = vmul.f32 %v576, %v801
      %v803 = vsel %vm561, %v802, 0.0
      %804 = vadd.xlane.f32.xlu0 %v803
      %v805 = vpop.xlane.xlu0 %804
      %vm806 = vcmp.eq.s32.totalorder %v217, 15
      %v807 = vsel %vm806, %v805, 0.0
      %v808 = vadd.f32 %v799, %v807
      %s809 = scalar_lea.vmem %s191, 128
      %v810 = vld [vmem:[%s809] sm:$0xff]
      %v811 = vmul.f32 %v576, %v810
      %v812 = vsel %vm561, %v811, 0.0
      %813 = vadd.xlane.f32.xlu0 %v812
      %v814 = vpop.xlane.xlu0 %813
      %vm815 = vcmp.eq.s32.totalorder %v217, 16
      %v816 = vsel %vm815, %v814, 0.0
      %v817 = vadd.f32 %v808, %v816
      %s818 = scalar_lea.vmem %s191, 136
      %v819 = vld [vmem:[%s818] sm:$0xff]
      %v820 = vmul.f32 %v576, %v819
      %v821 = vsel %vm561, %v820, 0.0
      %822 = vadd.xlane.f32.xlu0 %v821
      %v823 = vpop.xlane.xlu0 %822
      %vm824 = vcmp.eq.s32.totalorder %v217, 17
      %v825 = vsel %vm824, %v823, 0.0
      %v826 = vadd.f32 %v817, %v825
      %s827 = scalar_lea.vmem %s191, 144
      %v828 = vld [vmem:[%s827] sm:$0xff]
      %v829 = vmul.f32 %v576, %v828
      %v830 = vsel %vm561, %v829, 0.0
      %831 = vadd.xlane.f32.xlu0 %v830
      %v832 = vpop.xlane.xlu0 %831
      %vm833 = vcmp.eq.s32.totalorder %v217, 18
      %v834 = vsel %vm833, %v832, 0.0
      %v835 = vadd.f32 %v826, %v834
      %s836 = scalar_lea.vmem %s191, 152
      %v837 = vld [vmem:[%s836] sm:$0xff]
      %v838 = vmul.f32 %v576, %v837
      %v839 = vsel %vm561, %v838, 0.0
      %840 = vadd.xlane.f32.xlu0 %v839
      %v841 = vpop.xlane.xlu0 %840
      %vm842 = vcmp.eq.s32.totalorder %v217, 19
      %v843 = vsel %vm842, %v841, 0.0
      %v844 = vadd.f32 %v835, %v843
      %s845 = scalar_lea.vmem %s191, 160
      %v846 = vld [vmem:[%s845] sm:$0xff]
      %v847 = vmul.f32 %v576, %v846
      %v848 = vsel %vm561, %v847, 0.0
      %849 = vadd.xlane.f32.xlu0 %v848
      %v850 = vpop.xlane.xlu0 %849
      %vm851 = vcmp.eq.s32.totalorder %v217, 20
      %v852 = vsel %vm851, %v850, 0.0
      %v853 = vadd.f32 %v844, %v852
      %s854 = scalar_lea.vmem %s191, 168
      %v855 = vld [vmem:[%s854] sm:$0xff]
      %v856 = vmul.f32 %v576, %v855
      %v857 = vsel %vm561, %v856, 0.0
      %858 = vadd.xlane.f32.xlu0 %v857
      %v859 = vpop.xlane.xlu0 %858
      %vm860 = vcmp.eq.s32.totalorder %v217, 21
      %v861 = vsel %vm860, %v859, 0.0
      %v862 = vadd.f32 %v853, %v861
      %s863 = scalar_lea.vmem %s191, 176
      %v864 = vld [vmem:[%s863] sm:$0xff]
      %v865 = vmul.f32 %v576, %v864
      %v866 = vsel %vm561, %v865, 0.0
      %867 = vadd.xlane.f32.xlu0 %v866
      %v868 = vpop.xlane.xlu0 %867
      %vm869 = vcmp.eq.s32.totalorder %v217, 22
      %v870 = vsel %vm869, %v868, 0.0
      %v871 = vadd.f32 %v862, %v870
      %s872 = scalar_lea.vmem %s191, 184
      %v873 = vld [vmem:[%s872] sm:$0xff]
      %v874 = vmul.f32 %v576, %v873
      %v875 = vsel %vm561, %v874, 0.0
      %876 = vadd.xlane.f32.xlu0 %v875
      %v877 = vpop.xlane.xlu0 %876
      %vm878 = vcmp.eq.s32.totalorder %v217, 23
      %v879 = vsel %vm878, %v877, 0.0
      %v880 = vadd.f32 %v871, %v879
      %s881 = scalar_lea.vmem %s191, 192
      %v882 = vld [vmem:[%s881] sm:$0xff]
      %v883 = vmul.f32 %v576, %v882
      %v884 = vsel %vm561, %v883, 0.0
      %885 = vadd.xlane.f32.xlu0 %v884
      %v886 = vpop.xlane.xlu0 %885
      %vm887 = vcmp.eq.s32.totalorder %v217, 24
      %v888 = vsel %vm887, %v886, 0.0
      %v889 = vadd.f32 %v880, %v888
      %s890 = scalar_lea.vmem %s191, 200
      %v891 = vld [vmem:[%s890] sm:$0xff]
      %v892 = vmul.f32 %v576, %v891
      %v893 = vsel %vm561, %v892, 0.0
      %894 = vadd.xlane.f32.xlu0 %v893
      %v895 = vpop.xlane.xlu0 %894
      %vm896 = vcmp.eq.s32.totalorder %v217, 25
      %v897 = vsel %vm896, %v895, 0.0
      %v898 = vadd.f32 %v889, %v897
      %s899 = scalar_lea.vmem %s191, 208
      %v900 = vld [vmem:[%s899] sm:$0xff]
      %v901 = vmul.f32 %v576, %v900
      %v902 = vsel %vm561, %v901, 0.0
      %903 = vadd.xlane.f32.xlu0 %v902
      %v904 = vpop.xlane.xlu0 %903
      %vm905 = vcmp.eq.s32.totalorder %v217, 26
      %v906 = vsel %vm905, %v904, 0.0
      %v907 = vadd.f32 %v898, %v906
      %s908 = scalar_lea.vmem %s191, 216
      %v909 = vld [vmem:[%s908] sm:$0xff]
      %v910 = vmul.f32 %v576, %v909
      %v911 = vsel %vm561, %v910, 0.0
      %912 = vadd.xlane.f32.xlu0 %v911
      %v913 = vpop.xlane.xlu0 %912
      %vm914 = vcmp.eq.s32.totalorder %v217, 27
      %v915 = vsel %vm914, %v913, 0.0
      %v916 = vadd.f32 %v907, %v915
      %s917 = scalar_lea.vmem %s191, 224
      %v918 = vld [vmem:[%s917] sm:$0xff]
      %v919 = vmul.f32 %v576, %v918
      %v920 = vsel %vm561, %v919, 0.0
      %921 = vadd.xlane.f32.xlu0 %v920
      %v922 = vpop.xlane.xlu0 %921
      %vm923 = vcmp.eq.s32.totalorder %v217, 28
      %v924 = vsel %vm923, %v922, 0.0
      %v925 = vadd.f32 %v916, %v924
      %s926 = scalar_lea.vmem %s191, 232
      %v927 = vld [vmem:[%s926] sm:$0xff]
      %v928 = vmul.f32 %v576, %v927
      %v929 = vsel %vm561, %v928, 0.0
      %930 = vadd.xlane.f32.xlu0 %v929
      %v931 = vpop.xlane.xlu0 %930
      %vm932 = vcmp.eq.s32.totalorder %v217, 29
      %v933 = vsel %vm932, %v931, 0.0
      %v934 = vadd.f32 %v925, %v933
      %s935 = scalar_lea.vmem %s191, 240
      %v936 = vld [vmem:[%s935] sm:$0xff]
      %v937 = vmul.f32 %v576, %v936
      %v938 = vsel %vm561, %v937, 0.0
      %939 = vadd.xlane.f32.xlu0 %v938
      %v940 = vpop.xlane.xlu0 %939
      %vm941 = vcmp.eq.s32.totalorder %v217, 30
      %v942 = vsel %vm941, %v940, 0.0
      %v943 = vadd.f32 %v934, %v942
      %s944 = scalar_lea.vmem %s191, 248
      %v945 = vld [vmem:[%s944] sm:$0xff]
      %v946 = vmul.f32 %v576, %v945
      %v947 = vsel %vm561, %v946, 0.0
      %948 = vadd.xlane.f32.xlu0 %v947
      %v949 = vpop.xlane.xlu0 %948
      %vm950 = vcmp.eq.s32.totalorder %v217, 31
      %v951 = vsel %vm950, %v949, 0.0
      %v952 = vadd.f32 %v943, %v951
      %953 = vst.msk [vmem:[#allocation4] sm:$0xff] %vm232, %v952
      %954 = vst.msk [vmem:[#allocation2] sm:$0xff] %vm583, %v565
      %s955 = sadd.s32 %s220, 1
      %s956 = sld [smem:[#allocation6 + %s955]]
      %s957 = scalar_lea.vmem %s2, 8
      %v958 = vld [vmem:[%s957] sm:$0xff]
      %s959 = scalar_lea.vmem %s159, 8
      %v960 = vld [vmem:[%s959] sm:$0xff]
      %s961 = scalar_lea.vmem %s143, 8
      %v962 = vld [vmem:[%s961] sm:$0xff]
      %v963 = vld [vmem:[%s175] sm:$0xff]
      %965 = vset.pattern.permute.xlu0 0
      %966 = vperm.xlu0 %965, %v958
      %v967 = vpop.permute.xlu0 %966
      %v969 = vmul.f32 %v967, %v963
      %v970 = vsel %vm232, %v958, 0
      %v973 = vsel %vm232, %v962, 0
      %975 = vmatprep.subr.mxu0 0.0
      %976 = vmatpush1.xpose.msra.mxu0 0.0
      %977 = vmatprep.subr.mxu0 0.0
      %978 = vmatpush1.xpose.msra.mxu0 0.0
      %979 = vmatprep.subr.mxu0 0.0
      %980 = vmatpush1.xpose.msra.mxu0 0.0
      %981 = vmatprep.subr.mxu0 0.0
      %982 = vmatpush1.xpose.msra.mxu0 0.0
      %983 = vmatprep.subr.mxu0 0.0
      %984 = vmatpush1.xpose.msra.mxu0 0.0
      %985 = vmatprep.subr.mxu0 0.0
      %986 = vmatpush1.xpose.msra.mxu0 0.0
      %987 = vmatprep.subr.mxu0 0.0
      %988 = vmatpush1.xpose.msra.mxu0 0.0
      %989 = vmatprep.subr.mxu0 0.0
      %990 = vmatpush1.xpose.msra.mxu0 0.0
      %991 = vmatprep.subr.mxu0 0.0
      %992 = vmatpush1.xpose.msra.mxu0 0.0
      %993 = vmatprep.subr.mxu0 0.0
      %994 = vmatpush1.xpose.msra.mxu0 0.0
      %995 = vmatprep.subr.mxu0 0.0
      %996 = vmatpush1.xpose.msra.mxu0 0.0
      %997 = vmatprep.subr.mxu0 0.0
      %998 = vmatpush1.xpose.msra.mxu0 0.0
      %999 = vmatprep.subr.mxu0 0.0
      %1000 = vmatpush1.xpose.msra.mxu0 0.0
      %1001 = vmatprep.subr.mxu0 0.0
      %1002 = vmatpush1.xpose.msra.mxu0 0.0
      %1003 = vmatprep.subr.mxu0 0.0
      %1004 = vmatpush1.xpose.msra.mxu0 0.0
      %1005 = vmatprep.subr.mxu0 0.0
      %1006 = vmatpush1.xpose.msra.mxu0 %v973
      %1007 = vmatprep.subr.mxu0 0.0
      %1008 = vmatpush2.xpose.msra.mxu0 0.0
      %1009 = vmatprep.subr.mxu0 0.0
      %1010 = vmatpush2.xpose.msra.mxu0 0.0
      %1011 = vmatprep.subr.mxu0 0.0
      %1012 = vmatpush2.xpose.msra.mxu0 0.0
      %1013 = vmatprep.subr.mxu0 0.0
      %1014 = vmatpush2.xpose.msra.mxu0 0.0
      %1015 = vmatprep.subr.mxu0 0.0
      %1016 = vmatpush2.xpose.msra.mxu0 0.0
      %1017 = vmatprep.subr.mxu0 0.0
      %1018 = vmatpush2.xpose.msra.mxu0 0.0
      %1019 = vmatprep.subr.mxu0 0.0
      %1020 = vmatpush2.xpose.msra.mxu0 0.0
      %1021 = vmatprep.subr.mxu0 0.0
      %1022 = vmatpush2.xpose.msra.mxu0 0.0
      %1023 = vmatprep.subr.mxu0 0.0
      %1024 = vmatpush2.xpose.msra.mxu0 0.0
      %1025 = vmatprep.subr.mxu0 0.0
      %1026 = vmatpush2.xpose.msra.mxu0 0.0
      %1027 = vmatprep.subr.mxu0 0.0
      %1028 = vmatpush2.xpose.msra.mxu0 0.0
      %1029 = vmatprep.subr.mxu0 0.0
      %1030 = vmatpush2.xpose.msra.mxu0 0.0
      %1031 = vmatprep.subr.mxu0 0.0
      %1032 = vmatpush2.xpose.msra.mxu0 0.0
      %1033 = vmatprep.subr.mxu0 0.0
      %1034 = vmatpush2.xpose.msra.mxu0 0.0
      %1035 = vmatprep.subr.mxu0 0.0
      %1036 = vmatpush2.xpose.msra.mxu0 0.0
      %1037 = vmatprep.subr.mxu0 0.0
      %1038 = vmatpush2.xpose.msra.mxu0 0.0
      %1039 = vmatprep.mubr.f32.mxu0 0.0
      %1040 = vmatmul.mubr.f32.gmra.mxu0 %v970
      %v1041 = vpop.f32.mrf.mxu0
      %v1042 = vadd.f32 %v969, %v1041
      %v1043 = vpop.f32.mrf.mxu0
      %1044 = vdwg.mxu0
      %v1045 = vld [vmem:[%s308] sm:$0xff]
      %1046 = vset.pattern.permute.xlu0 1
      %1047 = vperm.xlu0 %1046, %v958
      %v1048 = vpop.permute.xlu0 %1047
      %v1050 = vmul.f32 %v1048, %v1045
      %v1051 = vadd.f32 %v1042, %v1050
      %v1052 = vld [vmem:[%s316] sm:$0xff]
      %1053 = vset.pattern.permute.xlu0 2
      %1054 = vperm.xlu0 %1053, %v958
      %v1055 = vpop.permute.xlu0 %1054
      %v1057 = vmul.f32 %v1055, %v1052
      %v1058 = vadd.f32 %v1051, %v1057
      %v1059 = vld [vmem:[%s324] sm:$0xff]
      %1060 = vset.pattern.permute.xlu0 3
      %1061 = vperm.xlu0 %1060, %v958
      %v1062 = vpop.permute.xlu0 %1061
      %v1064 = vmul.f32 %v1062, %v1059
      %v1065 = vadd.f32 %v1058, %v1064
      %v1066 = vld [vmem:[%s332] sm:$0xff]
      %1067 = vset.pattern.permute.xlu0 4
      %1068 = vperm.xlu0 %1067, %v958
      %v1069 = vpop.permute.xlu0 %1068
      %v1071 = vmul.f32 %v1069, %v1066
      %v1072 = vadd.f32 %v1065, %v1071
      %v1073 = vld [vmem:[%s340] sm:$0xff]
      %1074 = vset.pattern.permute.xlu0 5
      %1075 = vperm.xlu0 %1074, %v958
      %v1076 = vpop.permute.xlu0 %1075
      %v1078 = vmul.f32 %v1076, %v1073
      %v1079 = vadd.f32 %v1072, %v1078
      %v1080 = vld [vmem:[%s348] sm:$0xff]
      %1081 = vset.pattern.permute.xlu0 6
      %1082 = vperm.xlu0 %1081, %v958
      %v1083 = vpop.permute.xlu0 %1082
      %v1085 = vmul.f32 %v1083, %v1080
      %v1086 = vadd.f32 %v1079, %v1085
      %v1087 = vld [vmem:[%s356] sm:$0xff]
      %1088 = vset.pattern.permute.xlu0 7
      %1089 = vperm.xlu0 %1088, %v958
      %v1090 = vpop.permute.xlu0 %1089
      %v1092 = vmul.f32 %v1090, %v1087
      %v1093 = vadd.f32 %v1086, %v1092
      %v1094 = vld [vmem:[%s364] sm:$0xff]
      %1095 = vset.pattern.permute.xlu0 8
      %1096 = vperm.xlu0 %1095, %v958
      %v1097 = vpop.permute.xlu0 %1096
      %v1099 = vmul.f32 %v1097, %v1094
      %v1100 = vadd.f32 %v1093, %v1099
      %v1101 = vld [vmem:[%s372] sm:$0xff]
      %1102 = vset.pattern.permute.xlu0 9
      %1103 = vperm.xlu0 %1102, %v958
      %v1104 = vpop.permute.xlu0 %1103
      %v1106 = vmul.f32 %v1104, %v1101
      %v1107 = vadd.f32 %v1100, %v1106
      %v1108 = vld [vmem:[%s380] sm:$0xff]
      %1109 = vset.pattern.permute.xlu0 10
      %1110 = vperm.xlu0 %1109, %v958
      %v1111 = vpop.permute.xlu0 %1110
      %v1113 = vmul.f32 %v1111, %v1108
      %v1114 = vadd.f32 %v1107, %v1113
      %v1115 = vld [vmem:[%s388] sm:$0xff]
      %1116 = vset.pattern.permute.xlu0 11
      %1117 = vperm.xlu0 %1116, %v958
      %v1118 = vpop.permute.xlu0 %1117
      %v1120 = vmul.f32 %v1118, %v1115
      %v1121 = vadd.f32 %v1114, %v1120
      %v1122 = vld [vmem:[%s396] sm:$0xff]
      %1123 = vset.pattern.permute.xlu0 12
      %1124 = vperm.xlu0 %1123, %v958
      %v1125 = vpop.permute.xlu0 %1124
      %v1127 = vmul.f32 %v1125, %v1122
      %v1128 = vadd.f32 %v1121, %v1127
      %v1129 = vld [vmem:[%s404] sm:$0xff]
      %1130 = vset.pattern.permute.xlu0 13
      %1131 = vperm.xlu0 %1130, %v958
      %v1132 = vpop.permute.xlu0 %1131
      %v1134 = vmul.f32 %v1132, %v1129
      %v1135 = vadd.f32 %v1128, %v1134
      %v1136 = vld [vmem:[%s412] sm:$0xff]
      %1137 = vset.pattern.permute.xlu0 14
      %1138 = vperm.xlu0 %1137, %v958
      %v1139 = vpop.permute.xlu0 %1138
      %v1141 = vmul.f32 %v1139, %v1136
      %v1142 = vadd.f32 %v1135, %v1141
      %v1143 = vld [vmem:[%s420] sm:$0xff]
      %1144 = vset.pattern.permute.xlu0 15
      %1145 = vperm.xlu0 %1144, %v958
      %v1146 = vpop.permute.xlu0 %1145
      %v1148 = vmul.f32 %v1146, %v1143
      %v1149 = vadd.f32 %v1142, %v1148
      %v1150 = vld [vmem:[%s428] sm:$0xff]
      %1151 = vset.pattern.permute.xlu0 16
      %1152 = vperm.xlu0 %1151, %v958
      %v1153 = vpop.permute.xlu0 %1152
      %v1155 = vmul.f32 %v1153, %v1150
      %v1156 = vadd.f32 %v1149, %v1155
      %v1157 = vld [vmem:[%s436] sm:$0xff]
      %1158 = vset.pattern.permute.xlu0 17
      %1159 = vperm.xlu0 %1158, %v958
      %v1160 = vpop.permute.xlu0 %1159
      %v1162 = vmul.f32 %v1160, %v1157
      %v1163 = vadd.f32 %v1156, %v1162
      %v1164 = vld [vmem:[%s444] sm:$0xff]
      %1165 = vset.pattern.permute.xlu0 18
      %1166 = vperm.xlu0 %1165, %v958
      %v1167 = vpop.permute.xlu0 %1166
      %v1169 = vmul.f32 %v1167, %v1164
      %v1170 = vadd.f32 %v1163, %v1169
      %v1171 = vld [vmem:[%s452] sm:$0xff]
      %1172 = vset.pattern.permute.xlu0 19
      %1173 = vperm.xlu0 %1172, %v958
      %v1174 = vpop.permute.xlu0 %1173
      %v1176 = vmul.f32 %v1174, %v1171
      %v1177 = vadd.f32 %v1170, %v1176
      %v1178 = vld [vmem:[%s460] sm:$0xff]
      %1179 = vset.pattern.permute.xlu0 20
      %1180 = vperm.xlu0 %1179, %v958
      %v1181 = vpop.permute.xlu0 %1180
      %v1183 = vmul.f32 %v1181, %v1178
      %v1184 = vadd.f32 %v1177, %v1183
      %v1185 = vld [vmem:[%s468] sm:$0xff]
      %1186 = vset.pattern.permute.xlu0 21
      %1187 = vperm.xlu0 %1186, %v958
      %v1188 = vpop.permute.xlu0 %1187
      %v1190 = vmul.f32 %v1188, %v1185
      %v1191 = vadd.f32 %v1184, %v1190
      %v1192 = vld [vmem:[%s476] sm:$0xff]
      %1193 = vset.pattern.permute.xlu0 22
      %1194 = vperm.xlu0 %1193, %v958
      %v1195 = vpop.permute.xlu0 %1194
      %v1197 = vmul.f32 %v1195, %v1192
      %v1198 = vadd.f32 %v1191, %v1197
      %v1199 = vld [vmem:[%s484] sm:$0xff]
      %1200 = vset.pattern.permute.xlu0 23
      %1201 = vperm.xlu0 %1200, %v958
      %v1202 = vpop.permute.xlu0 %1201
      %v1204 = vmul.f32 %v1202, %v1199
      %v1205 = vadd.f32 %v1198, %v1204
      %v1206 = vld [vmem:[%s492] sm:$0xff]
      %1207 = vset.pattern.permute.xlu0 24
      %1208 = vperm.xlu0 %1207, %v958
      %v1209 = vpop.permute.xlu0 %1208
      %v1211 = vmul.f32 %v1209, %v1206
      %v1212 = vadd.f32 %v1205, %v1211
      %v1213 = vld [vmem:[%s500] sm:$0xff]
      %1214 = vset.pattern.permute.xlu0 25
      %1215 = vperm.xlu0 %1214, %v958
      %v1216 = vpop.permute.xlu0 %1215
      %v1218 = vmul.f32 %v1216, %v1213
      %v1219 = vadd.f32 %v1212, %v1218
      %v1220 = vld [vmem:[%s508] sm:$0xff]
      %1221 = vset.pattern.permute.xlu0 26
      %1222 = vperm.xlu0 %1221, %v958
      %v1223 = vpop.permute.xlu0 %1222
      %v1225 = vmul.f32 %v1223, %v1220
      %v1226 = vadd.f32 %v1219, %v1225
      %v1227 = vld [vmem:[%s516] sm:$0xff]
      %1228 = vset.pattern.permute.xlu0 27
      %1229 = vperm.xlu0 %1228, %v958
      %v1230 = vpop.permute.xlu0 %1229
      %v1232 = vmul.f32 %v1230, %v1227
      %v1233 = vadd.f32 %v1226, %v1232
      %v1234 = vld [vmem:[%s524] sm:$0xff]
      %1235 = vset.pattern.permute.xlu0 28
      %1236 = vperm.xlu0 %1235, %v958
      %v1237 = vpop.permute.xlu0 %1236
      %v1239 = vmul.f32 %v1237, %v1234
      %v1240 = vadd.f32 %v1233, %v1239
      %v1241 = vld [vmem:[%s532] sm:$0xff]
      %1242 = vset.pattern.permute.xlu0 29
      %1243 = vperm.xlu0 %1242, %v958
      %v1244 = vpop.permute.xlu0 %1243
      %v1246 = vmul.f32 %v1244, %v1241
      %v1247 = vadd.f32 %v1240, %v1246
      %v1248 = vld [vmem:[%s540] sm:$0xff]
      %1249 = vset.pattern.permute.xlu0 30
      %1250 = vperm.xlu0 %1249, %v958
      %v1251 = vpop.permute.xlu0 %1250
      %v1253 = vmul.f32 %v1251, %v1248
      %v1254 = vadd.f32 %v1247, %v1253
      %v1255 = vld [vmem:[%s548] sm:$0xff]
      %1256 = vset.pattern.permute.xlu0 31
      %1257 = vperm.xlu0 %1256, %v958
      %v1258 = vpop.permute.xlu0 %1257
      %v1260 = vmul.f32 %v1258, %v1255
      %v1261 = vadd.f32 %v1254, %v1260
      %v1262 = vmul.f32 %v1261, 0.17677669
      %v1263 = vstv %s956
      %vm1264 = vcmp.lt.s32.totalorder %v219, %v1263
      %v1265 = vsel %vm1264, %v1262, -1000000.0
      %s1266 = scalar_lea.vmem [#allocation2], 8
      %v1267 = vld [vmem:[%s1266] sm:$0xff]
      %v1268 = vsel %vm561, %v1265, -inf
      %1269 = vmax.xlane.f32.xlu0 %v1268
      %v1270 = vpop.xlane.xlu0 %1269
      %v1271 = vmax.f32 %v1267, %v1270
      %v1272 = vsub.f32 %v1267, %v1271
      %v1273 = vmul.f32 %v1272, 1.442695
      %v1274 = vpow.pop %v1273
      %1276 = vset.pattern.permute.xlu0 0
      %1277 = vperm.xlu0 %1276, %v1271
      %v1278 = vpop.permute.xlu0 %1277
      %v1280 = vsub.f32 %v1265, %v1278
      %v1281 = vmul.f32 %v1280, 1.442695
      %v1282 = vpow.pop %v1281
      %s1283 = scalar_lea.vmem [#allocation3], 8
      %v1284 = vld [vmem:[%s1283] sm:$0xff]
      %v1285 = vmul.f32 %v1274, %v1284
      %v1286 = vsel %vm561, %v1282, 0.0
      %1287 = vadd.xlane.f32.xlu0 %v1286
      %v1288 = vpop.xlane.xlu0 %1287
      %v1289 = vadd.f32 %v1285, %v1288
      %1290 = vst.msk [vmem:[%s1283] sm:$0xff] %vm583, %v1289
      %s1291 = scalar_lea.vmem [#allocation4], 8
      %v1292 = vld [vmem:[%s1291] sm:$0xff]
      %1294 = vset.pattern.permute.xlu0 0
      %1295 = vperm.xlu0 %1294, %v1274
      %v1296 = vpop.permute.xlu0 %1295
      %v1298 = vmul.f32 %v1296, %v1292
      %v1300 = vsel %vm561, %v1282, 0
      %1302 = vmatprep.subr.mxu0 0.0
      %1303 = vmatpush1.msra.mxu0 0.0
      %1304 = vmatprep.subr.mxu0 0.0
      %1305 = vmatpush1.msra.mxu0 0.0
      %1306 = vmatprep.subr.mxu0 0.0
      %1307 = vmatpush1.msra.mxu0 0.0
      %1308 = vmatprep.subr.mxu0 0.0
      %1309 = vmatpush1.msra.mxu0 0.0
      %1310 = vmatprep.subr.mxu0 0.0
      %1311 = vmatpush1.msra.mxu0 0.0
      %1312 = vmatprep.subr.mxu0 0.0
      %1313 = vmatpush1.msra.mxu0 0.0
      %1314 = vmatprep.subr.mxu0 0.0
      %1315 = vmatpush1.msra.mxu0 0.0
      %1316 = vmatprep.subr.mxu0 0.0
      %1317 = vmatpush1.msra.mxu0 0.0
      %1318 = vmatprep.subr.mxu0 0.0
      %1319 = vmatpush1.msra.mxu0 0.0
      %1320 = vmatprep.subr.mxu0 0.0
      %1321 = vmatpush1.msra.mxu0 0.0
      %1322 = vmatprep.subr.mxu0 0.0
      %1323 = vmatpush1.msra.mxu0 0.0
      %1324 = vmatprep.subr.mxu0 0.0
      %1325 = vmatpush1.msra.mxu0 0.0
      %1326 = vmatprep.subr.mxu0 0.0
      %1327 = vmatpush1.msra.mxu0 0.0
      %1328 = vmatprep.subr.mxu0 0.0
      %1329 = vmatpush1.msra.mxu0 0.0
      %1330 = vmatprep.subr.mxu0 0.0
      %1331 = vmatpush1.msra.mxu0 0.0
      %1332 = vmatprep.subr.mxu0 0.0
      %1333 = vmatpush1.msra.mxu0 %v960
      %1334 = vmatprep.subr.mxu0 0.0
      %1335 = vmatpush2.msra.mxu0 0.0
      %1336 = vmatprep.subr.mxu0 0.0
      %1337 = vmatpush2.msra.mxu0 0.0
      %1338 = vmatprep.subr.mxu0 0.0
      %1339 = vmatpush2.msra.mxu0 0.0
      %1340 = vmatprep.subr.mxu0 0.0
      %1341 = vmatpush2.msra.mxu0 0.0
      %1342 = vmatprep.subr.mxu0 0.0
      %1343 = vmatpush2.msra.mxu0 0.0
      %1344 = vmatprep.subr.mxu0 0.0
      %1345 = vmatpush2.msra.mxu0 0.0
      %1346 = vmatprep.subr.mxu0 0.0
      %1347 = vmatpush2.msra.mxu0 0.0
      %1348 = vmatprep.subr.mxu0 0.0
      %1349 = vmatpush2.msra.mxu0 0.0
      %1350 = vmatprep.subr.mxu0 0.0
      %1351 = vmatpush2.msra.mxu0 0.0
      %1352 = vmatprep.subr.mxu0 0.0
      %1353 = vmatpush2.msra.mxu0 0.0
      %1354 = vmatprep.subr.mxu0 0.0
      %1355 = vmatpush2.msra.mxu0 0.0
      %1356 = vmatprep.subr.mxu0 0.0
      %1357 = vmatpush2.msra.mxu0 0.0
      %1358 = vmatprep.subr.mxu0 0.0
      %1359 = vmatpush2.msra.mxu0 0.0
      %1360 = vmatprep.subr.mxu0 0.0
      %1361 = vmatpush2.msra.mxu0 0.0
      %1362 = vmatprep.subr.mxu0 0.0
      %1363 = vmatpush2.msra.mxu0 0.0
      %1364 = vmatprep.subr.mxu0 0.0
      %1365 = vmatpush2.msra.mxu0 0.0
      %1366 = vmatprep.mubr.f32.mxu0 0.0
      %1367 = vmatmul.mubr.f32.gmra.mxu0 %v1300
      %v1368 = vpop.f32.mrf.mxu0
      %v1369 = vadd.f32 0.0, %v1368
      %v1370 = vpop.f32.mrf.mxu0
      %1371 = vdwg.mxu0
      %v1372 = vadd.f32 %v1298, %v1369
      %v1373 = vld [vmem:[%s191] sm:$0xff]
      %v1374 = vmul.f32 %v1282, %v1373
      %v1375 = vsel %vm561, %v1374, 0.0
      %1376 = vadd.xlane.f32.xlu0 %v1375
      %v1377 = vpop.xlane.xlu0 %1376
      %v1378 = vsel %vm671, %v1377, 0.0
      %v1379 = vadd.f32 %v1372, %v1378
      %v1380 = vld [vmem:[%s674] sm:$0xff]
      %v1381 = vmul.f32 %v1282, %v1380
      %v1382 = vsel %vm561, %v1381, 0.0
      %1383 = vadd.xlane.f32.xlu0 %v1382
      %v1384 = vpop.xlane.xlu0 %1383
      %v1385 = vsel %vm680, %v1384, 0.0
      %v1386 = vadd.f32 %v1379, %v1385
      %v1387 = vld [vmem:[%s683] sm:$0xff]
      %v1388 = vmul.f32 %v1282, %v1387
      %v1389 = vsel %vm561, %v1388, 0.0
      %1390 = vadd.xlane.f32.xlu0 %v1389
      %v1391 = vpop.xlane.xlu0 %1390
      %v1392 = vsel %vm689, %v1391, 0.0
      %v1393 = vadd.f32 %v1386, %v1392
      %v1394 = vld [vmem:[%s692] sm:$0xff]
      %v1395 = vmul.f32 %v1282, %v1394
      %v1396 = vsel %vm561, %v1395, 0.0
      %1397 = vadd.xlane.f32.xlu0 %v1396
      %v1398 = vpop.xlane.xlu0 %1397
      %v1399 = vsel %vm698, %v1398, 0.0
      %v1400 = vadd.f32 %v1393, %v1399
      %v1401 = vld [vmem:[%s701] sm:$0xff]
      %v1402 = vmul.f32 %v1282, %v1401
      %v1403 = vsel %vm561, %v1402, 0.0
      %1404 = vadd.xlane.f32.xlu0 %v1403
      %v1405 = vpop.xlane.xlu0 %1404
      %v1406 = vsel %vm707, %v1405, 0.0
      %v1407 = vadd.f32 %v1400, %v1406
      %v1408 = vld [vmem:[%s710] sm:$0xff]
      %v1409 = vmul.f32 %v1282, %v1408
      %v1410 = vsel %vm561, %v1409, 0.0
      %1411 = vadd.xlane.f32.xlu0 %v1410
      %v1412 = vpop.xlane.xlu0 %1411
      %v1413 = vsel %vm716, %v1412, 0.0
      %v1414 = vadd.f32 %v1407, %v1413
      %v1415 = vld [vmem:[%s719] sm:$0xff]
      %v1416 = vmul.f32 %v1282, %v1415
      %v1417 = vsel %vm561, %v1416, 0.0
      %1418 = vadd.xlane.f32.xlu0 %v1417
      %v1419 = vpop.xlane.xlu0 %1418
      %v1420 = vsel %vm725, %v1419, 0.0
      %v1421 = vadd.f32 %v1414, %v1420
      %v1422 = vld [vmem:[%s728] sm:$0xff]
      %v1423 = vmul.f32 %v1282, %v1422
      %v1424 = vsel %vm561, %v1423, 0.0
      %1425 = vadd.xlane.f32.xlu0 %v1424
      %v1426 = vpop.xlane.xlu0 %1425
      %v1427 = vsel %vm734, %v1426, 0.0
      %v1428 = vadd.f32 %v1421, %v1427
      %v1429 = vld [vmem:[%s737] sm:$0xff]
      %v1430 = vmul.f32 %v1282, %v1429
      %v1431 = vsel %vm561, %v1430, 0.0
      %1432 = vadd.xlane.f32.xlu0 %v1431
      %v1433 = vpop.xlane.xlu0 %1432
      %v1434 = vsel %vm743, %v1433, 0.0
      %v1435 = vadd.f32 %v1428, %v1434
      %v1436 = vld [vmem:[%s746] sm:$0xff]
      %v1437 = vmul.f32 %v1282, %v1436
      %v1438 = vsel %vm561, %v1437, 0.0
      %1439 = vadd.xlane.f32.xlu0 %v1438
      %v1440 = vpop.xlane.xlu0 %1439
      %v1441 = vsel %vm752, %v1440, 0.0
      %v1442 = vadd.f32 %v1435, %v1441
      %v1443 = vld [vmem:[%s755] sm:$0xff]
      %v1444 = vmul.f32 %v1282, %v1443
      %v1445 = vsel %vm561, %v1444, 0.0
      %1446 = vadd.xlane.f32.xlu0 %v1445
      %v1447 = vpop.xlane.xlu0 %1446
      %v1448 = vsel %vm761, %v1447, 0.0
      %v1449 = vadd.f32 %v1442, %v1448
      %v1450 = vld [vmem:[%s764] sm:$0xff]
      %v1451 = vmul.f32 %v1282, %v1450
      %v1452 = vsel %vm561, %v1451, 0.0
      %1453 = vadd.xlane.f32.xlu0 %v1452
      %v1454 = vpop.xlane.xlu0 %1453
      %v1455 = vsel %vm770, %v1454, 0.0
      %v1456 = vadd.f32 %v1449, %v1455
      %v1457 = vld [vmem:[%s773] sm:$0xff]
      %v1458 = vmul.f32 %v1282, %v1457
      %v1459 = vsel %vm561, %v1458, 0.0
      %1460 = vadd.xlane.f32.xlu0 %v1459
      %v1461 = vpop.xlane.xlu0 %1460
      %v1462 = vsel %vm779, %v1461, 0.0
      %v1463 = vadd.f32 %v1456, %v1462
      %v1464 = vld [vmem:[%s782] sm:$0xff]
      %v1465 = vmul.f32 %v1282, %v1464
      %v1466 = vsel %vm561, %v1465, 0.0
      %1467 = vadd.xlane.f32.xlu0 %v1466
      %v1468 = vpop.xlane.xlu0 %1467
      %v1469 = vsel %vm788, %v1468, 0.0
      %v1470 = vadd.f32 %v1463, %v1469
      %v1471 = vld [vmem:[%s791] sm:$0xff]
      %v1472 = vmul.f32 %v1282, %v1471
      %v1473 = vsel %vm561, %v1472, 0.0
      %1474 = vadd.xlane.f32.xlu0 %v1473
      %v1475 = vpop.xlane.xlu0 %1474
      %v1476 = vsel %vm797, %v1475, 0.0
      %v1477 = vadd.f32 %v1470, %v1476
      %v1478 = vld [vmem:[%s800] sm:$0xff]
      %v1479 = vmul.f32 %v1282, %v1478
      %v1480 = vsel %vm561, %v1479, 0.0
      %1481 = vadd.xlane.f32.xlu0 %v1480
      %v1482 = vpop.xlane.xlu0 %1481
      %v1483 = vsel %vm806, %v1482, 0.0
      %v1484 = vadd.f32 %v1477, %v1483
      %v1485 = vld [vmem:[%s809] sm:$0xff]
      %v1486 = vmul.f32 %v1282, %v1485
      %v1487 = vsel %vm561, %v1486, 0.0
      %1488 = vadd.xlane.f32.xlu0 %v1487
      %v1489 = vpop.xlane.xlu0 %1488
      %v1490 = vsel %vm815, %v1489, 0.0
      %v1491 = vadd.f32 %v1484, %v1490
      %v1492 = vld [vmem:[%s818] sm:$0xff]
      %v1493 = vmul.f32 %v1282, %v1492
      %v1494 = vsel %vm561, %v1493, 0.0
      %1495 = vadd.xlane.f32.xlu0 %v1494
      %v1496 = vpop.xlane.xlu0 %1495
      %v1497 = vsel %vm824, %v1496, 0.0
      %v1498 = vadd.f32 %v1491, %v1497
      %v1499 = vld [vmem:[%s827] sm:$0xff]
      %v1500 = vmul.f32 %v1282, %v1499
      %v1501 = vsel %vm561, %v1500, 0.0
      %1502 = vadd.xlane.f32.xlu0 %v1501
      %v1503 = vpop.xlane.xlu0 %1502
      %v1504 = vsel %vm833, %v1503, 0.0
      %v1505 = vadd.f32 %v1498, %v1504
      %v1506 = vld [vmem:[%s836] sm:$0xff]
      %v1507 = vmul.f32 %v1282, %v1506
      %v1508 = vsel %vm561, %v1507, 0.0
      %1509 = vadd.xlane.f32.xlu0 %v1508
      %v1510 = vpop.xlane.xlu0 %1509
      %v1511 = vsel %vm842, %v1510, 0.0
      %v1512 = vadd.f32 %v1505, %v1511
      %v1513 = vld [vmem:[%s845] sm:$0xff]
      %v1514 = vmul.f32 %v1282, %v1513
      %v1515 = vsel %vm561, %v1514, 0.0
      %1516 = vadd.xlane.f32.xlu0 %v1515
      %v1517 = vpop.xlane.xlu0 %1516
      %v1518 = vsel %vm851, %v1517, 0.0
      %v1519 = vadd.f32 %v1512, %v1518
      %v1520 = vld [vmem:[%s854] sm:$0xff]
      %v1521 = vmul.f32 %v1282, %v1520
      %v1522 = vsel %vm561, %v1521, 0.0
      %1523 = vadd.xlane.f32.xlu0 %v1522
      %v1524 = vpop.xlane.xlu0 %1523
      %v1525 = vsel %vm860, %v1524, 0.0
      %v1526 = vadd.f32 %v1519, %v1525
      %v1527 = vld [vmem:[%s863] sm:$0xff]
      %v1528 = vmul.f32 %v1282, %v1527
      %v1529 = vsel %vm561, %v1528, 0.0
      %1530 = vadd.xlane.f32.xlu0 %v1529
      %v1531 = vpop.xlane.xlu0 %1530
      %v1532 = vsel %vm869, %v1531, 0.0
      %v1533 = vadd.f32 %v1526, %v1532
      %v1534 = vld [vmem:[%s872] sm:$0xff]
      %v1535 = vmul.f32 %v1282, %v1534
      %v1536 = vsel %vm561, %v1535, 0.0
      %1537 = vadd.xlane.f32.xlu0 %v1536
      %v1538 = vpop.xlane.xlu0 %1537
      %v1539 = vsel %vm878, %v1538, 0.0
      %v1540 = vadd.f32 %v1533, %v1539
      %v1541 = vld [vmem:[%s881] sm:$0xff]
      %v1542 = vmul.f32 %v1282, %v1541
      %v1543 = vsel %vm561, %v1542, 0.0
      %1544 = vadd.xlane.f32.xlu0 %v1543
      %v1545 = vpop.xlane.xlu0 %1544
      %v1546 = vsel %vm887, %v1545, 0.0
      %v1547 = vadd.f32 %v1540, %v1546
      %v1548 = vld [vmem:[%s890] sm:$0xff]
      %v1549 = vmul.f32 %v1282, %v1548
      %v1550 = vsel %vm561, %v1549, 0.0
      %1551 = vadd.xlane.f32.xlu0 %v1550
      %v1552 = vpop.xlane.xlu0 %1551
      %v1553 = vsel %vm896, %v1552, 0.0
      %v1554 = vadd.f32 %v1547, %v1553
      %v1555 = vld [vmem:[%s899] sm:$0xff]
      %v1556 = vmul.f32 %v1282, %v1555
      %v1557 = vsel %vm561, %v1556, 0.0
      %1558 = vadd.xlane.f32.xlu0 %v1557
      %v1559 = vpop.xlane.xlu0 %1558
      %v1560 = vsel %vm905, %v1559, 0.0
      %v1561 = vadd.f32 %v1554, %v1560
      %v1562 = vld [vmem:[%s908] sm:$0xff]
      %v1563 = vmul.f32 %v1282, %v1562
      %v1564 = vsel %vm561, %v1563, 0.0
      %1565 = vadd.xlane.f32.xlu0 %v1564
      %v1566 = vpop.xlane.xlu0 %1565
      %v1567 = vsel %vm914, %v1566, 0.0
      %v1568 = vadd.f32 %v1561, %v1567
      %v1569 = vld [vmem:[%s917] sm:$0xff]
      %v1570 = vmul.f32 %v1282, %v1569
      %v1571 = vsel %vm561, %v1570, 0.0
      %1572 = vadd.xlane.f32.xlu0 %v1571
      %v1573 = vpop.xlane.xlu0 %1572
      %v1574 = vsel %vm923, %v1573, 0.0
      %v1575 = vadd.f32 %v1568, %v1574
      %v1576 = vld [vmem:[%s926] sm:$0xff]
      %v1577 = vmul.f32 %v1282, %v1576
      %v1578 = vsel %vm561, %v1577, 0.0
      %1579 = vadd.xlane.f32.xlu0 %v1578
      %v1580 = vpop.xlane.xlu0 %1579
      %v1581 = vsel %vm932, %v1580, 0.0
      %v1582 = vadd.f32 %v1575, %v1581
      %v1583 = vld [vmem:[%s935] sm:$0xff]
      %v1584 = vmul.f32 %v1282, %v1583
      %v1585 = vsel %vm561, %v1584, 0.0
      %1586 = vadd.xlane.f32.xlu0 %v1585
      %v1587 = vpop.xlane.xlu0 %1586
      %v1588 = vsel %vm941, %v1587, 0.0
      %v1589 = vadd.f32 %v1582, %v1588
      %v1590 = vld [vmem:[%s944] sm:$0xff]
      %v1591 = vmul.f32 %v1282, %v1590
      %v1592 = vsel %vm561, %v1591, 0.0
      %1593 = vadd.xlane.f32.xlu0 %v1592
      %v1594 = vpop.xlane.xlu0 %1593
      %v1595 = vsel %vm950, %v1594, 0.0
      %v1596 = vadd.f32 %v1589, %v1595
      %1597 = vst.msk [vmem:[%s1291] sm:$0xff] %vm232, %v1596
      %1598 = vst.msk [vmem:[%s1266] sm:$0xff] %vm583, %v1271
    $region29: #{tpu_custom_call.1} parent=1 // pred_fallthru
      _
    // Predicated region
    $region30: #{tpu_custom_call.1} parent=1 // pred_check
      %p1599 = pneg %p199
    $region31: #{tpu_custom_call.1} parent=1 // pred_check_branch
      %1601 = sbr.rel (%p1599) target = $region33
    $region32: #{tpu_custom_call.1} parent=1 // pred_region
      %v1602 = vld [vmem:[#allocation4] sm:$0xff]
      %v1603 = vld [vmem:[#allocation3] sm:$0xff]
      %1605 = vset.pattern.permute.xlu0 0
      %1606 = vperm.xlu0 %1605, %v1603
      %v1607 = vpop.permute.xlu0 %1606
      %v1609 = vrcp.pop %v1607
      %v1610 = vmul.f32 %v1602, %v1609
      %vm1611 = vcmask 261120
      %1612 = vst.msk [vmem:[#allocation8] sm:$0xff] %vm1611, %v1610
      %s1613 = scalar_lea.vmem [#allocation4], 8
      %v1614 = vld [vmem:[%s1613] sm:$0xff]
      %s1615 = scalar_lea.vmem [#allocation3], 8
      %v1616 = vld [vmem:[%s1615] sm:$0xff]
      %1618 = vset.pattern.permute.xlu0 0
      %1619 = vperm.xlu0 %1618, %v1616
      %v1620 = vpop.permute.xlu0 %1619
      %v1622 = vrcp.pop %v1620
      %v1623 = vmul.f32 %v1614, %v1622
      %s1624 = scalar_lea.vmem [#allocation8], 8
      %1625 = vst.msk [vmem:[%s1624] sm:$0xff] %vm1611, %v1623
    $region33: #{tpu_custom_call.1} parent=1 // pred_fallthru
      _
    // Predicated region
    $region34: #{tpu_custom_call.1} parent=1 // pred_check
      _
    $region35: #{tpu_custom_call.1} parent=1 // pred_check_branch
      %1627 = sbr.rel (0) target = $region37
    $region36: #{tpu_custom_call.1} parent=1 // pred_region
      %s1629 = ssub.s32 256, 256
      %1630 = vsyncadd [#allocation9], %s1629
      %s1631 = sshll.u32 [#allocation8], 4
      %s1632 = int_to_ptr.vmem [resolvable:$true] %s1631
      %1637 = dma.vmem_to_hbm [thread:$0]  %s1632, 256, %s7, [#allocation9], 128, 128, 8
    $region37: #{tpu_custom_call.1} parent=1 // pred_fallthru
      _
    // Predicated region
    $region38: #{tpu_custom_call.1} parent=1 // pred_check
      _
    $region39: #{tpu_custom_call.1} parent=1 // pred_check_branch
      %1639 = sbr.rel (0) target = $region41
    $region40: #{tpu_custom_call.1} parent=1 // pred_region
      %1640 = dma.done [#allocation9], 256
    $region41: #{tpu_custom_call.1} parent=1 // pred_fallthru
      _
    %1641 = vsyncpa [#allocation9], 1

</llo_original>
